<compile_context>
chip_gen: v6e
topology: v6e:2x2x1
jax: 0.10.0
libtpu: 0.0.40
codegen_flags: <defaults>
</compile_context>

<pallas_src>
import jax
import jax.numpy as jnp
from jax.experimental import pallas as pl
from jax.experimental.pallas import tpu as pltpu

EPS = 1e-5  # default eps of both InstanceNorm2d and BatchNorm2d


# ----------------------------------------------------------------------------
# In-kernel helper: reflection-padded 3x3 im2col, slab order (kh, kw, cin)
# ----------------------------------------------------------------------------
def _write_im2col(col_ref, h):
    """h: (H, W, C) f32 value.  Writes (H*W, 9*C) bf16 im2col into col_ref."""
    H, W, C = h.shape
    # Taps shifted along W with reflection (dw = -1, 0, +1).
    left = jnp.concatenate([h[:, 1:2, :], h[:, :W - 1, :]], axis=1)
    right = jnp.concatenate([h[:, 1:, :], h[:, W - 2:W - 1, :]], axis=1)
    variants = (left, h, right)
    for kh in range(3):
        for kw in range(3):
            v = variants[kw]
            if kh == 0:        # row i-1, reflected at the top edge
                tap = jnp.concatenate([v[1:2], v[:H - 1]], axis=0)
            elif kh == 1:
                tap = v
            else:              # row i+1, reflected at the bottom edge
                tap = jnp.concatenate([v[1:], v[H - 2:H - 1]], axis=0)
            t = kh * 3 + kw
            col_ref[:, t * C:(t + 1) * C] = (
                tap.reshape(H * W, C).astype(col_ref.dtype))


# ----------------------------------------------------------------------------
# Kernel A: per batch sample -> conv1 + InstanceNorm(affine) + ReLU + conv2
#           (+ per-sample channel sum / sum-of-squares for BatchNorm stats)
# ----------------------------------------------------------------------------
def _conv_in_relu_conv_kernel(x_ref, w1_ref, b1_ref, g1_ref, be1_ref,
                              w2_ref, b2_ref,
                              y_ref, ssum_ref, ssq_ref, col_ref):
    H, W, C = x_ref.shape[1], x_ref.shape[2], x_ref.shape[3]
    inv_hw = 1.0 / (H * W)     # static -> compile-time constant, no divide

    # ---- conv1: reflection pad + 3x3 conv as one bf16 im2col matmul ----
    _write_im2col(col_ref, x_ref[0])
    h = jnp.dot(col_ref[...], w1_ref[...],
                preferred_element_type=jnp.float32) + b1_ref[...]      # (H*W, C)

    # ---- InstanceNorm2d(affine=True): one-pass per-channel stats over (H, W) ----
    mean = jnp.sum(h, axis=0, keepdims=True) * inv_hw
    var = jnp.sum(h * h, axis=0, keepdims=True) * inv_hw - mean * mean
    scale = g1_ref[...] * jax.lax.rsqrt(var + EPS)
    shift = be1_ref[...] - mean * scale
    h = jnp.maximum(h * scale + shift, 0.0)                            # ReLU

    # ---- conv2 ----
    _write_im2col(col_ref, h.reshape(H, W, C))
    y = jnp.dot(col_ref[...], w2_ref[...],
                preferred_element_type=jnp.float32) + b2_ref[...]      # (H*W, C)

    y_ref[0] = y.reshape(H, W, C)
    # Per-sample partial sums for BatchNorm (combined across N in the wrapper).
    ssum_ref[0] = jnp.sum(y, axis=0, keepdims=True)
    ssq_ref[0] = jnp.sum(y * y, axis=0, keepdims=True)


# ----------------------------------------------------------------------------
# Kernel B: elementwise BatchNorm normalize (precomputed scale/shift) + residual
# ----------------------------------------------------------------------------
def _bn_residual_kernel(y_ref, x_ref, scale_ref, shift_ref, o_ref):
    o_ref[...] = y_ref[...] * scale_ref[...] + shift_ref[...] + x_ref[...]


# ----------------------------------------------------------------------------
# Wrapper
# ----------------------------------------------------------------------------
@jax.jit
def residual_block_forward(x_nchw, w1, b1, g1, be1, w2, b2, g2, be2):
    """x_nchw: (N, 128, H, W) float32.  w1/w2 in HWIO (3, 3, 128, 128)."""
    N, C, H, W = x_nchw.shape
    # TODO(synk): in a full network keep activations NHWC end-to-end; the two
    # boundary transposes exist only to preserve the PyTorch NCHW interface.
    x = jnp.transpose(x_nchw, (0, 2, 3, 1)).astype(jnp.float32)        # NHWC

    # HWIO -> (9*Cin, Cout) matching the (kh, kw, cin) im2col slab order;
    # bf16 operands for the MXU (f32 accumulation keeps accuracy).
    w1m = w1.reshape(9 * C, C).astype(jnp.bfloat16)
    w2m = w2.reshape(9 * C, C).astype(jnp.bfloat16)
    b1r, g1r, be1r = b1.reshape(1, C), g1.reshape(1, C), be1.reshape(1, C)
    b2r = b2.reshape(1, C)

    sample = pl.BlockSpec((1, H, W, C), lambda n: (n, 0, 0, 0))
    vec = pl.BlockSpec((1, C), lambda n: (0, 0))
    wmat = pl.BlockSpec((9 * C, C), lambda n: (0, 0))
    stat = pl.BlockSpec((1, 1, C), lambda n: (n, 0, 0))

    y, ssum, ssq = pl.pallas_call(
        _conv_in_relu_conv_kernel,
        out_shape=(
            jax.ShapeDtypeStruct((N, H, W, C), jnp.float32),
            jax.ShapeDtypeStruct((N, 1, C), jnp.float32),
            jax.ShapeDtypeStruct((N, 1, C), jnp.float32),
        ),
        grid=(N,),
        in_specs=[sample, wmat, vec, vec, vec, wmat, vec],
        out_specs=(sample, stat, stat),
        scratch_shapes=[pltpu.VMEM((H * W, 9 * C), jnp.bfloat16)],
        compiler_params=pltpu.CompilerParams(
            dimension_semantics=("parallel",)),
    )(x, w1m, b1r, g1r, be1r, w2m, b2r)

    # BatchNorm2d training-mode batch statistics over (N, H, W): combine the
    # tiny (N, 1, C) per-sample partial sums outside the kernels so kernel B
    # has no cross-sample dependency and can be gridded per sample.
    cnt = float(N * H * W)
    bmean = jnp.sum(ssum, axis=0) / cnt                                # (1, C)
    bvar = jnp.sum(ssq, axis=0) / cnt - bmean * bmean
    scale2 = g2.reshape(1, C) * jax.lax.rsqrt(bvar + EPS)
    shift2 = be2.reshape(1, C) - bmean * scale2

    out = pl.pallas_call(
        _bn_residual_kernel,
        out_shape=jax.ShapeDtypeStruct((N, H, W, C), jnp.float32),
        grid=(N,),
        in_specs=[sample, sample, vec, vec],
        out_specs=sample,
        compiler_params=pltpu.CompilerParams(
            dimension_semantics=("parallel",)),
    )(y, x, scale2, shift2)

    return jnp.transpose(out, (0, 3, 1, 2))                           # NCHW


# ----------------------------------------------------------------------------
# Pure-JAX reference (for correctness check only)
# ----------------------------------------------------------------------------
def _reference(x_nchw, w1, b1, g1, be1, w2, b2, g2, be2):
    x = jnp.transpose(x_nchw, (0, 2, 3, 1)).astype(jnp.float32)       # NHWC

    def padded_conv(inp, w, b):
        xp = jnp.pad(inp, ((0, 0), (1, 1), (1, 1), (0, 0)), mode="reflect")
        y = jax.lax.conv_general_dilated(
            xp, w, window_strides=(1, 1), padding="VALID",
            dimension_numbers=("NHWC", "HWIO", "NHWC"),
            precision=jax.lax.Precision.HIGHEST)
        return y + b

    h = padded_conv(x, w1, b1)
    m = jnp.mean(h, axis=(1, 2), keepdims=True)
    v = jnp.var(h, axis=(1, 2), keepdims=True)
    h = (h - m) * jax.lax.rsqrt(v + EPS) * g1 + be1
    h = jnp.maximum(h, 0.0)
    h = padded_conv(h, w2, b2)
    m = jnp.mean(h, axis=(0, 1, 2), keepdims=True)
    v = jnp.var(h, axis=(0, 1, 2), keepdims=True)
    h = (h - m) * jax.lax.rsqrt(v + EPS) * g2 + be2 + x
    return jnp.transpose(h, (0, 3, 1, 2))


# ----------------------------------------------------------------------------
if __name__ == "__main__":
    N, C, H, W = 2, 128, 8, 8   # C is fixed to 128 by the module definition

    key = jax.random.PRNGKey(0)
    ks = jax.random.split(key, 9)

    # Deterministic synthetic parameters (shapes from the module's __init__).
    # PyTorch conv weight layout (Cout, Cin, kh, kw) -> transposed to HWIO.
    w1 = jnp.transpose(jax.random.normal(ks[0], (C, C, 3, 3), jnp.float32) * 0.05,
                       (2, 3, 1, 0))
    b1 = jax.random.normal(ks[1], (C,), jnp.float32) * 0.05
    g1 = 1.0 + 0.1 * jax.random.normal(ks[2], (C,), jnp.float32)   # in1.weight
    be1 = 0.1 * jax.random.normal(ks[3], (C,), jnp.float32)        # in1.bias
    w2 = jnp.transpose(jax.random.normal(ks[4], (C, C, 3, 3), jnp.float32) * 0.05,
                       (2, 3, 1, 0))
    b2 = jax.random.normal(ks[5], (C,), jnp.float32) * 0.05
    g2 = 1.0 + 0.1 * jax.random.normal(ks[6], (C,), jnp.float32)   # in2.weight
    be2 = 0.1 * jax.random.normal(ks[7], (C,), jnp.float32)        # in2.bias

    x = jax.random.normal(ks[8], (N, C, H, W), jnp.float32)        # NCHW like PyTorch

    out = residual_block_forward(x, w1, b1, g1, be1, w2, b2, g2, be2)
    out = jax.block_until_ready(out)

    ref = _reference(x, w1, b1, g1, be1, w2, b2, g2, be2)
    assert out.shape == (N, C, H, W)
    assert bool(jnp.allclose(out, ref, atol=5e-2, rtol=5e-2)), (
        "Pallas output diverges from JAX reference: max |diff| = "
        f"{float(jnp.max(jnp.abs(out - ref)))}")

    # TODO(synk): BatchNorm2d running-stat buffer updates (training side effect)
    # are not materialized; they do not affect the forward output.
    print("KERNEL_OK")
</pallas_src>

<mosaic_0001>
module attributes {stable_mosaic.version = 11 : i64} {
  func.func @_conv_in_relu_conv_kernel(%arg0: i32, %arg1: memref<1x8x8x128xf32, #tpu.memory_space<vmem>>, %arg2: memref<1152x128xbf16, #tpu.memory_space<vmem>>, %arg3: memref<1x128xf32, #tpu.memory_space<vmem>>, %arg4: memref<1x128xf32, #tpu.memory_space<vmem>>, %arg5: memref<1x128xf32, #tpu.memory_space<vmem>>, %arg6: memref<1152x128xbf16, #tpu.memory_space<vmem>>, %arg7: memref<1x128xf32, #tpu.memory_space<vmem>>, %arg8: memref<1x8x8x128xf32, #tpu.memory_space<vmem>>, %arg9: memref<1x1x128xf32, #tpu.memory_space<vmem>>, %arg10: memref<1x1x128xf32, #tpu.memory_space<vmem>>, %arg11: memref<64x1152xbf16, #tpu.memory_space<vmem>>) attributes {dimension_semantics = [#tpu.dimension_semantics<parallel>], iteration_bounds = array<i64: 2>, scalar_prefetch = 0 : i64, scratch_operands = 1 : i64, tpu.core_type = #tpu.core_type<tc>, window_params = [{transform_indices = @transform_0, window_bounds = array<i64: 1, 8, 8, 128>}, {pipeline_mode = #tpu.pipeline_mode<synchronous>, transform_indices = @transform_1, window_bounds = array<i64: 1152, 128>}, {pipeline_mode = #tpu.pipeline_mode<synchronous>, transform_indices = @transform_2, window_bounds = array<i64: 1, 128>}, {pipeline_mode = #tpu.pipeline_mode<synchronous>, transform_indices = @transform_3, window_bounds = array<i64: 1, 128>}, {pipeline_mode = #tpu.pipeline_mode<synchronous>, transform_indices = @transform_4, window_bounds = array<i64: 1, 128>}, {pipeline_mode = #tpu.pipeline_mode<synchronous>, transform_indices = @transform_5, window_bounds = array<i64: 1152, 128>}, {pipeline_mode = #tpu.pipeline_mode<synchronous>, transform_indices = @transform_6, window_bounds = array<i64: 1, 128>}, {transform_indices = @transform_7, window_bounds = array<i64: 1, 8, 8, 128>}, {transform_indices = @transform_8, window_bounds = array<i64: 1, 1, 128>}, {transform_indices = @transform_9, window_bounds = array<i64: 1, 1, 128>}]} {
    %c0 = arith.constant 0 : index
    %c0_0 = arith.constant 0 : index
    %c0_1 = arith.constant 0 : index
    %c0_2 = arith.constant 0 : index
    %0 = vector.load %arg1[%c0, %c0_0, %c0_1, %c0_2] : memref<1x8x8x128xf32, #tpu.memory_space<vmem>>, vector<1x8x8x128xf32>
    %1 = vector.shape_cast %0 : vector<1x8x8x128xf32> to vector<8x8x128xf32>
    %2 = vector.extract_strided_slice %1 {offsets = [0, 1, 0], sizes = [8, 1, 128], strides = [1, 1, 1]} : vector<8x8x128xf32> to vector<8x1x128xf32>
    %3 = vector.extract_strided_slice %1 {offsets = [0, 0, 0], sizes = [8, 7, 128], strides = [1, 1, 1]} : vector<8x8x128xf32> to vector<8x7x128xf32>
    %4 = tpu.concatenate %2, %3 in 1 : vector<8x1x128xf32>, vector<8x7x128xf32> -> vector<8x8x128xf32>
    %5 = vector.extract_strided_slice %1 {offsets = [0, 1, 0], sizes = [8, 7, 128], strides = [1, 1, 1]} : vector<8x8x128xf32> to vector<8x7x128xf32>
    %6 = vector.extract_strided_slice %1 {offsets = [0, 6, 0], sizes = [8, 1, 128], strides = [1, 1, 1]} : vector<8x8x128xf32> to vector<8x1x128xf32>
    %7 = tpu.concatenate %5, %6 in 1 : vector<8x7x128xf32>, vector<8x1x128xf32> -> vector<8x8x128xf32>
    %8 = vector.extract_strided_slice %4 {offsets = [1, 0, 0], sizes = [1, 8, 128], strides = [1, 1, 1]} : vector<8x8x128xf32> to vector<1x8x128xf32>
    %9 = vector.extract_strided_slice %4 {offsets = [0, 0, 0], sizes = [7, 8, 128], strides = [1, 1, 1]} : vector<8x8x128xf32> to vector<7x8x128xf32>
    %10 = tpu.concatenate %8, %9 in 0 : vector<1x8x128xf32>, vector<7x8x128xf32> -> vector<8x8x128xf32>
    %11 = vector.shape_cast %10 : vector<8x8x128xf32> to vector<64x128xf32>
    %12 = arith.truncf %11 : vector<64x128xf32> to vector<64x128xbf16>
    %c0_3 = arith.constant 0 : index
    %c0_4 = arith.constant 0 : index
    %13 = vector.load %arg11[%c0_3, %c0_4] : memref<64x1152xbf16, #tpu.memory_space<vmem>>, vector<64x128xbf16>
    tpu.vector_store %arg11[%c0_3, %c0_4], %12 {strides = array<i32>} : memref<64x1152xbf16, #tpu.memory_space<vmem>>, vector<64x128xbf16>,
    %14 = vector.extract_strided_slice %1 {offsets = [1, 0, 0], sizes = [1, 8, 128], strides = [1, 1, 1]} : vector<8x8x128xf32> to vector<1x8x128xf32>
    %15 = vector.extract_strided_slice %1 {offsets = [0, 0, 0], sizes = [7, 8, 128], strides = [1, 1, 1]} : vector<8x8x128xf32> to vector<7x8x128xf32>
    %16 = tpu.concatenate %14, %15 in 0 : vector<1x8x128xf32>, vector<7x8x128xf32> -> vector<8x8x128xf32>
    %17 = vector.shape_cast %16 : vector<8x8x128xf32> to vector<64x128xf32>
    %18 = arith.truncf %17 : vector<64x128xf32> to vector<64x128xbf16>
    %c0_5 = arith.constant 0 : index
    %c128 = arith.constant 128 : index
    %19 = vector.load %arg11[%c0_5, %c128] : memref<64x1152xbf16, #tpu.memory_space<vmem>>, vector<64x128xbf16>
    tpu.vector_store %arg11[%c0_5, %c128], %18 {strides = array<i32>} : memref<64x1152xbf16, #tpu.memory_space<vmem>>, vector<64x128xbf16>,
    %20 = vector.extract_strided_slice %7 {offsets = [1, 0, 0], sizes = [1, 8, 128], strides = [1, 1, 1]} : vector<8x8x128xf32> to vector<1x8x128xf32>
    %21 = vector.extract_strided_slice %7 {offsets = [0, 0, 0], sizes = [7, 8, 128], strides = [1, 1, 1]} : vector<8x8x128xf32> to vector<7x8x128xf32>
    %22 = tpu.concatenate %20, %21 in 0 : vector<1x8x128xf32>, vector<7x8x128xf32> -> vector<8x8x128xf32>
    %23 = vector.shape_cast %22 : vector<8x8x128xf32> to vector<64x128xf32>
    %24 = arith.truncf %23 : vector<64x128xf32> to vector<64x128xbf16>
    %c0_6 = arith.constant 0 : index
    %c256 = arith.constant 256 : index
    %25 = vector.load %arg11[%c0_6, %c256] : memref<64x1152xbf16, #tpu.memory_space<vmem>>, vector<64x128xbf16>
    tpu.vector_store %arg11[%c0_6, %c256], %24 {strides = array<i32>} : memref<64x1152xbf16, #tpu.memory_space<vmem>>, vector<64x128xbf16>,
    %26 = vector.shape_cast %4 : vector<8x8x128xf32> to vector<64x128xf32>
    %27 = arith.truncf %26 : vector<64x128xf32> to vector<64x128xbf16>
    %c0_7 = arith.constant 0 : index
    %c384 = arith.constant 384 : index
    %28 = vector.load %arg11[%c0_7, %c384] : memref<64x1152xbf16, #tpu.memory_space<vmem>>, vector<64x128xbf16>
    tpu.vector_store %arg11[%c0_7, %c384], %27 {strides = array<i32>} : memref<64x1152xbf16, #tpu.memory_space<vmem>>, vector<64x128xbf16>,
    %29 = vector.shape_cast %1 : vector<8x8x128xf32> to vector<64x128xf32>
    %30 = arith.truncf %29 : vector<64x128xf32> to vector<64x128xbf16>
    %c0_8 = arith.constant 0 : index
    %c512 = arith.constant 512 : index
    %31 = vector.load %arg11[%c0_8, %c512] : memref<64x1152xbf16, #tpu.memory_space<vmem>>, vector<64x128xbf16>
    tpu.vector_store %arg11[%c0_8, %c512], %30 {strides = array<i32>} : memref<64x1152xbf16, #tpu.memory_space<vmem>>, vector<64x128xbf16>,
    %32 = vector.shape_cast %7 : vector<8x8x128xf32> to vector<64x128xf32>
    %33 = arith.truncf %32 : vector<64x128xf32> to vector<64x128xbf16>
    %c0_9 = arith.constant 0 : index
    %c640 = arith.constant 640 : index
    %34 = vector.load %arg11[%c0_9, %c640] : memref<64x1152xbf16, #tpu.memory_space<vmem>>, vector<64x128xbf16>
    tpu.vector_store %arg11[%c0_9, %c640], %33 {strides = array<i32>} : memref<64x1152xbf16, #tpu.memory_space<vmem>>, vector<64x128xbf16>,
    %35 = vector.extract_strided_slice %4 {offsets = [1, 0, 0], sizes = [7, 8, 128], strides = [1, 1, 1]} : vector<8x8x128xf32> to vector<7x8x128xf32>
    %36 = vector.extract_strided_slice %4 {offsets = [6, 0, 0], sizes = [1, 8, 128], strides = [1, 1, 1]} : vector<8x8x128xf32> to vector<1x8x128xf32>
    %37 = tpu.concatenate %35, %36 in 0 : vector<7x8x128xf32>, vector<1x8x128xf32> -> vector<8x8x128xf32>
    %38 = vector.shape_cast %37 : vector<8x8x128xf32> to vector<64x128xf32>
    %39 = arith.truncf %38 : vector<64x128xf32> to vector<64x128xbf16>
    %c0_10 = arith.constant 0 : index
    %c768 = arith.constant 768 : index
    %40 = vector.load %arg11[%c0_10, %c768] : memref<64x1152xbf16, #tpu.memory_space<vmem>>, vector<64x128xbf16>
    tpu.vector_store %arg11[%c0_10, %c768], %39 {strides = array<i32>} : memref<64x1152xbf16, #tpu.memory_space<vmem>>, vector<64x128xbf16>,
    %41 = vector.extract_strided_slice %1 {offsets = [1, 0, 0], sizes = [7, 8, 128], strides = [1, 1, 1]} : vector<8x8x128xf32> to vector<7x8x128xf32>
    %42 = vector.extract_strided_slice %1 {offsets = [6, 0, 0], sizes = [1, 8, 128], strides = [1, 1, 1]} : vector<8x8x128xf32> to vector<1x8x128xf32>
    %43 = tpu.concatenate %41, %42 in 0 : vector<7x8x128xf32>, vector<1x8x128xf32> -> vector<8x8x128xf32>
    %44 = vector.shape_cast %43 : vector<8x8x128xf32> to vector<64x128xf32>
    %45 = arith.truncf %44 : vector<64x128xf32> to vector<64x128xbf16>
    %c0_11 = arith.constant 0 : index
    %c896 = arith.constant 896 : index
    %46 = vector.load %arg11[%c0_11, %c896] : memref<64x1152xbf16, #tpu.memory_space<vmem>>, vector<64x128xbf16>
    tpu.vector_store %arg11[%c0_11, %c896], %45 {strides = array<i32>} : memref<64x1152xbf16, #tpu.memory_space<vmem>>, vector<64x128xbf16>,
    %47 = vector.extract_strided_slice %7 {offsets = [1, 0, 0], sizes = [7, 8, 128], strides = [1, 1, 1]} : vector<8x8x128xf32> to vector<7x8x128xf32>
    %48 = vector.extract_strided_slice %7 {offsets = [6, 0, 0], sizes = [1, 8, 128], strides = [1, 1, 1]} : vector<8x8x128xf32> to vector<1x8x128xf32>
    %49 = tpu.concatenate %47, %48 in 0 : vector<7x8x128xf32>, vector<1x8x128xf32> -> vector<8x8x128xf32>
    %50 = vector.shape_cast %49 : vector<8x8x128xf32> to vector<64x128xf32>
    %51 = arith.truncf %50 : vector<64x128xf32> to vector<64x128xbf16>
    %c0_12 = arith.constant 0 : index
    %c1024 = arith.constant 1024 : index
    %52 = vector.load %arg11[%c0_12, %c1024] : memref<64x1152xbf16, #tpu.memory_space<vmem>>, vector<64x128xbf16>
    tpu.vector_store %arg11[%c0_12, %c1024], %51 {strides = array<i32>} : memref<64x1152xbf16, #tpu.memory_space<vmem>>, vector<64x128xbf16>,
    %c0_13 = arith.constant 0 : index
    %c0_14 = arith.constant 0 : index
    %53 = vector.load %arg11[%c0_13, %c0_14] : memref<64x1152xbf16, #tpu.memory_space<vmem>>, vector<64x1152xbf16>
    %c0_15 = arith.constant 0 : index
    %c0_16 = arith.constant 0 : index
    %54 = vector.load %arg2[%c0_15, %c0_16] : memref<1152x128xbf16, #tpu.memory_space<vmem>>, vector<1152x128xbf16>
    %cst = arith.constant dense<0.000000e+00> : vector<64x128xf32>
    %55 = tpu.matmul %53, %54, %cst {dimension_numbers = #tpu.dot_dimension_numbers<[1], [0], [0], [1], [0, 0, 1, 1], [], []>} : vector<64x1152xbf16>, vector<1152x128xbf16>, vector<64x128xf32> -> vector<64x128xf32>
    %c0_17 = arith.constant 0 : index
    %c0_18 = arith.constant 0 : index
    %56 = vector.load %arg3[%c0_17, %c0_18] : memref<1x128xf32, #tpu.memory_space<vmem>>, vector<1x128xf32>
    %57 = vector.broadcast %56 : vector<1x128xf32> to vector<64x128xf32>
    %58 = arith.addf %55, %57 : vector<64x128xf32>
    %cst_19 = arith.constant dense<0.000000e+00> : vector<128xf32>
    %59 = vector.multi_reduction <add>, %58, %cst_19 [0] : vector<64x128xf32> to vector<128xf32>
    %60 = vector.shape_cast %59 : vector<128xf32> to vector<1x128xf32>
    %cst_20 = arith.constant 1.562500e-02 : f32
    %61 = vector.broadcast %cst_20 : f32 to vector<1x128xf32>
    %62 = arith.mulf %60, %61 : vector<1x128xf32>
    %63 = arith.mulf %58, %58 : vector<64x128xf32>
    %cst_21 = arith.constant dense<0.000000e+00> : vector<128xf32>
    %64 = vector.multi_reduction <add>, %63, %cst_21 [0] : vector<64x128xf32> to vector<128xf32>
    %65 = vector.shape_cast %64 : vector<128xf32> to vector<1x128xf32>
    %cst_22 = arith.constant 1.562500e-02 : f32
    %66 = vector.broadcast %cst_22 : f32 to vector<1x128xf32>
    %67 = arith.mulf %65, %66 : vector<1x128xf32>
    %68 = arith.mulf %62, %62 : vector<1x128xf32>
    %69 = arith.subf %67, %68 : vector<1x128xf32>
    %c0_23 = arith.constant 0 : index
    %c0_24 = arith.constant 0 : index
    %70 = vector.load %arg4[%c0_23, %c0_24] : memref<1x128xf32, #tpu.memory_space<vmem>>, vector<1x128xf32>
    %cst_25 = arith.constant 9.99999974E-6 : f32
    %71 = vector.broadcast %cst_25 : f32 to vector<1x128xf32>
    %72 = arith.addf %69, %71 : vector<1x128xf32>
    %73 = math.rsqrt %72 : vector<1x128xf32>
    %74 = arith.mulf %70, %73 : vector<1x128xf32>
    %c0_26 = arith.constant 0 : index
    %c0_27 = arith.constant 0 : index
    %75 = vector.load %arg5[%c0_26, %c0_27] : memref<1x128xf32, #tpu.memory_space<vmem>>, vector<1x128xf32>
    %76 = arith.mulf %62, %74 : vector<1x128xf32>
    %77 = arith.subf %75, %76 : vector<1x128xf32>
    %78 = vector.broadcast %74 : vector<1x128xf32> to vector<64x128xf32>
    %79 = arith.mulf %58, %78 : vector<64x128xf32>
    %80 = vector.broadcast %77 : vector<1x128xf32> to vector<64x128xf32>
    %81 = arith.addf %79, %80 : vector<64x128xf32>
    %cst_28 = arith.constant 0.000000e+00 : f32
    %82 = vector.broadcast %cst_28 : f32 to vector<64x128xf32>
    %83 = arith.maximumf %81, %82 : vector<64x128xf32>
    %84 = vector.shape_cast %83 : vector<64x128xf32> to vector<8x8x128xf32>
    %85 = vector.extract_strided_slice %84 {offsets = [0, 1, 0], sizes = [8, 1, 128], strides = [1, 1, 1]} : vector<8x8x128xf32> to vector<8x1x128xf32>
    %86 = vector.extract_strided_slice %84 {offsets = [0, 0, 0], sizes = [8, 7, 128], strides = [1, 1, 1]} : vector<8x8x128xf32> to vector<8x7x128xf32>
    %87 = tpu.concatenate %85, %86 in 1 : vector<8x1x128xf32>, vector<8x7x128xf32> -> vector<8x8x128xf32>
    %88 = vector.extract_strided_slice %84 {offsets = [0, 1, 0], sizes = [8, 7, 128], strides = [1, 1, 1]} : vector<8x8x128xf32> to vector<8x7x128xf32>
    %89 = vector.extract_strided_slice %84 {offsets = [0, 6, 0], sizes = [8, 1, 128], strides = [1, 1, 1]} : vector<8x8x128xf32> to vector<8x1x128xf32>
    %90 = tpu.concatenate %88, %89 in 1 : vector<8x7x128xf32>, vector<8x1x128xf32> -> vector<8x8x128xf32>
    %91 = vector.extract_strided_slice %87 {offsets = [1, 0, 0], sizes = [1, 8, 128], strides = [1, 1, 1]} : vector<8x8x128xf32> to vector<1x8x128xf32>
    %92 = vector.extract_strided_slice %87 {offsets = [0, 0, 0], sizes = [7, 8, 128], strides = [1, 1, 1]} : vector<8x8x128xf32> to vector<7x8x128xf32>
    %93 = tpu.concatenate %91, %92 in 0 : vector<1x8x128xf32>, vector<7x8x128xf32> -> vector<8x8x128xf32>
    %94 = vector.shape_cast %93 : vector<8x8x128xf32> to vector<64x128xf32>
    %95 = arith.truncf %94 : vector<64x128xf32> to vector<64x128xbf16>
    %c0_29 = arith.constant 0 : index
    %c0_30 = arith.constant 0 : index
    %96 = vector.load %arg11[%c0_29, %c0_30] : memref<64x1152xbf16, #tpu.memory_space<vmem>>, vector<64x128xbf16>
    tpu.vector_store %arg11[%c0_29, %c0_30], %95 {strides = array<i32>} : memref<64x1152xbf16, #tpu.memory_space<vmem>>, vector<64x128xbf16>,
    %97 = vector.extract_strided_slice %84 {offsets = [1, 0, 0], sizes = [1, 8, 128], strides = [1, 1, 1]} : vector<8x8x128xf32> to vector<1x8x128xf32>
    %98 = vector.extract_strided_slice %84 {offsets = [0, 0, 0], sizes = [7, 8, 128], strides = [1, 1, 1]} : vector<8x8x128xf32> to vector<7x8x128xf32>
    %99 = tpu.concatenate %97, %98 in 0 : vector<1x8x128xf32>, vector<7x8x128xf32> -> vector<8x8x128xf32>
    %100 = vector.shape_cast %99 : vector<8x8x128xf32> to vector<64x128xf32>
    %101 = arith.truncf %100 : vector<64x128xf32> to vector<64x128xbf16>
    %c0_31 = arith.constant 0 : index
    %c128_32 = arith.constant 128 : index
    %102 = vector.load %arg11[%c0_31, %c128_32] : memref<64x1152xbf16, #tpu.memory_space<vmem>>, vector<64x128xbf16>
    tpu.vector_store %arg11[%c0_31, %c128_32], %101 {strides = array<i32>} : memref<64x1152xbf16, #tpu.memory_space<vmem>>, vector<64x128xbf16>,
    %103 = vector.extract_strided_slice %90 {offsets = [1, 0, 0], sizes = [1, 8, 128], strides = [1, 1, 1]} : vector<8x8x128xf32> to vector<1x8x128xf32>
    %104 = vector.extract_strided_slice %90 {offsets = [0, 0, 0], sizes = [7, 8, 128], strides = [1, 1, 1]} : vector<8x8x128xf32> to vector<7x8x128xf32>
    %105 = tpu.concatenate %103, %104 in 0 : vector<1x8x128xf32>, vector<7x8x128xf32> -> vector<8x8x128xf32>
    %106 = vector.shape_cast %105 : vector<8x8x128xf32> to vector<64x128xf32>
    %107 = arith.truncf %106 : vector<64x128xf32> to vector<64x128xbf16>
    %c0_33 = arith.constant 0 : index
    %c256_34 = arith.constant 256 : index
    %108 = vector.load %arg11[%c0_33, %c256_34] : memref<64x1152xbf16, #tpu.memory_space<vmem>>, vector<64x128xbf16>
    tpu.vector_store %arg11[%c0_33, %c256_34], %107 {strides = array<i32>} : memref<64x1152xbf16, #tpu.memory_space<vmem>>, vector<64x128xbf16>,
    %109 = vector.shape_cast %87 : vector<8x8x128xf32> to vector<64x128xf32>
    %110 = arith.truncf %109 : vector<64x128xf32> to vector<64x128xbf16>
    %c0_35 = arith.constant 0 : index
    %c384_36 = arith.constant 384 : index
    %111 = vector.load %arg11[%c0_35, %c384_36] : memref<64x1152xbf16, #tpu.memory_space<vmem>>, vector<64x128xbf16>
    tpu.vector_store %arg11[%c0_35, %c384_36], %110 {strides = array<i32>} : memref<64x1152xbf16, #tpu.memory_space<vmem>>, vector<64x128xbf16>,
    %112 = vector.shape_cast %84 : vector<8x8x128xf32> to vector<64x128xf32>
    %113 = arith.truncf %112 : vector<64x128xf32> to vector<64x128xbf16>
    %c0_37 = arith.constant 0 : index
    %c512_38 = arith.constant 512 : index
    %114 = vector.load %arg11[%c0_37, %c512_38] : memref<64x1152xbf16, #tpu.memory_space<vmem>>, vector<64x128xbf16>
    tpu.vector_store %arg11[%c0_37, %c512_38], %113 {strides = array<i32>} : memref<64x1152xbf16, #tpu.memory_space<vmem>>, vector<64x128xbf16>,
    %115 = vector.shape_cast %90 : vector<8x8x128xf32> to vector<64x128xf32>
    %116 = arith.truncf %115 : vector<64x128xf32> to vector<64x128xbf16>
    %c0_39 = arith.constant 0 : index
    %c640_40 = arith.constant 640 : index
    %117 = vector.load %arg11[%c0_39, %c640_40] : memref<64x1152xbf16, #tpu.memory_space<vmem>>, vector<64x128xbf16>
    tpu.vector_store %arg11[%c0_39, %c640_40], %116 {strides = array<i32>} : memref<64x1152xbf16, #tpu.memory_space<vmem>>, vector<64x128xbf16>,
    %118 = vector.extract_strided_slice %87 {offsets = [1, 0, 0], sizes = [7, 8, 128], strides = [1, 1, 1]} : vector<8x8x128xf32> to vector<7x8x128xf32>
    %119 = vector.extract_strided_slice %87 {offsets = [6, 0, 0], sizes = [1, 8, 128], strides = [1, 1, 1]} : vector<8x8x128xf32> to vector<1x8x128xf32>
    %120 = tpu.concatenate %118, %119 in 0 : vector<7x8x128xf32>, vector<1x8x128xf32> -> vector<8x8x128xf32>
    %121 = vector.shape_cast %120 : vector<8x8x128xf32> to vector<64x128xf32>
    %122 = arith.truncf %121 : vector<64x128xf32> to vector<64x128xbf16>
    %c0_41 = arith.constant 0 : index
    %c768_42 = arith.constant 768 : index
    %123 = vector.load %arg11[%c0_41, %c768_42] : memref<64x1152xbf16, #tpu.memory_space<vmem>>, vector<64x128xbf16>
    tpu.vector_store %arg11[%c0_41, %c768_42], %122 {strides = array<i32>} : memref<64x1152xbf16, #tpu.memory_space<vmem>>, vector<64x128xbf16>,
    %124 = vector.extract_strided_slice %84 {offsets = [1, 0, 0], sizes = [7, 8, 128], strides = [1, 1, 1]} : vector<8x8x128xf32> to vector<7x8x128xf32>
    %125 = vector.extract_strided_slice %84 {offsets = [6, 0, 0], sizes = [1, 8, 128], strides = [1, 1, 1]} : vector<8x8x128xf32> to vector<1x8x128xf32>
    %126 = tpu.concatenate %124, %125 in 0 : vector<7x8x128xf32>, vector<1x8x128xf32> -> vector<8x8x128xf32>
    %127 = vector.shape_cast %126 : vector<8x8x128xf32> to vector<64x128xf32>
    %128 = arith.truncf %127 : vector<64x128xf32> to vector<64x128xbf16>
    %c0_43 = arith.constant 0 : index
    %c896_44 = arith.constant 896 : index
    %129 = vector.load %arg11[%c0_43, %c896_44] : memref<64x1152xbf16, #tpu.memory_space<vmem>>, vector<64x128xbf16>
    tpu.vector_store %arg11[%c0_43, %c896_44], %128 {strides = array<i32>} : memref<64x1152xbf16, #tpu.memory_space<vmem>>, vector<64x128xbf16>,
    %130 = vector.extract_strided_slice %90 {offsets = [1, 0, 0], sizes = [7, 8, 128], strides = [1, 1, 1]} : vector<8x8x128xf32> to vector<7x8x128xf32>
    %131 = vector.extract_strided_slice %90 {offsets = [6, 0, 0], sizes = [1, 8, 128], strides = [1, 1, 1]} : vector<8x8x128xf32> to vector<1x8x128xf32>
    %132 = tpu.concatenate %130, %131 in 0 : vector<7x8x128xf32>, vector<1x8x128xf32> -> vector<8x8x128xf32>
    %133 = vector.shape_cast %132 : vector<8x8x128xf32> to vector<64x128xf32>
    %134 = arith.truncf %133 : vector<64x128xf32> to vector<64x128xbf16>
    %c0_45 = arith.constant 0 : index
    %c1024_46 = arith.constant 1024 : index
    %135 = vector.load %arg11[%c0_45, %c1024_46] : memref<64x1152xbf16, #tpu.memory_space<vmem>>, vector<64x128xbf16>
    tpu.vector_store %arg11[%c0_45, %c1024_46], %134 {strides = array<i32>} : memref<64x1152xbf16, #tpu.memory_space<vmem>>, vector<64x128xbf16>,
    %c0_47 = arith.constant 0 : index
    %c0_48 = arith.constant 0 : index
    %136 = vector.load %arg11[%c0_47, %c0_48] : memref<64x1152xbf16, #tpu.memory_space<vmem>>, vector<64x1152xbf16>
    %c0_49 = arith.constant 0 : index
    %c0_50 = arith.constant 0 : index
    %137 = vector.load %arg6[%c0_49, %c0_50] : memref<1152x128xbf16, #tpu.memory_space<vmem>>, vector<1152x128xbf16>
    %cst_51 = arith.constant dense<0.000000e+00> : vector<64x128xf32>
    %138 = tpu.matmul %136, %137, %cst_51 {dimension_numbers = #tpu.dot_dimension_numbers<[1], [0], [0], [1], [0, 0, 1, 1], [], []>} : vector<64x1152xbf16>, vector<1152x128xbf16>, vector<64x128xf32> -> vector<64x128xf32>
    %c0_52 = arith.constant 0 : index
    %c0_53 = arith.constant 0 : index
    %139 = vector.load %arg7[%c0_52, %c0_53] : memref<1x128xf32, #tpu.memory_space<vmem>>, vector<1x128xf32>
    %140 = vector.broadcast %139 : vector<1x128xf32> to vector<64x128xf32>
    %141 = arith.addf %138, %140 : vector<64x128xf32>
    %142 = vector.shape_cast %141 : vector<64x128xf32> to vector<8x8x128xf32>
    %c0_54 = arith.constant 0 : index
    %c0_55 = arith.constant 0 : index
    %c0_56 = arith.constant 0 : index
    %c0_57 = arith.constant 0 : index
    %143 = vector.load %arg8[%c0_54, %c0_55, %c0_56, %c0_57] : memref<1x8x8x128xf32, #tpu.memory_space<vmem>>, vector<1x8x8x128xf32>
    %144 = vector.shape_cast %143 : vector<1x8x8x128xf32> to vector<8x8x128xf32>
    %145 = vector.shape_cast %142 : vector<8x8x128xf32> to vector<1x8x8x128xf32>
    tpu.vector_store %arg8[%c0_54, %c0_55, %c0_56, %c0_57], %145 {strides = array<i32>} : memref<1x8x8x128xf32, #tpu.memory_space<vmem>>, vector<1x8x8x128xf32>,
    %cst_58 = arith.constant dense<0.000000e+00> : vector<128xf32>
    %146 = vector.multi_reduction <add>, %141, %cst_58 [0] : vector<64x128xf32> to vector<128xf32>
    %147 = vector.shape_cast %146 : vector<128xf32> to vector<1x128xf32>
    %c0_59 = arith.constant 0 : index
    %c0_60 = arith.constant 0 : index
    %c0_61 = arith.constant 0 : index
    %148 = vector.load %arg9[%c0_59, %c0_60, %c0_61] : memref<1x1x128xf32, #tpu.memory_space<vmem>>, vector<1x1x128xf32>
    %149 = vector.shape_cast %148 : vector<1x1x128xf32> to vector<1x128xf32>
    %150 = vector.shape_cast %147 : vector<1x128xf32> to vector<1x1x128xf32>
    tpu.vector_store %arg9[%c0_59, %c0_60, %c0_61], %150 {strides = array<i32>} : memref<1x1x128xf32, #tpu.memory_space<vmem>>, vector<1x1x128xf32>,
    %151 = arith.mulf %141, %141 : vector<64x128xf32>
    %cst_62 = arith.constant dense<0.000000e+00> : vector<128xf32>
    %152 = vector.multi_reduction <add>, %151, %cst_62 [0] : vector<64x128xf32> to vector<128xf32>
    %153 = vector.shape_cast %152 : vector<128xf32> to vector<1x128xf32>
    %c0_63 = arith.constant 0 : index
    %c0_64 = arith.constant 0 : index
    %c0_65 = arith.constant 0 : index
    %154 = vector.load %arg10[%c0_63, %c0_64, %c0_65] : memref<1x1x128xf32, #tpu.memory_space<vmem>>, vector<1x1x128xf32>
    %155 = vector.shape_cast %154 : vector<1x1x128xf32> to vector<1x128xf32>
    %156 = vector.shape_cast %153 : vector<1x128xf32> to vector<1x1x128xf32>
    tpu.vector_store %arg10[%c0_63, %c0_64, %c0_65], %156 {strides = array<i32>} : memref<1x1x128xf32, #tpu.memory_space<vmem>>, vector<1x1x128xf32>,
    return
  }
  func.func @transform_0(%arg0: i32) -> (i32, i32, i32, i32) {
    %c0_i32 = arith.constant 0 : i32
    %c0_i32_0 = arith.constant 0 : i32
    %c0_i32_1 = arith.constant 0 : i32
    %c0_i32_2 = arith.constant 0 : i32
    return %arg0, %c0_i32, %c0_i32_0, %c0_i32_1 : i32, i32, i32, i32
  }
  func.func @transform_1(%arg0: i32) -> (i32, i32) {
    %c0_i32 = arith.constant 0 : i32
    %c0_i32_0 = arith.constant 0 : i32
    %c0_i32_1 = arith.constant 0 : i32
    return %c0_i32, %c0_i32_0 : i32, i32
  }
  func.func @transform_2(%arg0: i32) -> (i32, i32) {
    %c0_i32 = arith.constant 0 : i32
    %c0_i32_0 = arith.constant 0 : i32
    %c0_i32_1 = arith.constant 0 : i32
    return %c0_i32, %c0_i32_0 : i32, i32
  }
  func.func @transform_3(%arg0: i32) -> (i32, i32) {
    %c0_i32 = arith.constant 0 : i32
    %c0_i32_0 = arith.constant 0 : i32
    %c0_i32_1 = arith.constant 0 : i32
    return %c0_i32, %c0_i32_0 : i32, i32
  }
  func.func @transform_4(%arg0: i32) -> (i32, i32) {
    %c0_i32 = arith.constant 0 : i32
    %c0_i32_0 = arith.constant 0 : i32
    %c0_i32_1 = arith.constant 0 : i32
    return %c0_i32, %c0_i32_0 : i32, i32
  }
  func.func @transform_5(%arg0: i32) -> (i32, i32) {
    %c0_i32 = arith.constant 0 : i32
    %c0_i32_0 = arith.constant 0 : i32
    %c0_i32_1 = arith.constant 0 : i32
    return %c0_i32, %c0_i32_0 : i32, i32
  }
  func.func @transform_6(%arg0: i32) -> (i32, i32) {
    %c0_i32 = arith.constant 0 : i32
    %c0_i32_0 = arith.constant 0 : i32
    %c0_i32_1 = arith.constant 0 : i32
    return %c0_i32, %c0_i32_0 : i32, i32
  }
  func.func @transform_7(%arg0: i32) -> (i32, i32, i32, i32) {
    %c0_i32 = arith.constant 0 : i32
    %c0_i32_0 = arith.constant 0 : i32
    %c0_i32_1 = arith.constant 0 : i32
    %c0_i32_2 = arith.constant 0 : i32
    return %arg0, %c0_i32, %c0_i32_0, %c0_i32_1 : i32, i32, i32, i32
  }
  func.func @transform_8(%arg0: i32) -> (i32, i32, i32) {
    %c0_i32 = arith.constant 0 : i32
    %c0_i32_0 = arith.constant 0 : i32
    %c0_i32_1 = arith.constant 0 : i32
    return %arg0, %c0_i32, %c0_i32_0 : i32, i32, i32
  }
  func.func @transform_9(%arg0: i32) -> (i32, i32, i32) {
    %c0_i32 = arith.constant 0 : i32
    %c0_i32_0 = arith.constant 0 : i32
    %c0_i32_1 = arith.constant 0 : i32
    return %arg0, %c0_i32, %c0_i32_0 : i32, i32, i32
  }
}

module attributes {stable_mosaic.version = 11 : i64} {
  func.func @_bn_residual_kernel(%arg0: i32, %arg1: memref<1x8x8x128xf32, #tpu.memory_space<vmem>>, %arg2: memref<1x8x8x128xf32, #tpu.memory_space<vmem>>, %arg3: memref<1x128xf32, #tpu.memory_space<vmem>>, %arg4: memref<1x128xf32, #tpu.memory_space<vmem>>, %arg5: memref<1x8x8x128xf32, #tpu.memory_space<vmem>>) attributes {dimension_semantics = [#tpu.dimension_semantics<parallel>], iteration_bounds = array<i64: 2>, scalar_prefetch = 0 : i64, scratch_operands = 0 : i64, tpu.core_type = #tpu.core_type<tc>, window_params = [{transform_indices = @transform_0, window_bounds = array<i64: 1, 8, 8, 128>}, {transform_indices = @transform_1, window_bounds = array<i64: 1, 8, 8, 128>}, {pipeline_mode = #tpu.pipeline_mode<synchronous>, transform_indices = @transform_2, window_bounds = array<i64: 1, 128>}, {pipeline_mode = #tpu.pipeline_mode<synchronous>, transform_indices = @transform_3, window_bounds = array<i64: 1, 128>}, {transform_indices = @transform_4, window_bounds = array<i64: 1, 8, 8, 128>}]} {
    %c0 = arith.constant 0 : index
    %c0_0 = arith.constant 0 : index
    %c0_1 = arith.constant 0 : index
    %c0_2 = arith.constant 0 : index
    %0 = vector.load %arg1[%c0, %c0_0, %c0_1, %c0_2] : memref<1x8x8x128xf32, #tpu.memory_space<vmem>>, vector<1x8x8x128xf32>
    %c0_3 = arith.constant 0 : index
    %c0_4 = arith.constant 0 : index
    %1 = vector.load %arg3[%c0_3, %c0_4] : memref<1x128xf32, #tpu.memory_space<vmem>>, vector<1x128xf32>
    %2 = vector.shape_cast %1 : vector<1x128xf32> to vector<1x1x1x128xf32>
    %3 = vector.broadcast %2 : vector<1x1x1x128xf32> to vector<1x8x8x128xf32>
    %4 = arith.mulf %0, %3 : vector<1x8x8x128xf32>
    %c0_5 = arith.constant 0 : index
    %c0_6 = arith.constant 0 : index
    %5 = vector.load %arg4[%c0_5, %c0_6] : memref<1x128xf32, #tpu.memory_space<vmem>>, vector<1x128xf32>
    %6 = vector.shape_cast %5 : vector<1x128xf32> to vector<1x1x1x128xf32>
    %7 = vector.broadcast %6 : vector<1x1x1x128xf32> to vector<1x8x8x128xf32>
    %8 = arith.addf %4, %7 : vector<1x8x8x128xf32>
    %c0_7 = arith.constant 0 : index
    %c0_8 = arith.constant 0 : index
    %c0_9 = arith.constant 0 : index
    %c0_10 = arith.constant 0 : index
    %9 = vector.load %arg2[%c0_7, %c0_8, %c0_9, %c0_10] : memref<1x8x8x128xf32, #tpu.memory_space<vmem>>, vector<1x8x8x128xf32>
    %10 = arith.addf %8, %9 : vector<1x8x8x128xf32>
    %c0_11 = arith.constant 0 : index
    %c0_12 = arith.constant 0 : index
    %c0_13 = arith.constant 0 : index
    %c0_14 = arith.constant 0 : index
    %11 = vector.load %arg5[%c0_11, %c0_12, %c0_13, %c0_14] : memref<1x8x8x128xf32, #tpu.memory_space<vmem>>, vector<1x8x8x128xf32>
    tpu.vector_store %arg5[%c0_11, %c0_12, %c0_13, %c0_14], %10 {strides = array<i32>} : memref<1x8x8x128xf32, #tpu.memory_space<vmem>>, vector<1x8x8x128xf32>,
    return
  }
  func.func @transform_0(%arg0: i32) -> (i32, i32, i32, i32) {
    %c0_i32 = arith.constant 0 : i32
    %c0_i32_0 = arith.constant 0 : i32
    %c0_i32_1 = arith.constant 0 : i32
    %c0_i32_2 = arith.constant 0 : i32
    return %arg0, %c0_i32, %c0_i32_0, %c0_i32_1 : i32, i32, i32, i32
  }
  func.func @transform_1(%arg0: i32) -> (i32, i32, i32, i32) {
    %c0_i32 = arith.constant 0 : i32
    %c0_i32_0 = arith.constant 0 : i32
    %c0_i32_1 = arith.constant 0 : i32
    %c0_i32_2 = arith.constant 0 : i32
    return %arg0, %c0_i32, %c0_i32_0, %c0_i32_1 : i32, i32, i32, i32
  }
  func.func @transform_2(%arg0: i32) -> (i32, i32) {
    %c0_i32 = arith.constant 0 : i32
    %c0_i32_0 = arith.constant 0 : i32
    %c0_i32_1 = arith.constant 0 : i32
    return %c0_i32, %c0_i32_0 : i32, i32
  }
  func.func @transform_3(%arg0: i32) -> (i32, i32) {
    %c0_i32 = arith.constant 0 : i32
    %c0_i32_0 = arith.constant 0 : i32
    %c0_i32_1 = arith.constant 0 : i32
    return %c0_i32, %c0_i32_0 : i32, i32
  }
  func.func @transform_4(%arg0: i32) -> (i32, i32, i32, i32) {
    %c0_i32 = arith.constant 0 : i32
    %c0_i32_0 = arith.constant 0 : i32
    %c0_i32_1 = arith.constant 0 : i32
    %c0_i32_2 = arith.constant 0 : i32
    return %arg0, %c0_i32, %c0_i32_0, %c0_i32_1 : i32, i32, i32, i32
  }
}

</mosaic_0001>

<llo_original>
// kernel: residual_block_forward.3
$region0: #{residual_block_forward.3}
  #allocation0 [shape = 'u32[]', space=smem, size = 0x4, offset = 0x4, fixed_abs, tag = 'smem constant byte address 0x4 - core index']
  #allocation1 [shape = 'u32[144,128]{1,0:T(1,128)}', space=vmem, size = 0x12000, scoped, tag = 'internal scratch']
  %s0 = inlined_call_operand.vmem [shape: f32[2,8,8,128], index: 0, kind: input, shape index: {}]
  %s1 = inlined_call_operand.vmem [shape: f32[2,8,8,128], index: 1, kind: input, shape index: {}]
  %s2 = inlined_call_operand.vmem [shape: f32[1,128], index: 2, kind: input, shape index: {}]
  %s3 = inlined_call_operand.vmem [shape: f32[1,128], index: 3, kind: input, shape index: {}]
  %s4 = inlined_call_operand.hbm [shape: f32[2,8,8,128], index: 4, kind: output, shape index: {}]
  %s5 = sld [smem:[#allocation0]]
  $region49: #{residual_block_forward.3} parent=0
    _
  %s7 = ssub.s32 1, %s5
  %s8 = scalar_select 0, %s7, %s5
  $region1: #{residual_block_forward.3} parent=0
    #allocation2 [shape = 'u8[65536]{0}', space=vmem, size = 0x10000, scoped, tag = 'output window, operand 0']
    #allocation3 [shape = 's32[2]{0}', space=sflag, size = 0x8, scoped, tag = 'scoped memory for residual_block_forward.3']
    %9 = vsyncpa [#allocation3], 0
    %s10 = scalar_lea.sflag [#allocation3], 1
    %11 = vsyncpa %s10, 0
    loop: start=0, step=1, limit=4
    $region2: #{residual_block_forward.3} parent=1 // loop_pre_header
      _
    $region3: #{residual_block_forward.3} parent=1 // loop_header
      %s13 = sphi 0, %s17
      %p14 = scmp.ge.s32.totalorder %s13, 4
      %s23 = sphi 0, %s25
      %s26 = sphi 0, %s23
      %s27 = sphi 0, %s26
      %s43 = sphi 0, %s27
      %s49 = sphi 0, %s51
      %s52 = sphi 0, %s49
      %s53 = sphi 0, %s52
      %s69 = sphi 0, %s53
      %s73 = sphi 0, %s73
      %s75 = sphi 0, %s73
      %s76 = sphi 0, %s75
      %s90 = sphi 0, %s76
      %s94 = sphi 0, %s94
      %s96 = sphi 0, %s94
      %s97 = sphi 0, %s96
      %s111 = sphi 0, %s97
      %s117 = sphi 0, %s119
      %s120 = sphi 0, %s117
      %s121 = sphi 0, %s120
      %s137 = sphi 0, %s121
    $region4: #{residual_block_forward.3} parent=1 // loop_header_branch
      %16 = sbr.rel (%p14) target = $region8
    $region5: #{residual_block_forward.3} parent=1 // loop_body
      %s18 = ssub.s32 %s13, 1
      %s19 = ssub.s32 %s13, 2
      %s20 = sadd.s32 %s13, 1
      %s21 = ssub.s32 %s13, %s20
      %p22 = scmp.eq.s32.totalorder %s21, 0
      %s24 = sadd.s32 %s23, 1
      %s25 = scalar_select %p22, %s23, %s24
      %p28 = pneg %p22
      %p29 = scmp.eq.s32.totalorder %s13, 1
      %p30 = por %p28, %p29
      %p31 = scmp.ne.s32.totalorder %s23, %s26
      %p32 = scmp.eq.s32.totalorder %s13, 0
      %p33 = por %p31, %p32
      %p34 = scmp.ne.s32.totalorder %s23, %s26
      %p35 = scmp.eq.s32.totalorder %s18, 1
      %p36 = por %p34, %p35
      %p37 = scmp.ne.s32.totalorder %s26, %s27
      %p38 = scmp.eq.s32.totalorder %s18, 0
      %p39 = por %p37, %p38
      %p40 = scmp.ne.s32.totalorder %s26, %s27
      %p41 = scmp.eq.s32.totalorder %s19, 1
      %p42 = por %p40, %p41
      %p44 = scmp.ne.s32.totalorder %s27, %s43
      %p45 = scmp.eq.s32.totalorder %s19, 0
      %p46 = por %p44, %p45
      %s47 = ssub.s32 %s13, %s20
      %p48 = scmp.eq.s32.totalorder %s47, 0
      %s50 = sadd.s32 %s49, 1
      %s51 = scalar_select %p48, %s49, %s50
      %p54 = pneg %p48
      %p55 = scmp.eq.s32.totalorder %s13, 1
      %p56 = por %p54, %p55
      %p57 = scmp.ne.s32.totalorder %s49, %s52
      %p58 = scmp.eq.s32.totalorder %s13, 0
      %p59 = por %p57, %p58
      %p60 = scmp.ne.s32.totalorder %s49, %s52
      %p61 = scmp.eq.s32.totalorder %s18, 1
      %p62 = por %p60, %p61
      %p63 = scmp.ne.s32.totalorder %s52, %s53
      %p64 = scmp.eq.s32.totalorder %s18, 0
      %p65 = por %p63, %p64
      %p66 = scmp.ne.s32.totalorder %s52, %s53
      %p67 = scmp.eq.s32.totalorder %s19, 1
      %p68 = por %p66, %p67
      %p70 = scmp.ne.s32.totalorder %s53, %s69
      %p71 = scmp.eq.s32.totalorder %s19, 0
      %p72 = por %p70, %p71
      %s74 = sadd.s32 %s73, 1
      %p77 = scmp.eq.s32.totalorder %s13, 1
      %p78 = scmp.ne.s32.totalorder %s73, %s75
      %p79 = scmp.eq.s32.totalorder %s13, 0
      %p80 = por %p78, %p79
      %p81 = scmp.ne.s32.totalorder %s73, %s75
      %p82 = scmp.eq.s32.totalorder %s18, 1
      %p83 = por %p81, %p82
      %p84 = scmp.ne.s32.totalorder %s75, %s76
      %p85 = scmp.eq.s32.totalorder %s18, 0
      %p86 = por %p84, %p85
      %p87 = scmp.ne.s32.totalorder %s75, %s76
      %p88 = scmp.eq.s32.totalorder %s19, 1
      %p89 = por %p87, %p88
      %p91 = scmp.ne.s32.totalorder %s76, %s90
      %p92 = scmp.eq.s32.totalorder %s19, 0
      %p93 = por %p91, %p92
      %s95 = sadd.s32 %s94, 1
      %p98 = scmp.eq.s32.totalorder %s13, 1
      %p99 = scmp.ne.s32.totalorder %s94, %s96
      %p100 = scmp.eq.s32.totalorder %s13, 0
      %p101 = por %p99, %p100
      %p102 = scmp.ne.s32.totalorder %s94, %s96
      %p103 = scmp.eq.s32.totalorder %s18, 1
      %p104 = por %p102, %p103
      %p105 = scmp.ne.s32.totalorder %s96, %s97
      %p106 = scmp.eq.s32.totalorder %s18, 0
      %p107 = por %p105, %p106
      %p108 = scmp.ne.s32.totalorder %s96, %s97
      %p109 = scmp.eq.s32.totalorder %s19, 1
      %p110 = por %p108, %p109
      %p112 = scmp.ne.s32.totalorder %s97, %s111
      %p113 = scmp.eq.s32.totalorder %s19, 0
      %p114 = por %p112, %p113
      %s115 = ssub.s32 %s13, %s20
      %p116 = scmp.eq.s32.totalorder %s115, 0
      %s118 = sadd.s32 %s117, 1
      %s119 = scalar_select %p116, %s117, %s118
      %p122 = pneg %p116
      %p123 = scmp.eq.s32.totalorder %s13, 1
      %p124 = por %p122, %p123
      %p125 = scmp.ne.s32.totalorder %s117, %s120
      %p126 = scmp.eq.s32.totalorder %s13, 0
      %p127 = por %p125, %p126
      %p128 = scmp.ne.s32.totalorder %s117, %s120
      %p129 = scmp.eq.s32.totalorder %s18, 1
      %p130 = por %p128, %p129
      %p131 = scmp.ne.s32.totalorder %s120, %s121
      %p132 = scmp.eq.s32.totalorder %s18, 0
      %p133 = por %p131, %p132
      %p134 = scmp.ne.s32.totalorder %s120, %s121
      %p135 = scmp.eq.s32.totalorder %s19, 1
      %p136 = por %p134, %p135
      %p138 = scmp.ne.s32.totalorder %s121, %s137
      %p139 = scmp.eq.s32.totalorder %s19, 0
      %p140 = por %p138, %p139
      %p141 = scmp.le.s32.totalorder 1, %s13
      %p142 = scmp.lt.s32.totalorder %s13, 3
      %p143 = pnand %p141, %p142
      %p144 = pneg %p143
      // Predicated region
      $region9: #{residual_block_forward.3} parent=5 // pred_check
        _
      $region10: #{residual_block_forward.3} parent=5 // pred_check_branch
        %146 = sbr.rel (%p143) target = $region12
      $region11: #{residual_block_forward.3} parent=5 // pred_region
        %s147 = ssub.s32 %s13, 1
        // Predicated region
        $region13: #{residual_block_forward.3} parent=11 // pred_check
          %p148 = pneg %p86
        $region14: #{residual_block_forward.3} parent=11 // pred_check_branch
          %150 = sbr.rel (%p148) target = $region16
        $region15: #{residual_block_forward.3} parent=11 // pred_region
          _
        $region16: #{residual_block_forward.3} parent=11 // pred_fallthru
          _
        // Predicated region
        $region17: #{residual_block_forward.3} parent=11 // pred_check
          %p151 = pneg %p107
        $region18: #{residual_block_forward.3} parent=11 // pred_check_branch
          %153 = sbr.rel (%p151) target = $region20
        $region19: #{residual_block_forward.3} parent=11 // pred_region
          _
        $region20: #{residual_block_forward.3} parent=11 // pred_fallthru
          _
      $region12: #{residual_block_forward.3} parent=5 // pred_fallthru
        _
      %p154 = scmp.lt.s32.totalorder %s13, 2
      // Predicated region
      $region21: #{residual_block_forward.3} parent=5 // pred_check
        %p155 = pneg %p154
      $region22: #{residual_block_forward.3} parent=5 // pred_check_branch
        %157 = sbr.rel (%p155) target = $region24
      $region23: #{residual_block_forward.3} parent=5 // pred_region
        // Predicated region
        $region25: #{residual_block_forward.3} parent=23 // pred_check
          %p158 = pneg %p33
        $region26: #{residual_block_forward.3} parent=23 // pred_check_branch
          %160 = sbr.rel (%p158) target = $region28
        $region27: #{residual_block_forward.3} parent=23 // pred_region
          %p161 = scmp.lt.s32.totalorder %s13, 1
          %s162 = scalar_select %p161, %s13, 1
          %s163 = smul.addr %s162, 8
          %s164 = smul.addr %s163, 8
          %s165 = scalar_lea.vmem %s0, %s164
        $region28: #{residual_block_forward.3} parent=23 // pred_fallthru
          _
        // Predicated region
        $region29: #{residual_block_forward.3} parent=23 // pred_check
          %p166 = pneg %p59
        $region30: #{residual_block_forward.3} parent=23 // pred_check_branch
          %168 = sbr.rel (%p166) target = $region32
        $region31: #{residual_block_forward.3} parent=23 // pred_region
          %p169 = scmp.lt.s32.totalorder %s13, 1
          %s170 = scalar_select %p169, %s13, 1
          %s171 = smul.addr %s170, 8
          %s172 = smul.addr %s171, 8
          %s173 = scalar_lea.vmem %s1, %s172
        $region32: #{residual_block_forward.3} parent=23 // pred_fallthru
          _
      $region24: #{residual_block_forward.3} parent=5 // pred_fallthru
        _
      %p174 = scmp.le.s32.totalorder 1, %s13
      %p175 = scmp.lt.s32.totalorder %s13, 3
      %p176 = pnand %p174, %p175
      %p177 = pneg %p176
      // Predicated region
      $region33: #{residual_block_forward.3} parent=5 // pred_check
        _
      $region34: #{residual_block_forward.3} parent=5 // pred_check_branch
        %179 = sbr.rel (%p176) target = $region36
      $region35: #{residual_block_forward.3} parent=5 // pred_region
        %s180 = ssub.s32 %s13, 1
        %p181 = scmp.lt.s32.totalorder %s18, 1
        %s182 = scalar_select %p181, %s18, 1
        %s183 = smul.addr %s182, 8
        %s184 = smul.addr %s183, 8
        %s185 = scalar_lea.vmem %s0, %s184
        %p186 = pneg %p39
        %p187 = pneg %p36
        %p188 = scmp.lt.s32.totalorder %s18, 1
        %s189 = scalar_select %p188, %s18, 1
        %s190 = smul.addr %s189, 8
        %s191 = smul.addr %s190, 8
        %s192 = scalar_lea.vmem %s1, %s191
        %p193 = pneg %p65
        %p194 = pneg %p62
        %p195 = pneg %p86
        %p196 = pneg %p83
        %p197 = pneg %p107
        %p198 = pneg %p104
        %p199 = pneg %p133
        %p200 = pneg %p130
        %s201 = sand.u32 %s120, 1
        %s202 = scalar_lea.sflag [#allocation3], %s201
        %s203 = sand.u32 %s120, 1
        %s204 = smul.addr %s203, 64
        %s205 = scalar_lea.vmem [#allocation2], %s204
        %p206 = scmp.lt.s32.totalorder %s18, 1
        %s207 = scalar_select %p206, %s18, 1
        %s208 = smul.addr %s207, 8
        %s209 = smul.addr %s208, 8
        %s210 = scalar_lea.vmem %s0, %s209
        %p211 = scmp.lt.s32.totalorder %s18, 1
        %s212 = scalar_select %p211, %s18, 1
        %s213 = smul.addr %s212, 8
        %s214 = smul.addr %s213, 8
        %s215 = scalar_lea.vmem %s1, %s214
        %v216 = vld [vmem:[%s210] sm:$0xff]
        %v217 = vld [vmem:[%s210 + $0x8] sm:$0xff]
        %v218 = vld [vmem:[%s210 + $0x10] sm:$0xff]
        %v219 = vld [vmem:[%s210 + $0x18] sm:$0xff]
        %v220 = vld [vmem:[%s210 + $0x20] sm:$0xff]
        %v221 = vld [vmem:[%s210 + $0x28] sm:$0xff]
        %v222 = vld [vmem:[%s210 + $0x30] sm:$0xff]
        %v223 = vld [vmem:[%s210 + $0x38] sm:$0xff]
        %v224 = vld [vmem:[%s2] sm:$0x1]
        %v226 = vlaneseq
        %v227 = vshrl.u32 %v226, 7
        %v228 = vsub.s32 0, %v227
        %v229 = vrot.slane %v224, %v228
        %v231 = vmul.f32 %v216, %v229
        %v232 = vmul.f32 %v217, %v229
        %v233 = vmul.f32 %v218, %v229
        %v234 = vmul.f32 %v219, %v229
        %v235 = vmul.f32 %v220, %v229
        %v236 = vmul.f32 %v221, %v229
        %v237 = vmul.f32 %v222, %v229
        %v238 = vmul.f32 %v223, %v229
        %v239 = vld [vmem:[%s3] sm:$0x1]
        %v241 = vlaneseq
        %v242 = vshrl.u32 %v241, 7
        %v243 = vsub.s32 0, %v242
        %v244 = vrot.slane %v239, %v243
        %v246 = vadd.f32 %v231, %v244
        %v247 = vadd.f32 %v232, %v244
        %v248 = vadd.f32 %v233, %v244
        %v249 = vadd.f32 %v234, %v244
        %v250 = vadd.f32 %v235, %v244
        %v251 = vadd.f32 %v236, %v244
        %v252 = vadd.f32 %v237, %v244
        %v253 = vadd.f32 %v238, %v244
        %v254 = vld [vmem:[%s215] sm:$0xff]
        %v255 = vld [vmem:[%s215 + $0x8] sm:$0xff]
        %v256 = vld [vmem:[%s215 + $0x10] sm:$0xff]
        %v257 = vld [vmem:[%s215 + $0x18] sm:$0xff]
        %v258 = vld [vmem:[%s215 + $0x20] sm:$0xff]
        %v259 = vld [vmem:[%s215 + $0x28] sm:$0xff]
        %v260 = vld [vmem:[%s215 + $0x30] sm:$0xff]
        %v261 = vld [vmem:[%s215 + $0x38] sm:$0xff]
        %v262 = vadd.f32 %v246, %v254
        %v263 = vadd.f32 %v247, %v255
        %v264 = vadd.f32 %v248, %v256
        %v265 = vadd.f32 %v249, %v257
        %v266 = vadd.f32 %v250, %v258
        %v267 = vadd.f32 %v251, %v259
        %v268 = vadd.f32 %v252, %v260
        %v269 = vadd.f32 %v253, %v261
        %270 = vst [vmem:[%s205] sm:$0xff] %v262
        %271 = vst [vmem:[%s205 + $0x8] sm:$0xff] %v263
        %272 = vst [vmem:[%s205 + $0x10] sm:$0xff] %v264
        %273 = vst [vmem:[%s205 + $0x18] sm:$0xff] %v265
        %274 = vst [vmem:[%s205 + $0x20] sm:$0xff] %v266
        %275 = vst [vmem:[%s205 + $0x28] sm:$0xff] %v267
        %276 = vst [vmem:[%s205 + $0x30] sm:$0xff] %v268
        %277 = vst [vmem:[%s205 + $0x38] sm:$0xff] %v269
        %s278 = sand.u32 %s120, 1
        %s279 = scalar_lea.sflag [#allocation3], %s278
        %s280 = sand.u32 %s120, 1
        %s281 = smul.addr %s280, 64
        %s282 = scalar_lea.vmem [#allocation2], %s281
        // Predicated region
        $region37: #{residual_block_forward.3} parent=35 // pred_check
          %p283 = pneg %p130
        $region38: #{residual_block_forward.3} parent=35 // pred_check_branch
          %285 = sbr.rel (%p283) target = $region40
        $region39: #{residual_block_forward.3} parent=35 // pred_region
          %s287 = ssub.s32 1024, 1024
          %288 = vsyncadd %s279, %s287
          %s289 = smul.addr %s18, 8
          %s290 = smul.addr %s289, 128
          %s291 = scalar_lea.hbm %s4, %s290
          %s292 = sshll.u32 %s282, 4
          %s293 = int_to_ptr.vmem [resolvable:$true] %s292
          %298 = dma.vmem_to_hbm [thread:$0]  %s293, 1024, %s291, %s279, 128, 128, 8
        $region40: #{residual_block_forward.3} parent=35 // pred_fallthru
          _
      $region36: #{residual_block_forward.3} parent=5 // pred_fallthru
        _
      %p299 = scmp.le.s32.totalorder 2, %s13
      // Predicated region
      $region41: #{residual_block_forward.3} parent=5 // pred_check
        %p300 = pneg %p299
      $region42: #{residual_block_forward.3} parent=5 // pred_check_branch
        %302 = sbr.rel (%p300) target = $region44
      $region43: #{residual_block_forward.3} parent=5 // pred_region
        %s303 = ssub.s32 %s13, 2
        // Predicated region
        $region45: #{residual_block_forward.3} parent=43 // pred_check
          %p304 = pneg %p136
        $region46: #{residual_block_forward.3} parent=43 // pred_check_branch
          %306 = sbr.rel (%p304) target = $region48
        $region47: #{residual_block_forward.3} parent=43 // pred_region
          %s307 = sand.u32 %s121, 1
          %s308 = scalar_lea.sflag [#allocation3], %s307
          %s309 = sand.u32 %s121, 1
          %s310 = smul.addr %s309, 64
          %s311 = scalar_lea.vmem [#allocation2], %s310
          %312 = dma.done %s308, 1024
        $region48: #{residual_block_forward.3} parent=43 // pred_fallthru
          _
      $region44: #{residual_block_forward.3} parent=5 // pred_fallthru
        _
    $region6: #{residual_block_forward.3} parent=1 // loop_footer
      %s17 = sadd.s32 1, %s13
    $region7: #{residual_block_forward.3} parent=1 // loop_footer_branch
      %12 = sbr.rel target = $region3
    $region8: #{residual_block_forward.3} parent=1 // loop_exit
      _
    %313 = vsyncpa [#allocation3], 1
    %s314 = scalar_lea.sflag [#allocation3], 1
    %315 = vsyncpa %s314, 1

// kernel: residual_block_forward.2
$region0: #{residual_block_forward.2}
  #allocation0 [shape = 'u32[]', space=smem, size = 0x4, offset = 0x4, fixed_abs, tag = 'smem constant byte address 0x4 - core index']
  #allocation1 [shape = 'u32[144,128]{1,0:T(1,128)}', space=vmem, size = 0x12000, scoped, tag = 'internal scratch']
  #allocation2 [shape = 'bf16[64,1152]{1,0:T(8,128)(2,1)}', space=vmem, size = 0x24000, scoped, tag = 'scratch operand']
  %s0 = inlined_call_operand.vmem [shape: f32[2,8,8,128], index: 0, kind: input, shape index: {}]
  %s1 = inlined_call_operand.vmem [shape: bf16[1152,128], index: 1, kind: input, shape index: {}]
  %s2 = inlined_call_operand.vmem [shape: f32[1,128], index: 2, kind: input, shape index: {}]
  %s3 = inlined_call_operand.vmem [shape: f32[1,128], index: 3, kind: input, shape index: {}]
  %s4 = inlined_call_operand.vmem [shape: f32[1,128], index: 4, kind: input, shape index: {}]
  %s5 = inlined_call_operand.vmem [shape: bf16[1152,128], index: 5, kind: input, shape index: {}]
  %s6 = inlined_call_operand.vmem [shape: f32[1,128], index: 6, kind: input, shape index: {}]
  %s7 = inlined_call_operand.vmem [shape: f32[2,8,8,128], index: 7, kind: output, shape index: {0}]
  %s8 = inlined_call_operand.vmem [shape: f32[2,1,128], index: 8, kind: output, shape index: {1}]
  %s9 = inlined_call_operand.vmem [shape: f32[2,1,128], index: 9, kind: output, shape index: {2}]
  %10 = xla_tuple %s7, %s8, %s9
  %s11 = sld [smem:[#allocation0]]
  $region77: #{residual_block_forward.2} parent=0
    _
  %s13 = ssub.s32 1, %s11
  %s14 = scalar_select 0, %s13, %s11
  loop: start=0, step=1, limit=4
  $region2: #{residual_block_forward.2} parent=0 // loop_pre_header
    _
  $region3: #{residual_block_forward.2} parent=0 // loop_header
    %s16 = sphi 0, %s20
    %p17 = scmp.ge.s32.totalorder %s16, 4
    %s26 = sphi 0, %s28
    %s29 = sphi 0, %s26
    %s30 = sphi 0, %s29
    %s46 = sphi 0, %s30
    %s50 = sphi 0, %s50
    %s52 = sphi 0, %s50
    %s53 = sphi 0, %s52
    %s67 = sphi 0, %s53
    %s71 = sphi 0, %s71
    %s73 = sphi 0, %s71
    %s74 = sphi 0, %s73
    %s88 = sphi 0, %s74
    %s92 = sphi 0, %s92
    %s94 = sphi 0, %s92
    %s95 = sphi 0, %s94
    %s109 = sphi 0, %s95
    %s113 = sphi 0, %s113
    %s115 = sphi 0, %s113
    %s116 = sphi 0, %s115
    %s130 = sphi 0, %s116
    %s134 = sphi 0, %s134
    %s136 = sphi 0, %s134
    %s137 = sphi 0, %s136
    %s151 = sphi 0, %s137
    %s155 = sphi 0, %s155
    %s157 = sphi 0, %s155
    %s158 = sphi 0, %s157
    %s172 = sphi 0, %s158
    %s178 = sphi 0, %s180
    %s181 = sphi 0, %s178
    %s182 = sphi 0, %s181
    %s198 = sphi 0, %s182
    %s204 = sphi 0, %s206
    %s207 = sphi 0, %s204
    %s208 = sphi 0, %s207
    %s224 = sphi 0, %s208
    %s230 = sphi 0, %s232
    %s233 = sphi 0, %s230
    %s234 = sphi 0, %s233
    %s250 = sphi 0, %s234
  $region4: #{residual_block_forward.2} parent=0 // loop_header_branch
    %19 = sbr.rel (%p17) target = $region8
  $region5: #{residual_block_forward.2} parent=0 // loop_body
    %s21 = ssub.s32 %s16, 1
    %s22 = ssub.s32 %s16, 2
    %s23 = sadd.s32 %s16, 1
    %s24 = ssub.s32 %s16, %s23
    %p25 = scmp.eq.s32.totalorder %s24, 0
    %s27 = sadd.s32 %s26, 1
    %s28 = scalar_select %p25, %s26, %s27
    %p31 = pneg %p25
    %p32 = scmp.eq.s32.totalorder %s16, 1
    %p33 = por %p31, %p32
    %p34 = scmp.ne.s32.totalorder %s26, %s29
    %p35 = scmp.eq.s32.totalorder %s16, 0
    %p36 = por %p34, %p35
    %p37 = scmp.ne.s32.totalorder %s26, %s29
    %p38 = scmp.eq.s32.totalorder %s21, 1
    %p39 = por %p37, %p38
    %p40 = scmp.ne.s32.totalorder %s29, %s30
    %p41 = scmp.eq.s32.totalorder %s21, 0
    %p42 = por %p40, %p41
    %p43 = scmp.ne.s32.totalorder %s29, %s30
    %p44 = scmp.eq.s32.totalorder %s22, 1
    %p45 = por %p43, %p44
    %p47 = scmp.ne.s32.totalorder %s30, %s46
    %p48 = scmp.eq.s32.totalorder %s22, 0
    %p49 = por %p47, %p48
    %s51 = sadd.s32 %s50, 1
    %p54 = scmp.eq.s32.totalorder %s16, 1
    %p55 = scmp.ne.s32.totalorder %s50, %s52
    %p56 = scmp.eq.s32.totalorder %s16, 0
    %p57 = por %p55, %p56
    %p58 = scmp.ne.s32.totalorder %s50, %s52
    %p59 = scmp.eq.s32.totalorder %s21, 1
    %p60 = por %p58, %p59
    %p61 = scmp.ne.s32.totalorder %s52, %s53
    %p62 = scmp.eq.s32.totalorder %s21, 0
    %p63 = por %p61, %p62
    %p64 = scmp.ne.s32.totalorder %s52, %s53
    %p65 = scmp.eq.s32.totalorder %s22, 1
    %p66 = por %p64, %p65
    %p68 = scmp.ne.s32.totalorder %s53, %s67
    %p69 = scmp.eq.s32.totalorder %s22, 0
    %p70 = por %p68, %p69
    %s72 = sadd.s32 %s71, 1
    %p75 = scmp.eq.s32.totalorder %s16, 1
    %p76 = scmp.ne.s32.totalorder %s71, %s73
    %p77 = scmp.eq.s32.totalorder %s16, 0
    %p78 = por %p76, %p77
    %p79 = scmp.ne.s32.totalorder %s71, %s73
    %p80 = scmp.eq.s32.totalorder %s21, 1
    %p81 = por %p79, %p80
    %p82 = scmp.ne.s32.totalorder %s73, %s74
    %p83 = scmp.eq.s32.totalorder %s21, 0
    %p84 = por %p82, %p83
    %p85 = scmp.ne.s32.totalorder %s73, %s74
    %p86 = scmp.eq.s32.totalorder %s22, 1
    %p87 = por %p85, %p86
    %p89 = scmp.ne.s32.totalorder %s74, %s88
    %p90 = scmp.eq.s32.totalorder %s22, 0
    %p91 = por %p89, %p90
    %s93 = sadd.s32 %s92, 1
    %p96 = scmp.eq.s32.totalorder %s16, 1
    %p97 = scmp.ne.s32.totalorder %s92, %s94
    %p98 = scmp.eq.s32.totalorder %s16, 0
    %p99 = por %p97, %p98
    %p100 = scmp.ne.s32.totalorder %s92, %s94
    %p101 = scmp.eq.s32.totalorder %s21, 1
    %p102 = por %p100, %p101
    %p103 = scmp.ne.s32.totalorder %s94, %s95
    %p104 = scmp.eq.s32.totalorder %s21, 0
    %p105 = por %p103, %p104
    %p106 = scmp.ne.s32.totalorder %s94, %s95
    %p107 = scmp.eq.s32.totalorder %s22, 1
    %p108 = por %p106, %p107
    %p110 = scmp.ne.s32.totalorder %s95, %s109
    %p111 = scmp.eq.s32.totalorder %s22, 0
    %p112 = por %p110, %p111
    %s114 = sadd.s32 %s113, 1
    %p117 = scmp.eq.s32.totalorder %s16, 1
    %p118 = scmp.ne.s32.totalorder %s113, %s115
    %p119 = scmp.eq.s32.totalorder %s16, 0
    %p120 = por %p118, %p119
    %p121 = scmp.ne.s32.totalorder %s113, %s115
    %p122 = scmp.eq.s32.totalorder %s21, 1
    %p123 = por %p121, %p122
    %p124 = scmp.ne.s32.totalorder %s115, %s116
    %p125 = scmp.eq.s32.totalorder %s21, 0
    %p126 = por %p124, %p125
    %p127 = scmp.ne.s32.totalorder %s115, %s116
    %p128 = scmp.eq.s32.totalorder %s22, 1
    %p129 = por %p127, %p128
    %p131 = scmp.ne.s32.totalorder %s116, %s130
    %p132 = scmp.eq.s32.totalorder %s22, 0
    %p133 = por %p131, %p132
    %s135 = sadd.s32 %s134, 1
    %p138 = scmp.eq.s32.totalorder %s16, 1
    %p139 = scmp.ne.s32.totalorder %s134, %s136
    %p140 = scmp.eq.s32.totalorder %s16, 0
    %p141 = por %p139, %p140
    %p142 = scmp.ne.s32.totalorder %s134, %s136
    %p143 = scmp.eq.s32.totalorder %s21, 1
    %p144 = por %p142, %p143
    %p145 = scmp.ne.s32.totalorder %s136, %s137
    %p146 = scmp.eq.s32.totalorder %s21, 0
    %p147 = por %p145, %p146
    %p148 = scmp.ne.s32.totalorder %s136, %s137
    %p149 = scmp.eq.s32.totalorder %s22, 1
    %p150 = por %p148, %p149
    %p152 = scmp.ne.s32.totalorder %s137, %s151
    %p153 = scmp.eq.s32.totalorder %s22, 0
    %p154 = por %p152, %p153
    %s156 = sadd.s32 %s155, 1
    %p159 = scmp.eq.s32.totalorder %s16, 1
    %p160 = scmp.ne.s32.totalorder %s155, %s157
    %p161 = scmp.eq.s32.totalorder %s16, 0
    %p162 = por %p160, %p161
    %p163 = scmp.ne.s32.totalorder %s155, %s157
    %p164 = scmp.eq.s32.totalorder %s21, 1
    %p165 = por %p163, %p164
    %p166 = scmp.ne.s32.totalorder %s157, %s158
    %p167 = scmp.eq.s32.totalorder %s21, 0
    %p168 = por %p166, %p167
    %p169 = scmp.ne.s32.totalorder %s157, %s158
    %p170 = scmp.eq.s32.totalorder %s22, 1
    %p171 = por %p169, %p170
    %p173 = scmp.ne.s32.totalorder %s158, %s172
    %p174 = scmp.eq.s32.totalorder %s22, 0
    %p175 = por %p173, %p174
    %s176 = ssub.s32 %s16, %s23
    %p177 = scmp.eq.s32.totalorder %s176, 0
    %s179 = sadd.s32 %s178, 1
    %s180 = scalar_select %p177, %s178, %s179
    %p183 = pneg %p177
    %p184 = scmp.eq.s32.totalorder %s16, 1
    %p185 = por %p183, %p184
    %p186 = scmp.ne.s32.totalorder %s178, %s181
    %p187 = scmp.eq.s32.totalorder %s16, 0
    %p188 = por %p186, %p187
    %p189 = scmp.ne.s32.totalorder %s178, %s181
    %p190 = scmp.eq.s32.totalorder %s21, 1
    %p191 = por %p189, %p190
    %p192 = scmp.ne.s32.totalorder %s181, %s182
    %p193 = scmp.eq.s32.totalorder %s21, 0
    %p194 = por %p192, %p193
    %p195 = scmp.ne.s32.totalorder %s181, %s182
    %p196 = scmp.eq.s32.totalorder %s22, 1
    %p197 = por %p195, %p196
    %p199 = scmp.ne.s32.totalorder %s182, %s198
    %p200 = scmp.eq.s32.totalorder %s22, 0
    %p201 = por %p199, %p200
    %s202 = ssub.s32 %s16, %s23
    %p203 = scmp.eq.s32.totalorder %s202, 0
    %s205 = sadd.s32 %s204, 1
    %s206 = scalar_select %p203, %s204, %s205
    %p209 = pneg %p203
    %p210 = scmp.eq.s32.totalorder %s16, 1
    %p211 = por %p209, %p210
    %p212 = scmp.ne.s32.totalorder %s204, %s207
    %p213 = scmp.eq.s32.totalorder %s16, 0
    %p214 = por %p212, %p213
    %p215 = scmp.ne.s32.totalorder %s204, %s207
    %p216 = scmp.eq.s32.totalorder %s21, 1
    %p217 = por %p215, %p216
    %p218 = scmp.ne.s32.totalorder %s207, %s208
    %p219 = scmp.eq.s32.totalorder %s21, 0
    %p220 = por %p218, %p219
    %p221 = scmp.ne.s32.totalorder %s207, %s208
    %p222 = scmp.eq.s32.totalorder %s22, 1
    %p223 = por %p221, %p222
    %p225 = scmp.ne.s32.totalorder %s208, %s224
    %p226 = scmp.eq.s32.totalorder %s22, 0
    %p227 = por %p225, %p226
    %s228 = ssub.s32 %s16, %s23
    %p229 = scmp.eq.s32.totalorder %s228, 0
    %s231 = sadd.s32 %s230, 1
    %s232 = scalar_select %p229, %s230, %s231
    %p235 = pneg %p229
    %p236 = scmp.eq.s32.totalorder %s16, 1
    %p237 = por %p235, %p236
    %p238 = scmp.ne.s32.totalorder %s230, %s233
    %p239 = scmp.eq.s32.totalorder %s16, 0
    %p240 = por %p238, %p239
    %p241 = scmp.ne.s32.totalorder %s230, %s233
    %p242 = scmp.eq.s32.totalorder %s21, 1
    %p243 = por %p241, %p242
    %p244 = scmp.ne.s32.totalorder %s233, %s234
    %p245 = scmp.eq.s32.totalorder %s21, 0
    %p246 = por %p244, %p245
    %p247 = scmp.ne.s32.totalorder %s233, %s234
    %p248 = scmp.eq.s32.totalorder %s22, 1
    %p249 = por %p247, %p248
    %p251 = scmp.ne.s32.totalorder %s234, %s250
    %p252 = scmp.eq.s32.totalorder %s22, 0
    %p253 = por %p251, %p252
    %p254 = scmp.le.s32.totalorder 1, %s16
    %p255 = scmp.lt.s32.totalorder %s16, 3
    %p256 = pnand %p254, %p255
    %p257 = pneg %p256
    // Predicated region
    $region9: #{residual_block_forward.2} parent=5 // pred_check
      _
    $region10: #{residual_block_forward.2} parent=5 // pred_check_branch
      %259 = sbr.rel (%p256) target = $region12
    $region11: #{residual_block_forward.2} parent=5 // pred_region
      %s260 = ssub.s32 %s16, 1
      // Predicated region
      $region13: #{residual_block_forward.2} parent=11 // pred_check
        %p261 = pneg %p63
      $region14: #{residual_block_forward.2} parent=11 // pred_check_branch
        %263 = sbr.rel (%p261) target = $region16
      $region15: #{residual_block_forward.2} parent=11 // pred_region
        _
      $region16: #{residual_block_forward.2} parent=11 // pred_fallthru
        _
      // Predicated region
      $region17: #{residual_block_forward.2} parent=11 // pred_check
        %p264 = pneg %p84
      $region18: #{residual_block_forward.2} parent=11 // pred_check_branch
        %266 = sbr.rel (%p264) target = $region20
      $region19: #{residual_block_forward.2} parent=11 // pred_region
        _
      $region20: #{residual_block_forward.2} parent=11 // pred_fallthru
        _
      // Predicated region
      $region21: #{residual_block_forward.2} parent=11 // pred_check
        %p267 = pneg %p105
      $region22: #{residual_block_forward.2} parent=11 // pred_check_branch
        %269 = sbr.rel (%p267) target = $region24
      $region23: #{residual_block_forward.2} parent=11 // pred_region
        _
      $region24: #{residual_block_forward.2} parent=11 // pred_fallthru
        _
      // Predicated region
      $region25: #{residual_block_forward.2} parent=11 // pred_check
        %p270 = pneg %p126
      $region26: #{residual_block_forward.2} parent=11 // pred_check_branch
        %272 = sbr.rel (%p270) target = $region28
      $region27: #{residual_block_forward.2} parent=11 // pred_region
        _
      $region28: #{residual_block_forward.2} parent=11 // pred_fallthru
        _
      // Predicated region
      $region29: #{residual_block_forward.2} parent=11 // pred_check
        %p273 = pneg %p147
      $region30: #{residual_block_forward.2} parent=11 // pred_check_branch
        %275 = sbr.rel (%p273) target = $region32
      $region31: #{residual_block_forward.2} parent=11 // pred_region
        _
      $region32: #{residual_block_forward.2} parent=11 // pred_fallthru
        _
      // Predicated region
      $region33: #{residual_block_forward.2} parent=11 // pred_check
        %p276 = pneg %p168
      $region34: #{residual_block_forward.2} parent=11 // pred_check_branch
        %278 = sbr.rel (%p276) target = $region36
      $region35: #{residual_block_forward.2} parent=11 // pred_region
        _
      $region36: #{residual_block_forward.2} parent=11 // pred_fallthru
        _
    $region12: #{residual_block_forward.2} parent=5 // pred_fallthru
      _
    %p279 = scmp.lt.s32.totalorder %s16, 2
    // Predicated region
    $region37: #{residual_block_forward.2} parent=5 // pred_check
      %p280 = pneg %p279
    $region38: #{residual_block_forward.2} parent=5 // pred_check_branch
      %282 = sbr.rel (%p280) target = $region40
    $region39: #{residual_block_forward.2} parent=5 // pred_region
      // Predicated region
      $region41: #{residual_block_forward.2} parent=39 // pred_check
        %p283 = pneg %p36
      $region42: #{residual_block_forward.2} parent=39 // pred_check_branch
        %285 = sbr.rel (%p283) target = $region44
      $region43: #{residual_block_forward.2} parent=39 // pred_region
        %p286 = scmp.lt.s32.totalorder %s16, 1
        %s287 = scalar_select %p286, %s16, 1
        %s288 = smul.addr %s287, 8
        %s289 = smul.addr %s288, 8
        %s290 = scalar_lea.vmem %s0, %s289
      $region44: #{residual_block_forward.2} parent=39 // pred_fallthru
        _
    $region40: #{residual_block_forward.2} parent=5 // pred_fallthru
      _
    %p291 = scmp.le.s32.totalorder 1, %s16
    %p292 = scmp.lt.s32.totalorder %s16, 3
    %p293 = pnand %p291, %p292
    %p294 = pneg %p293
    // Predicated region
    $region45: #{residual_block_forward.2} parent=5 // pred_check
      _
    $region46: #{residual_block_forward.2} parent=5 // pred_check_branch
      %296 = sbr.rel (%p293) target = $region48
    $region47: #{residual_block_forward.2} parent=5 // pred_region
      %s297 = ssub.s32 %s16, 1
      %p298 = scmp.lt.s32.totalorder %s21, 1
      %s299 = scalar_select %p298, %s21, 1
      %s300 = smul.addr %s299, 8
      %s301 = smul.addr %s300, 8
      %s302 = scalar_lea.vmem %s0, %s301
      %p303 = pneg %p42
      %p304 = pneg %p39
      %p305 = pneg %p63
      %p306 = pneg %p60
      %p307 = pneg %p84
      %p308 = pneg %p81
      %p309 = pneg %p105
      %p310 = pneg %p102
      %p311 = pneg %p126
      %p312 = pneg %p123
      %p313 = pneg %p147
      %p314 = pneg %p144
      %p315 = pneg %p168
      %p316 = pneg %p165
      %p317 = pneg %p194
      %p318 = pneg %p191
      %p319 = scmp.lt.s32.totalorder %s21, 1
      %s320 = scalar_select %p319, %s21, 1
      %s321 = smul.addr %s320, 8
      %s322 = smul.addr %s321, 8
      %s323 = scalar_lea.vmem %s7, %s322
      %p324 = pneg %p220
      %p325 = pneg %p217
      %p326 = scmp.lt.s32.totalorder %s21, 1
      %s327 = scalar_select %p326, %s21, 1
      %s328 = scalar_lea.vmem %s8, %s327
      %p329 = pneg %p246
      %p330 = pneg %p243
      %p331 = scmp.lt.s32.totalorder %s21, 1
      %s332 = scalar_select %p331, %s21, 1
      %s333 = scalar_lea.vmem %s9, %s332
      %p334 = scmp.lt.s32.totalorder %s21, 1
      %s335 = scalar_select %p334, %s21, 1
      %s336 = smul.addr %s335, 8
      %s337 = smul.addr %s336, 8
      %s338 = scalar_lea.vmem %s0, %s337
      %p339 = scmp.lt.s32.totalorder %s21, 1
      %s340 = scalar_select %p339, %s21, 1
      %s341 = smul.addr %s340, 8
      %s342 = smul.addr %s341, 8
      %s343 = scalar_lea.vmem %s7, %s342
      %p344 = scmp.lt.s32.totalorder %s21, 1
      %s345 = scalar_select %p344, %s21, 1
      %s346 = scalar_lea.vmem %s8, %s345
      %p347 = scmp.lt.s32.totalorder %s21, 1
      %s348 = scalar_select %p347, %s21, 1
      %s349 = scalar_lea.vmem %s9, %s348
      %v351 = vld [vmem:[%s338] sm:$0xff]
      %v352 = vld [vmem:[%s338 + $0x8] sm:$0xff]
      %v353 = vld [vmem:[%s338 + $0x10] sm:$0xff]
      %v354 = vld [vmem:[%s338 + $0x18] sm:$0xff]
      %v355 = vld [vmem:[%s338 + $0x20] sm:$0xff]
      %v356 = vld [vmem:[%s338 + $0x28] sm:$0xff]
      %v357 = vld [vmem:[%s338 + $0x30] sm:$0xff]
      %v358 = vld [vmem:[%s338 + $0x38] sm:$0xff]
      %v367 = vrot.slane %v351, 1
      %v368 = vrot.slane %v352, 1
      %v369 = vrot.slane %v353, 1
      %v370 = vrot.slane %v354, 1
      %v371 = vrot.slane %v355, 1
      %v372 = vrot.slane %v356, 1
      %v373 = vrot.slane %v357, 1
      %v374 = vrot.slane %v358, 1
      %v383 = vrot.slane %v351, 7
      %v384 = vrot.slane %v352, 7
      %v385 = vrot.slane %v353, 7
      %v386 = vrot.slane %v354, 7
      %v387 = vrot.slane %v355, 7
      %v388 = vrot.slane %v356, 7
      %v389 = vrot.slane %v357, 7
      %v390 = vrot.slane %v358, 7
      %vm399 = vcmask 1040384
      %v400 = vsel %vm399, %v367, %v383
      %v401 = vsel %vm399, %v368, %v384
      %v402 = vsel %vm399, %v369, %v385
      %v403 = vsel %vm399, %v370, %v386
      %v404 = vsel %vm399, %v371, %v387
      %v405 = vsel %vm399, %v372, %v388
      %v406 = vsel %vm399, %v373, %v389
      %v407 = vsel %vm399, %v374, %v390
      %vm408 = vcmask 1046528
      %v409 = vsel %vm408, %v367, %v383
      %v410 = vsel %vm408, %v368, %v384
      %v411 = vsel %vm408, %v369, %v385
      %v412 = vsel %vm408, %v370, %v386
      %v413 = vsel %vm408, %v371, %v387
      %v414 = vsel %vm408, %v372, %v388
      %v415 = vsel %vm408, %v373, %v389
      %v416 = vsel %vm408, %v374, %v390
      %v417 = vpack.c.bf16 %v400, %v401
      %v418 = vpack.c.bf16 %v402, %v401
      %v419 = vpack.c.bf16 %v404, %v403
      %v420 = vpack.c.bf16 %v406, %v405
      %v425 = vunpack.c.l.b16 %v417
      %v426 = vunpack.c.h.b16 %v417
      %v427 = vunpack.c.l.b16 %v418
      %v428 = vunpack.c.h.b16 %v418
      %v429 = vunpack.c.l.b16 %v419
      %v430 = vunpack.c.h.b16 %v419
      %v431 = vunpack.c.l.b16 %v420
      %v432 = vunpack.c.h.b16 %v420
      %v433 = vpack.c.b16 %v425, %v425
      %v434 = vpack.c.b16 %v426, %v426
      %v435 = vpack.c.b16 %v427, %v427
      %v436 = vpack.c.b16 %v428, %v428
      %v437 = vpack.c.b16 %v429, %v429
      %v438 = vpack.c.b16 %v430, %v430
      %v439 = vpack.c.b16 %v431, %v431
      %v440 = vpack.c.b16 %v432, %v432
      %449 = vst [vmem:[#allocation2] sm:$0xf] %v433
      %450 = vst [vmem:[#allocation2 + $0x24] sm:$0xf] %v434
      %451 = vst [vmem:[#allocation2 + $0x48] sm:$0xf] %v435
      %452 = vst [vmem:[#allocation2 + $0x6c] sm:$0xf] %v436
      %453 = vst [vmem:[#allocation2 + $0x90] sm:$0xf] %v437
      %454 = vst [vmem:[#allocation2 + $0xb4] sm:$0xf] %v438
      %455 = vst [vmem:[#allocation2 + $0xd8] sm:$0xf] %v439
      %456 = vst [vmem:[#allocation2 + $0xfc] sm:$0xf] %v440
      %v457 = vpack.c.bf16 %v351, %v352
      %v458 = vpack.c.bf16 %v353, %v352
      %v459 = vpack.c.bf16 %v355, %v354
      %v460 = vpack.c.bf16 %v357, %v356
      %v465 = vunpack.c.l.b16 %v457
      %v466 = vunpack.c.h.b16 %v457
      %v467 = vunpack.c.l.b16 %v458
      %v468 = vunpack.c.h.b16 %v458
      %v469 = vunpack.c.l.b16 %v459
      %v470 = vunpack.c.h.b16 %v459
      %v471 = vunpack.c.l.b16 %v460
      %v472 = vunpack.c.h.b16 %v460
      %v473 = vpack.c.b16 %v465, %v465
      %v474 = vpack.c.b16 %v466, %v466
      %v475 = vpack.c.b16 %v467, %v467
      %v476 = vpack.c.b16 %v468, %v468
      %v477 = vpack.c.b16 %v469, %v469
      %v478 = vpack.c.b16 %v470, %v470
      %v479 = vpack.c.b16 %v471, %v471
      %v480 = vpack.c.b16 %v472, %v472
      %489 = vst [vmem:[#allocation2 + $0x4] sm:$0xf] %v473
      %490 = vst [vmem:[#allocation2 + $0x28] sm:$0xf] %v474
      %491 = vst [vmem:[#allocation2 + $0x4c] sm:$0xf] %v475
      %492 = vst [vmem:[#allocation2 + $0x70] sm:$0xf] %v476
      %493 = vst [vmem:[#allocation2 + $0x94] sm:$0xf] %v477
      %494 = vst [vmem:[#allocation2 + $0xb8] sm:$0xf] %v478
      %495 = vst [vmem:[#allocation2 + $0xdc] sm:$0xf] %v479
      %496 = vst [vmem:[#allocation2 + $0x100] sm:$0xf] %v480
      %v497 = vpack.c.bf16 %v409, %v410
      %v498 = vpack.c.bf16 %v411, %v410
      %v499 = vpack.c.bf16 %v413, %v412
      %v500 = vpack.c.bf16 %v415, %v414
      %v505 = vunpack.c.l.b16 %v497
      %v506 = vunpack.c.h.b16 %v497
      %v507 = vunpack.c.l.b16 %v498
      %v508 = vunpack.c.h.b16 %v498
      %v509 = vunpack.c.l.b16 %v499
      %v510 = vunpack.c.h.b16 %v499
      %v511 = vunpack.c.l.b16 %v500
      %v512 = vunpack.c.h.b16 %v500
      %v513 = vpack.c.b16 %v505, %v505
      %v514 = vpack.c.b16 %v506, %v506
      %v515 = vpack.c.b16 %v507, %v507
      %v516 = vpack.c.b16 %v508, %v508
      %v517 = vpack.c.b16 %v509, %v509
      %v518 = vpack.c.b16 %v510, %v510
      %v519 = vpack.c.b16 %v511, %v511
      %v520 = vpack.c.b16 %v512, %v512
      %529 = vst [vmem:[#allocation2 + $0x8] sm:$0xf] %v513
      %530 = vst [vmem:[#allocation2 + $0x2c] sm:$0xf] %v514
      %531 = vst [vmem:[#allocation2 + $0x50] sm:$0xf] %v515
      %532 = vst [vmem:[#allocation2 + $0x74] sm:$0xf] %v516
      %533 = vst [vmem:[#allocation2 + $0x98] sm:$0xf] %v517
      %534 = vst [vmem:[#allocation2 + $0xbc] sm:$0xf] %v518
      %535 = vst [vmem:[#allocation2 + $0xe0] sm:$0xf] %v519
      %536 = vst [vmem:[#allocation2 + $0x104] sm:$0xf] %v520
      %v537 = vpack.c.bf16 %v401, %v400
      %v538 = vpack.c.bf16 %v403, %v402
      %v539 = vpack.c.bf16 %v405, %v404
      %v540 = vpack.c.bf16 %v407, %v406
      %v545 = vunpack.c.l.b16 %v537
      %v546 = vunpack.c.h.b16 %v537
      %v547 = vunpack.c.l.b16 %v538
      %v548 = vunpack.c.h.b16 %v538
      %v549 = vunpack.c.l.b16 %v539
      %v550 = vunpack.c.h.b16 %v539
      %v551 = vunpack.c.l.b16 %v540
      %v552 = vunpack.c.h.b16 %v540
      %v553 = vpack.c.b16 %v545, %v545
      %v554 = vpack.c.b16 %v546, %v546
      %v555 = vpack.c.b16 %v547, %v547
      %v556 = vpack.c.b16 %v548, %v548
      %v557 = vpack.c.b16 %v549, %v549
      %v558 = vpack.c.b16 %v550, %v550
      %v559 = vpack.c.b16 %v551, %v551
      %v560 = vpack.c.b16 %v552, %v552
      %569 = vst [vmem:[#allocation2 + $0xc] sm:$0xf] %v553
      %570 = vst [vmem:[#allocation2 + $0x30] sm:$0xf] %v554
      %571 = vst [vmem:[#allocation2 + $0x54] sm:$0xf] %v555
      %572 = vst [vmem:[#allocation2 + $0x78] sm:$0xf] %v556
      %573 = vst [vmem:[#allocation2 + $0x9c] sm:$0xf] %v557
      %574 = vst [vmem:[#allocation2 + $0xc0] sm:$0xf] %v558
      %575 = vst [vmem:[#allocation2 + $0xe4] sm:$0xf] %v559
      %576 = vst [vmem:[#allocation2 + $0x108] sm:$0xf] %v560
      %v577 = vpack.c.bf16 %v352, %v351
      %v578 = vpack.c.bf16 %v354, %v353
      %v579 = vpack.c.bf16 %v356, %v355
      %v580 = vpack.c.bf16 %v358, %v357
      %v585 = vunpack.c.l.b16 %v577
      %v586 = vunpack.c.h.b16 %v577
      %v587 = vunpack.c.l.b16 %v578
      %v588 = vunpack.c.h.b16 %v578
      %v589 = vunpack.c.l.b16 %v579
      %v590 = vunpack.c.h.b16 %v579
      %v591 = vunpack.c.l.b16 %v580
      %v592 = vunpack.c.h.b16 %v580
      %v593 = vpack.c.b16 %v585, %v585
      %v594 = vpack.c.b16 %v586, %v586
      %v595 = vpack.c.b16 %v587, %v587
      %v596 = vpack.c.b16 %v588, %v588
      %v597 = vpack.c.b16 %v589, %v589
      %v598 = vpack.c.b16 %v590, %v590
      %v599 = vpack.c.b16 %v591, %v591
      %v600 = vpack.c.b16 %v592, %v592
      %609 = vst [vmem:[#allocation2 + $0x10] sm:$0xf] %v593
      %610 = vst [vmem:[#allocation2 + $0x34] sm:$0xf] %v594
      %611 = vst [vmem:[#allocation2 + $0x58] sm:$0xf] %v595
      %612 = vst [vmem:[#allocation2 + $0x7c] sm:$0xf] %v596
      %613 = vst [vmem:[#allocation2 + $0xa0] sm:$0xf] %v597
      %614 = vst [vmem:[#allocation2 + $0xc4] sm:$0xf] %v598
      %615 = vst [vmem:[#allocation2 + $0xe8] sm:$0xf] %v599
      %616 = vst [vmem:[#allocation2 + $0x10c] sm:$0xf] %v600
      %v617 = vpack.c.bf16 %v410, %v409
      %v618 = vpack.c.bf16 %v412, %v411
      %v619 = vpack.c.bf16 %v414, %v413
      %v620 = vpack.c.bf16 %v416, %v415
      %v625 = vunpack.c.l.b16 %v617
      %v626 = vunpack.c.h.b16 %v617
      %v627 = vunpack.c.l.b16 %v618
      %v628 = vunpack.c.h.b16 %v618
      %v629 = vunpack.c.l.b16 %v619
      %v630 = vunpack.c.h.b16 %v619
      %v631 = vunpack.c.l.b16 %v620
      %v632 = vunpack.c.h.b16 %v620
      %v633 = vpack.c.b16 %v625, %v625
      %v634 = vpack.c.b16 %v626, %v626
      %v635 = vpack.c.b16 %v627, %v627
      %v636 = vpack.c.b16 %v628, %v628
      %v637 = vpack.c.b16 %v629, %v629
      %v638 = vpack.c.b16 %v630, %v630
      %v639 = vpack.c.b16 %v631, %v631
      %v640 = vpack.c.b16 %v632, %v632
      %649 = vst [vmem:[#allocation2 + $0x14] sm:$0xf] %v633
      %650 = vst [vmem:[#allocation2 + $0x38] sm:$0xf] %v634
      %651 = vst [vmem:[#allocation2 + $0x5c] sm:$0xf] %v635
      %652 = vst [vmem:[#allocation2 + $0x80] sm:$0xf] %v636
      %653 = vst [vmem:[#allocation2 + $0xa4] sm:$0xf] %v637
      %654 = vst [vmem:[#allocation2 + $0xc8] sm:$0xf] %v638
      %655 = vst [vmem:[#allocation2 + $0xec] sm:$0xf] %v639
      %656 = vst [vmem:[#allocation2 + $0x110] sm:$0xf] %v640
      %v657 = vpack.c.bf16 %v406, %v407
      %v659 = vunpack.c.l.b16 %v657
      %v660 = vunpack.c.h.b16 %v657
      %v661 = vpack.c.b16 %v659, %v659
      %v662 = vpack.c.b16 %v660, %v660
      %665 = vst [vmem:[#allocation2 + $0x18] sm:$0xf] %v435
      %666 = vst [vmem:[#allocation2 + $0x3c] sm:$0xf] %v436
      %667 = vst [vmem:[#allocation2 + $0x60] sm:$0xf] %v437
      %668 = vst [vmem:[#allocation2 + $0x84] sm:$0xf] %v438
      %669 = vst [vmem:[#allocation2 + $0xa8] sm:$0xf] %v439
      %670 = vst [vmem:[#allocation2 + $0xcc] sm:$0xf] %v440
      %671 = vst [vmem:[#allocation2 + $0xf0] sm:$0xf] %v661
      %672 = vst [vmem:[#allocation2 + $0x114] sm:$0xf] %v662
      %v673 = vpack.c.bf16 %v357, %v358
      %v675 = vunpack.c.l.b16 %v673
      %v676 = vunpack.c.h.b16 %v673
      %v677 = vpack.c.b16 %v675, %v675
      %v678 = vpack.c.b16 %v676, %v676
      %681 = vst [vmem:[#allocation2 + $0x1c] sm:$0xf] %v475
      %682 = vst [vmem:[#allocation2 + $0x40] sm:$0xf] %v476
      %683 = vst [vmem:[#allocation2 + $0x64] sm:$0xf] %v477
      %684 = vst [vmem:[#allocation2 + $0x88] sm:$0xf] %v478
      %685 = vst [vmem:[#allocation2 + $0xac] sm:$0xf] %v479
      %686 = vst [vmem:[#allocation2 + $0xd0] sm:$0xf] %v480
      %687 = vst [vmem:[#allocation2 + $0xf4] sm:$0xf] %v677
      %688 = vst [vmem:[#allocation2 + $0x118] sm:$0xf] %v678
      %v689 = vpack.c.bf16 %v415, %v416
      %v691 = vunpack.c.l.b16 %v689
      %v692 = vunpack.c.h.b16 %v689
      %v693 = vpack.c.b16 %v691, %v691
      %v694 = vpack.c.b16 %v692, %v692
      %697 = vst [vmem:[#allocation2 + $0x20] sm:$0xf] %v515
      %698 = vst [vmem:[#allocation2 + $0x44] sm:$0xf] %v516
      %699 = vst [vmem:[#allocation2 + $0x68] sm:$0xf] %v517
      %700 = vst [vmem:[#allocation2 + $0x8c] sm:$0xf] %v518
      %701 = vst [vmem:[#allocation2 + $0xb0] sm:$0xf] %v519
      %702 = vst [vmem:[#allocation2 + $0xd4] sm:$0xf] %v520
      %703 = vst [vmem:[#allocation2 + $0xf8] sm:$0xf] %v693
      %704 = vst [vmem:[#allocation2 + $0x11c] sm:$0xf] %v694
      %v705 = vld [vmem:[#allocation2] sm:$0xff]
      %v706 = vld [vmem:[#allocation2 + $0x8] sm:$0xff]
      %v707 = vld [vmem:[#allocation2 + $0x10] sm:$0xff]
      %v708 = vld [vmem:[#allocation2 + $0x18] sm:$0xff]
      %v709 = vld [vmem:[#allocation2 + $0x20] sm:$0xf]
      %v710 = vld [vmem:[#allocation2 + $0x24] sm:$0xff]
      %v711 = vld [vmem:[#allocation2 + $0x2c] sm:$0xff]
      %v712 = vld [vmem:[#allocation2 + $0x34] sm:$0xff]
      %v713 = vld [vmem:[#allocation2 + $0x3c] sm:$0xff]
      %v714 = vld [vmem:[#allocation2 + $0x44] sm:$0xf]
      %v715 = vld [vmem:[#allocation2 + $0x48] sm:$0xff]
      %v716 = vld [vmem:[#allocation2 + $0x50] sm:$0xff]
      %v717 = vld [vmem:[#allocation2 + $0x58] sm:$0xff]
      %v718 = vld [vmem:[#allocation2 + $0x60] sm:$0xff]
      %v719 = vld [vmem:[#allocation2 + $0x68] sm:$0xf]
      %v720 = vld [vmem:[#allocation2 + $0x6c] sm:$0xff]
      %v721 = vld [vmem:[#allocation2 + $0x74] sm:$0xff]
      %v722 = vld [vmem:[#allocation2 + $0x7c] sm:$0xff]
      %v723 = vld [vmem:[#allocation2 + $0x84] sm:$0xff]
      %v724 = vld [vmem:[#allocation2 + $0x8c] sm:$0xf]
      %v725 = vld [vmem:[#allocation2 + $0x90] sm:$0xff]
      %v726 = vld [vmem:[#allocation2 + $0x98] sm:$0xff]
      %v727 = vld [vmem:[#allocation2 + $0xa0] sm:$0xff]
      %v728 = vld [vmem:[#allocation2 + $0xa8] sm:$0xff]
      %v729 = vld [vmem:[#allocation2 + $0xb0] sm:$0xf]
      %v730 = vld [vmem:[#allocation2 + $0xb4] sm:$0xff]
      %v731 = vld [vmem:[#allocation2 + $0xbc] sm:$0xff]
      %v732 = vld [vmem:[#allocation2 + $0xc4] sm:$0xff]
      %v733 = vld [vmem:[#allocation2 + $0xcc] sm:$0xff]
      %v734 = vld [vmem:[#allocation2 + $0xd4] sm:$0xf]
      %v735 = vld [vmem:[#allocation2 + $0xd8] sm:$0xff]
      %v736 = vld [vmem:[#allocation2 + $0xe0] sm:$0xff]
      %v737 = vld [vmem:[#allocation2 + $0xe8] sm:$0xff]
      %v738 = vld [vmem:[#allocation2 + $0xf0] sm:$0xff]
      %v739 = vld [vmem:[#allocation2 + $0xf8] sm:$0xf]
      %v740 = vld [vmem:[#allocation2 + $0xfc] sm:$0xff]
      %v741 = vld [vmem:[#allocation2 + $0x104] sm:$0xff]
      %v742 = vld [vmem:[#allocation2 + $0x10c] sm:$0xff]
      %v743 = vld [vmem:[#allocation2 + $0x114] sm:$0xff]
      %v744 = vld [vmem:[#allocation2 + $0x11c] sm:$0xf]
      %v745 = vld [vmem:[%s1] sm:$0xf]
      %v746 = vld [vmem:[%s1 + $0x4] sm:$0xf]
      %v747 = vld [vmem:[%s1 + $0x8] sm:$0xf]
      %v748 = vld [vmem:[%s1 + $0xc] sm:$0xf]
      %v749 = vld [vmem:[%s1 + $0x10] sm:$0xf]
      %v750 = vld [vmem:[%s1 + $0x14] sm:$0xf]
      %v751 = vld [vmem:[%s1 + $0x18] sm:$0xf]
      %v752 = vld [vmem:[%s1 + $0x1c] sm:$0xf]
      %v753 = vld [vmem:[%s1 + $0x20] sm:$0xf]
      %v754 = vld [vmem:[%s1 + $0x24] sm:$0xf]
      %v755 = vld [vmem:[%s1 + $0x28] sm:$0xf]
      %v756 = vld [vmem:[%s1 + $0x2c] sm:$0xf]
      %v757 = vld [vmem:[%s1 + $0x30] sm:$0xf]
      %v758 = vld [vmem:[%s1 + $0x34] sm:$0xf]
      %v759 = vld [vmem:[%s1 + $0x38] sm:$0xf]
      %v760 = vld [vmem:[%s1 + $0x3c] sm:$0xf]
      %v761 = vld [vmem:[%s1 + $0x40] sm:$0xf]
      %v762 = vld [vmem:[%s1 + $0x44] sm:$0xf]
      %v763 = vld [vmem:[%s1 + $0x48] sm:$0xf]
      %v764 = vld [vmem:[%s1 + $0x4c] sm:$0xf]
      %v765 = vld [vmem:[%s1 + $0x50] sm:$0xf]
      %v766 = vld [vmem:[%s1 + $0x54] sm:$0xf]
      %v767 = vld [vmem:[%s1 + $0x58] sm:$0xf]
      %v768 = vld [vmem:[%s1 + $0x5c] sm:$0xf]
      %v769 = vld [vmem:[%s1 + $0x60] sm:$0xf]
      %v770 = vld [vmem:[%s1 + $0x64] sm:$0xf]
      %v771 = vld [vmem:[%s1 + $0x68] sm:$0xf]
      %v772 = vld [vmem:[%s1 + $0x6c] sm:$0xf]
      %v773 = vld [vmem:[%s1 + $0x70] sm:$0xf]
      %v774 = vld [vmem:[%s1 + $0x74] sm:$0xf]
      %v775 = vld [vmem:[%s1 + $0x78] sm:$0xf]
      %v776 = vld [vmem:[%s1 + $0x7c] sm:$0xf]
      %v777 = vld [vmem:[%s1 + $0x80] sm:$0xf]
      %v778 = vld [vmem:[%s1 + $0x84] sm:$0xf]
      %v779 = vld [vmem:[%s1 + $0x88] sm:$0xf]
      %v780 = vld [vmem:[%s1 + $0x8c] sm:$0xf]
      %v781 = vld [vmem:[%s1 + $0x90] sm:$0xf]
      %v782 = vld [vmem:[%s1 + $0x94] sm:$0xf]
      %v783 = vld [vmem:[%s1 + $0x98] sm:$0xf]
      %v784 = vld [vmem:[%s1 + $0x9c] sm:$0xf]
      %v785 = vld [vmem:[%s1 + $0xa0] sm:$0xf]
      %v786 = vld [vmem:[%s1 + $0xa4] sm:$0xf]
      %v787 = vld [vmem:[%s1 + $0xa8] sm:$0xf]
      %v788 = vld [vmem:[%s1 + $0xac] sm:$0xf]
      %v789 = vld [vmem:[%s1 + $0xb0] sm:$0xf]
      %v790 = vld [vmem:[%s1 + $0xb4] sm:$0xf]
      %v791 = vld [vmem:[%s1 + $0xb8] sm:$0xf]
      %v792 = vld [vmem:[%s1 + $0xbc] sm:$0xf]
      %v793 = vld [vmem:[%s1 + $0xc0] sm:$0xf]
      %v794 = vld [vmem:[%s1 + $0xc4] sm:$0xf]
      %v795 = vld [vmem:[%s1 + $0xc8] sm:$0xf]
      %v796 = vld [vmem:[%s1 + $0xcc] sm:$0xf]
      %v797 = vld [vmem:[%s1 + $0xd0] sm:$0xf]
      %v798 = vld [vmem:[%s1 + $0xd4] sm:$0xf]
      %v799 = vld [vmem:[%s1 + $0xd8] sm:$0xf]
      %v800 = vld [vmem:[%s1 + $0xdc] sm:$0xf]
      %v801 = vld [vmem:[%s1 + $0xe0] sm:$0xf]
      %v802 = vld [vmem:[%s1 + $0xe4] sm:$0xf]
      %v803 = vld [vmem:[%s1 + $0xe8] sm:$0xf]
      %v804 = vld [vmem:[%s1 + $0xec] sm:$0xf]
      %v805 = vld [vmem:[%s1 + $0xf0] sm:$0xf]
      %v806 = vld [vmem:[%s1 + $0xf4] sm:$0xf]
      %v807 = vld [vmem:[%s1 + $0xf8] sm:$0xf]
      %v808 = vld [vmem:[%s1 + $0xfc] sm:$0xf]
      %v809 = vld [vmem:[%s1 + $0x100] sm:$0xf]
      %v810 = vld [vmem:[%s1 + $0x104] sm:$0xf]
      %v811 = vld [vmem:[%s1 + $0x108] sm:$0xf]
      %v812 = vld [vmem:[%s1 + $0x10c] sm:$0xf]
      %v813 = vld [vmem:[%s1 + $0x110] sm:$0xf]
      %v814 = vld [vmem:[%s1 + $0x114] sm:$0xf]
      %v815 = vld [vmem:[%s1 + $0x118] sm:$0xf]
      %v816 = vld [vmem:[%s1 + $0x11c] sm:$0xf]
      %v817 = vld [vmem:[%s1 + $0x120] sm:$0xf]
      %v818 = vld [vmem:[%s1 + $0x124] sm:$0xf]
      %v819 = vld [vmem:[%s1 + $0x128] sm:$0xf]
      %v820 = vld [vmem:[%s1 + $0x12c] sm:$0xf]
      %v821 = vld [vmem:[%s1 + $0x130] sm:$0xf]
      %v822 = vld [vmem:[%s1 + $0x134] sm:$0xf]
      %v823 = vld [vmem:[%s1 + $0x138] sm:$0xf]
      %v824 = vld [vmem:[%s1 + $0x13c] sm:$0xf]
      %v825 = vld [vmem:[%s1 + $0x140] sm:$0xf]
      %v826 = vld [vmem:[%s1 + $0x144] sm:$0xf]
      %v827 = vld [vmem:[%s1 + $0x148] sm:$0xf]
      %v828 = vld [vmem:[%s1 + $0x14c] sm:$0xf]
      %v829 = vld [vmem:[%s1 + $0x150] sm:$0xf]
      %v830 = vld [vmem:[%s1 + $0x154] sm:$0xf]
      %v831 = vld [vmem:[%s1 + $0x158] sm:$0xf]
      %v832 = vld [vmem:[%s1 + $0x15c] sm:$0xf]
      %v833 = vld [vmem:[%s1 + $0x160] sm:$0xf]
      %v834 = vld [vmem:[%s1 + $0x164] sm:$0xf]
      %v835 = vld [vmem:[%s1 + $0x168] sm:$0xf]
      %v836 = vld [vmem:[%s1 + $0x16c] sm:$0xf]
      %v837 = vld [vmem:[%s1 + $0x170] sm:$0xf]
      %v838 = vld [vmem:[%s1 + $0x174] sm:$0xf]
      %v839 = vld [vmem:[%s1 + $0x178] sm:$0xf]
      %v840 = vld [vmem:[%s1 + $0x17c] sm:$0xf]
      %v841 = vld [vmem:[%s1 + $0x180] sm:$0xf]
      %v842 = vld [vmem:[%s1 + $0x184] sm:$0xf]
      %v843 = vld [vmem:[%s1 + $0x188] sm:$0xf]
      %v844 = vld [vmem:[%s1 + $0x18c] sm:$0xf]
      %v845 = vld [vmem:[%s1 + $0x190] sm:$0xf]
      %v846 = vld [vmem:[%s1 + $0x194] sm:$0xf]
      %v847 = vld [vmem:[%s1 + $0x198] sm:$0xf]
      %v848 = vld [vmem:[%s1 + $0x19c] sm:$0xf]
      %v849 = vld [vmem:[%s1 + $0x1a0] sm:$0xf]
      %v850 = vld [vmem:[%s1 + $0x1a4] sm:$0xf]
      %v851 = vld [vmem:[%s1 + $0x1a8] sm:$0xf]
      %v852 = vld [vmem:[%s1 + $0x1ac] sm:$0xf]
      %v853 = vld [vmem:[%s1 + $0x1b0] sm:$0xf]
      %v854 = vld [vmem:[%s1 + $0x1b4] sm:$0xf]
      %v855 = vld [vmem:[%s1 + $0x1b8] sm:$0xf]
      %v856 = vld [vmem:[%s1 + $0x1bc] sm:$0xf]
      %v857 = vld [vmem:[%s1 + $0x1c0] sm:$0xf]
      %v858 = vld [vmem:[%s1 + $0x1c4] sm:$0xf]
      %v859 = vld [vmem:[%s1 + $0x1c8] sm:$0xf]
      %v860 = vld [vmem:[%s1 + $0x1cc] sm:$0xf]
      %v861 = vld [vmem:[%s1 + $0x1d0] sm:$0xf]
      %v862 = vld [vmem:[%s1 + $0x1d4] sm:$0xf]
      %v863 = vld [vmem:[%s1 + $0x1d8] sm:$0xf]
      %v864 = vld [vmem:[%s1 + $0x1dc] sm:$0xf]
      %v865 = vld [vmem:[%s1 + $0x1e0] sm:$0xf]
      %v866 = vld [vmem:[%s1 + $0x1e4] sm:$0xf]
      %v867 = vld [vmem:[%s1 + $0x1e8] sm:$0xf]
      %v868 = vld [vmem:[%s1 + $0x1ec] sm:$0xf]
      %v869 = vld [vmem:[%s1 + $0x1f0] sm:$0xf]
      %v870 = vld [vmem:[%s1 + $0x1f4] sm:$0xf]
      %v871 = vld [vmem:[%s1 + $0x1f8] sm:$0xf]
      %v872 = vld [vmem:[%s1 + $0x1fc] sm:$0xf]
      %v873 = vld [vmem:[%s1 + $0x200] sm:$0xf]
      %v874 = vld [vmem:[%s1 + $0x204] sm:$0xf]
      %v875 = vld [vmem:[%s1 + $0x208] sm:$0xf]
      %v876 = vld [vmem:[%s1 + $0x20c] sm:$0xf]
      %v877 = vld [vmem:[%s1 + $0x210] sm:$0xf]
      %v878 = vld [vmem:[%s1 + $0x214] sm:$0xf]
      %v879 = vld [vmem:[%s1 + $0x218] sm:$0xf]
      %v880 = vld [vmem:[%s1 + $0x21c] sm:$0xf]
      %v881 = vld [vmem:[%s1 + $0x220] sm:$0xf]
      %v882 = vld [vmem:[%s1 + $0x224] sm:$0xf]
      %v883 = vld [vmem:[%s1 + $0x228] sm:$0xf]
      %v884 = vld [vmem:[%s1 + $0x22c] sm:$0xf]
      %v885 = vld [vmem:[%s1 + $0x230] sm:$0xf]
      %v886 = vld [vmem:[%s1 + $0x234] sm:$0xf]
      %v887 = vld [vmem:[%s1 + $0x238] sm:$0xf]
      %v888 = vld [vmem:[%s1 + $0x23c] sm:$0xf]
      %v889 = vld [vmem:[%s2] sm:$0x1]
      %v891 = vlaneseq
      %v892 = vshrl.u32 %v891, 7
      %v893 = vsub.s32 0, %v892
      %v894 = vrot.slane %v889, %v893
      %v936 = vunpack.c.l.b16 %v705
      %v937 = vunpack.c.h.b16 %v705
      %v938 = vunpack.c.l.b16 %v706
      %v939 = vunpack.c.h.b16 %v706
      %v940 = vunpack.c.l.b16 %v707
      %v941 = vunpack.c.h.b16 %v707
      %v942 = vunpack.c.l.b16 %v708
      %v943 = vunpack.c.h.b16 %v708
      %v944 = vunpack.c.l.b16 %v709
      %v945 = vunpack.c.l.b16 %v710
      %v946 = vunpack.c.h.b16 %v710
      %v947 = vunpack.c.l.b16 %v711
      %v948 = vunpack.c.h.b16 %v711
      %v949 = vunpack.c.l.b16 %v712
      %v950 = vunpack.c.h.b16 %v712
      %v951 = vunpack.c.l.b16 %v713
      %v952 = vunpack.c.h.b16 %v713
      %v953 = vunpack.c.l.b16 %v714
      %v954 = vunpack.c.l.b16 %v715
      %v955 = vunpack.c.h.b16 %v715
      %v956 = vunpack.c.l.b16 %v716
      %v957 = vunpack.c.h.b16 %v716
      %v958 = vunpack.c.l.b16 %v717
      %v959 = vunpack.c.h.b16 %v717
      %v960 = vunpack.c.l.b16 %v718
      %v961 = vunpack.c.h.b16 %v718
      %v962 = vunpack.c.l.b16 %v719
      %v963 = vunpack.c.l.b16 %v720
      %v964 = vunpack.c.h.b16 %v720
      %v965 = vunpack.c.l.b16 %v721
      %v966 = vunpack.c.h.b16 %v721
      %v967 = vunpack.c.l.b16 %v722
      %v968 = vunpack.c.h.b16 %v722
      %v969 = vunpack.c.l.b16 %v723
      %v970 = vunpack.c.h.b16 %v723
      %v971 = vunpack.c.l.b16 %v724
      %v972 = vunpack.c.l.b16 %v725
      %v973 = vunpack.c.h.b16 %v725
      %v974 = vunpack.c.l.b16 %v726
      %v975 = vunpack.c.h.b16 %v726
      %v976 = vunpack.c.l.b16 %v727
      %v977 = vunpack.c.h.b16 %v727
      %v978 = vunpack.c.l.b16 %v728
      %v979 = vunpack.c.h.b16 %v728
      %v980 = vunpack.c.l.b16 %v729
      %v981 = vunpack.c.l.b16 %v730
      %v982 = vunpack.c.h.b16 %v730
      %v983 = vunpack.c.l.b16 %v731
      %v984 = vunpack.c.h.b16 %v731
      %v985 = vunpack.c.l.b16 %v732
      %v986 = vunpack.c.h.b16 %v732
      %v987 = vunpack.c.l.b16 %v733
      %v988 = vunpack.c.h.b16 %v733
      %v989 = vunpack.c.l.b16 %v734
      %v990 = vunpack.c.l.b16 %v735
      %v991 = vunpack.c.h.b16 %v735
      %v992 = vunpack.c.l.b16 %v736
      %v993 = vunpack.c.h.b16 %v736
      %v994 = vunpack.c.l.b16 %v737
      %v995 = vunpack.c.h.b16 %v737
      %v996 = vunpack.c.l.b16 %v738
      %v997 = vunpack.c.h.b16 %v738
      %v998 = vunpack.c.l.b16 %v739
      %v999 = vunpack.c.l.b16 %v740
      %v1000 = vunpack.c.h.b16 %v740
      %v1001 = vunpack.c.l.b16 %v741
      %v1002 = vunpack.c.h.b16 %v741
      %v1003 = vunpack.c.l.b16 %v742
      %v1004 = vunpack.c.h.b16 %v742
      %v1005 = vunpack.c.l.b16 %v743
      %v1006 = vunpack.c.h.b16 %v743
      %v1007 = vunpack.c.l.b16 %v744
      %v1008 = vpack.c.b16 %v945, %v936
      %v1009 = vpack.c.b16 %v946, %v937
      %v1010 = vpack.c.b16 %v947, %v938
      %v1011 = vpack.c.b16 %v948, %v939
      %v1012 = vpack.c.b16 %v949, %v940
      %v1013 = vpack.c.b16 %v950, %v941
      %v1014 = vpack.c.b16 %v951, %v942
      %v1015 = vpack.c.b16 %v952, %v943
      %v1016 = vpack.c.b16 %v953, %v944
      %v1017 = vpack.c.b16 %v963, %v954
      %v1018 = vpack.c.b16 %v964, %v955
      %v1019 = vpack.c.b16 %v965, %v956
      %v1020 = vpack.c.b16 %v966, %v957
      %v1021 = vpack.c.b16 %v967, %v958
      %v1022 = vpack.c.b16 %v968, %v959
      %v1023 = vpack.c.b16 %v969, %v960
      %v1024 = vpack.c.b16 %v970, %v961
      %v1025 = vpack.c.b16 %v971, %v962
      %v1026 = vpack.c.b16 %v981, %v972
      %v1027 = vpack.c.b16 %v982, %v973
      %v1028 = vpack.c.b16 %v983, %v974
      %v1029 = vpack.c.b16 %v984, %v975
      %v1030 = vpack.c.b16 %v985, %v976
      %v1031 = vpack.c.b16 %v986, %v977
      %v1032 = vpack.c.b16 %v987, %v978
      %v1033 = vpack.c.b16 %v988, %v979
      %v1034 = vpack.c.b16 %v989, %v980
      %v1035 = vpack.c.b16 %v999, %v990
      %v1036 = vpack.c.b16 %v1000, %v991
      %v1037 = vpack.c.b16 %v1001, %v992
      %v1038 = vpack.c.b16 %v1002, %v993
      %v1039 = vpack.c.b16 %v1003, %v994
      %v1040 = vpack.c.b16 %v1004, %v995
      %v1041 = vpack.c.b16 %v1005, %v996
      %v1042 = vpack.c.b16 %v1006, %v997
      %v1043 = vpack.c.b16 %v1007, %v998
      %v1224 = vunpack.c.l.b16 %v745
      %v1225 = vunpack.c.l.b16 %v746
      %v1226 = vunpack.c.l.b16 %v747
      %v1227 = vunpack.c.l.b16 %v748
      %v1228 = vunpack.c.l.b16 %v749
      %v1229 = vunpack.c.l.b16 %v750
      %v1230 = vunpack.c.l.b16 %v751
      %v1231 = vunpack.c.l.b16 %v752
      %v1232 = vunpack.c.l.b16 %v753
      %v1233 = vunpack.c.l.b16 %v754
      %v1234 = vunpack.c.l.b16 %v755
      %v1235 = vunpack.c.l.b16 %v756
      %v1236 = vunpack.c.l.b16 %v757
      %v1237 = vunpack.c.l.b16 %v758
      %v1238 = vunpack.c.l.b16 %v759
      %v1239 = vunpack.c.l.b16 %v760
      %v1240 = vunpack.c.l.b16 %v761
      %v1241 = vunpack.c.l.b16 %v762
      %v1242 = vunpack.c.l.b16 %v763
      %v1243 = vunpack.c.l.b16 %v764
      %v1244 = vunpack.c.l.b16 %v765
      %v1245 = vunpack.c.l.b16 %v766
      %v1246 = vunpack.c.l.b16 %v767
      %v1247 = vunpack.c.l.b16 %v768
      %v1248 = vunpack.c.l.b16 %v769
      %v1249 = vunpack.c.l.b16 %v770
      %v1250 = vunpack.c.l.b16 %v771
      %v1251 = vunpack.c.l.b16 %v772
      %v1252 = vunpack.c.l.b16 %v773
      %v1253 = vunpack.c.l.b16 %v774
      %v1254 = vunpack.c.l.b16 %v775
      %v1255 = vunpack.c.l.b16 %v776
      %v1256 = vunpack.c.l.b16 %v777
      %v1257 = vunpack.c.l.b16 %v778
      %v1258 = vunpack.c.l.b16 %v779
      %v1259 = vunpack.c.l.b16 %v780
      %v1260 = vunpack.c.l.b16 %v781
      %v1261 = vunpack.c.l.b16 %v782
      %v1262 = vunpack.c.l.b16 %v783
      %v1263 = vunpack.c.l.b16 %v784
      %v1264 = vunpack.c.l.b16 %v785
      %v1265 = vunpack.c.l.b16 %v786
      %v1266 = vunpack.c.l.b16 %v787
      %v1267 = vunpack.c.l.b16 %v788
      %v1268 = vunpack.c.l.b16 %v789
      %v1269 = vunpack.c.l.b16 %v790
      %v1270 = vunpack.c.l.b16 %v791
      %v1271 = vunpack.c.l.b16 %v792
      %v1272 = vunpack.c.l.b16 %v793
      %v1273 = vunpack.c.l.b16 %v794
      %v1274 = vunpack.c.l.b16 %v795
      %v1275 = vunpack.c.l.b16 %v796
      %v1276 = vunpack.c.l.b16 %v797
      %v1277 = vunpack.c.l.b16 %v798
      %v1278 = vunpack.c.l.b16 %v799
      %v1279 = vunpack.c.l.b16 %v800
      %v1280 = vunpack.c.l.b16 %v801
      %v1281 = vunpack.c.l.b16 %v802
      %v1282 = vunpack.c.l.b16 %v803
      %v1283 = vunpack.c.l.b16 %v804
      %v1284 = vunpack.c.l.b16 %v805
      %v1285 = vunpack.c.l.b16 %v806
      %v1286 = vunpack.c.l.b16 %v807
      %v1287 = vunpack.c.l.b16 %v808
      %v1288 = vunpack.c.l.b16 %v809
      %v1289 = vunpack.c.l.b16 %v810
      %v1290 = vunpack.c.l.b16 %v811
      %v1291 = vunpack.c.l.b16 %v812
      %v1292 = vunpack.c.l.b16 %v813
      %v1293 = vunpack.c.l.b16 %v814
      %v1294 = vunpack.c.l.b16 %v815
      %v1295 = vunpack.c.l.b16 %v816
      %v1296 = vunpack.c.l.b16 %v817
      %v1297 = vunpack.c.l.b16 %v818
      %v1298 = vunpack.c.l.b16 %v819
      %v1299 = vunpack.c.l.b16 %v820
      %v1300 = vunpack.c.l.b16 %v821
      %v1301 = vunpack.c.l.b16 %v822
      %v1302 = vunpack.c.l.b16 %v823
      %v1303 = vunpack.c.l.b16 %v824
      %v1304 = vunpack.c.l.b16 %v825
      %v1305 = vunpack.c.l.b16 %v826
      %v1306 = vunpack.c.l.b16 %v827
      %v1307 = vunpack.c.l.b16 %v828
      %v1308 = vunpack.c.l.b16 %v829
      %v1309 = vunpack.c.l.b16 %v830
      %v1310 = vunpack.c.l.b16 %v831
      %v1311 = vunpack.c.l.b16 %v832
      %v1312 = vunpack.c.l.b16 %v833
      %v1313 = vunpack.c.l.b16 %v834
      %v1314 = vunpack.c.l.b16 %v835
      %v1315 = vunpack.c.l.b16 %v836
      %v1316 = vunpack.c.l.b16 %v837
      %v1317 = vunpack.c.l.b16 %v838
      %v1318 = vunpack.c.l.b16 %v839
      %v1319 = vunpack.c.l.b16 %v840
      %v1320 = vunpack.c.l.b16 %v841
      %v1321 = vunpack.c.l.b16 %v842
      %v1322 = vunpack.c.l.b16 %v843
      %v1323 = vunpack.c.l.b16 %v844
      %v1324 = vunpack.c.l.b16 %v845
      %v1325 = vunpack.c.l.b16 %v846
      %v1326 = vunpack.c.l.b16 %v847
      %v1327 = vunpack.c.l.b16 %v848
      %v1328 = vunpack.c.l.b16 %v849
      %v1329 = vunpack.c.l.b16 %v850
      %v1330 = vunpack.c.l.b16 %v851
      %v1331 = vunpack.c.l.b16 %v852
      %v1332 = vunpack.c.l.b16 %v853
      %v1333 = vunpack.c.l.b16 %v854
      %v1334 = vunpack.c.l.b16 %v855
      %v1335 = vunpack.c.l.b16 %v856
      %v1336 = vunpack.c.l.b16 %v857
      %v1337 = vunpack.c.l.b16 %v858
      %v1338 = vunpack.c.l.b16 %v859
      %v1339 = vunpack.c.l.b16 %v860
      %v1340 = vunpack.c.l.b16 %v861
      %v1341 = vunpack.c.l.b16 %v862
      %v1342 = vunpack.c.l.b16 %v863
      %v1343 = vunpack.c.l.b16 %v864
      %v1344 = vunpack.c.l.b16 %v865
      %v1345 = vunpack.c.l.b16 %v866
      %v1346 = vunpack.c.l.b16 %v867
      %v1347 = vunpack.c.l.b16 %v868
      %v1348 = vunpack.c.l.b16 %v869
      %v1349 = vunpack.c.l.b16 %v870
      %v1350 = vunpack.c.l.b16 %v871
      %v1351 = vunpack.c.l.b16 %v872
      %v1352 = vunpack.c.l.b16 %v873
      %v1353 = vunpack.c.l.b16 %v874
      %v1354 = vunpack.c.l.b16 %v875
      %v1355 = vunpack.c.l.b16 %v876
      %v1356 = vunpack.c.l.b16 %v877
      %v1357 = vunpack.c.l.b16 %v878
      %v1358 = vunpack.c.l.b16 %v879
      %v1359 = vunpack.c.l.b16 %v880
      %v1360 = vunpack.c.l.b16 %v881
      %v1361 = vunpack.c.l.b16 %v882
      %v1362 = vunpack.c.l.b16 %v883
      %v1363 = vunpack.c.l.b16 %v884
      %v1364 = vunpack.c.l.b16 %v885
      %v1365 = vunpack.c.l.b16 %v886
      %v1366 = vunpack.c.l.b16 %v887
      %v1367 = vunpack.c.l.b16 %v888
      %v1368 = vpack.c.b16 %v1225, %v1224
      %v1369 = vpack.c.b16 %v1227, %v1226
      %v1370 = vpack.c.b16 %v1229, %v1228
      %v1371 = vpack.c.b16 %v1231, %v1230
      %v1372 = vpack.c.b16 %v1233, %v1232
      %v1373 = vpack.c.b16 %v1235, %v1234
      %v1374 = vpack.c.b16 %v1237, %v1236
      %v1375 = vpack.c.b16 %v1239, %v1238
      %v1376 = vpack.c.b16 %v1241, %v1240
      %v1377 = vpack.c.b16 %v1243, %v1242
      %v1378 = vpack.c.b16 %v1245, %v1244
      %v1379 = vpack.c.b16 %v1247, %v1246
      %v1380 = vpack.c.b16 %v1249, %v1248
      %v1381 = vpack.c.b16 %v1251, %v1250
      %v1382 = vpack.c.b16 %v1253, %v1252
      %v1383 = vpack.c.b16 %v1255, %v1254
      %v1384 = vpack.c.b16 %v1257, %v1256
      %v1385 = vpack.c.b16 %v1259, %v1258
      %v1386 = vpack.c.b16 %v1261, %v1260
      %v1387 = vpack.c.b16 %v1263, %v1262
      %v1388 = vpack.c.b16 %v1265, %v1264
      %v1389 = vpack.c.b16 %v1267, %v1266
      %v1390 = vpack.c.b16 %v1269, %v1268
      %v1391 = vpack.c.b16 %v1271, %v1270
      %v1392 = vpack.c.b16 %v1273, %v1272
      %v1393 = vpack.c.b16 %v1275, %v1274
      %v1394 = vpack.c.b16 %v1277, %v1276
      %v1395 = vpack.c.b16 %v1279, %v1278
      %v1396 = vpack.c.b16 %v1281, %v1280
      %v1397 = vpack.c.b16 %v1283, %v1282
      %v1398 = vpack.c.b16 %v1285, %v1284
      %v1399 = vpack.c.b16 %v1287, %v1286
      %v1400 = vpack.c.b16 %v1289, %v1288
      %v1401 = vpack.c.b16 %v1291, %v1290
      %v1402 = vpack.c.b16 %v1293, %v1292
      %v1403 = vpack.c.b16 %v1295, %v1294
      %v1404 = vpack.c.b16 %v1297, %v1296
      %v1405 = vpack.c.b16 %v1299, %v1298
      %v1406 = vpack.c.b16 %v1301, %v1300
      %v1407 = vpack.c.b16 %v1303, %v1302
      %v1408 = vpack.c.b16 %v1305, %v1304
      %v1409 = vpack.c.b16 %v1307, %v1306
      %v1410 = vpack.c.b16 %v1309, %v1308
      %v1411 = vpack.c.b16 %v1311, %v1310
      %v1412 = vpack.c.b16 %v1313, %v1312
      %v1413 = vpack.c.b16 %v1315, %v1314
      %v1414 = vpack.c.b16 %v1317, %v1316
      %v1415 = vpack.c.b16 %v1319, %v1318
      %v1416 = vpack.c.b16 %v1321, %v1320
      %v1417 = vpack.c.b16 %v1323, %v1322
      %v1418 = vpack.c.b16 %v1325, %v1324
      %v1419 = vpack.c.b16 %v1327, %v1326
      %v1420 = vpack.c.b16 %v1329, %v1328
      %v1421 = vpack.c.b16 %v1331, %v1330
      %v1422 = vpack.c.b16 %v1333, %v1332
      %v1423 = vpack.c.b16 %v1335, %v1334
      %v1424 = vpack.c.b16 %v1337, %v1336
      %v1425 = vpack.c.b16 %v1339, %v1338
      %v1426 = vpack.c.b16 %v1341, %v1340
      %v1427 = vpack.c.b16 %v1343, %v1342
      %v1428 = vpack.c.b16 %v1345, %v1344
      %v1429 = vpack.c.b16 %v1347, %v1346
      %v1430 = vpack.c.b16 %v1349, %v1348
      %v1431 = vpack.c.b16 %v1351, %v1350
      %v1432 = vpack.c.b16 %v1353, %v1352
      %v1433 = vpack.c.b16 %v1355, %v1354
      %v1434 = vpack.c.b16 %v1357, %v1356
      %v1435 = vpack.c.b16 %v1359, %v1358
      %v1436 = vpack.c.b16 %v1361, %v1360
      %v1437 = vpack.c.b16 %v1363, %v1362
      %v1438 = vpack.c.b16 %v1365, %v1364
      %v1439 = vpack.c.b16 %v1367, %v1366
      %1512 = vmatprep.subr.bf16.mxu0 0
      %1513 = vmatpush1.bf16.msra.mxu0 %v1375
      %1514 = vmatprep.subr.bf16.mxu0 0
      %1515 = vmatpush1.bf16.msra.mxu0 %v1374
      %1516 = vmatprep.subr.bf16.mxu0 0
      %1517 = vmatpush1.bf16.msra.mxu0 %v1373
      %1518 = vmatprep.subr.bf16.mxu0 0
      %1519 = vmatpush1.bf16.msra.mxu0 %v1372
      %1520 = vmatprep.subr.bf16.mxu0 0
      %1521 = vmatpush1.bf16.msra.mxu0 %v1371
      %1522 = vmatprep.subr.bf16.mxu0 0
      %1523 = vmatpush1.bf16.msra.mxu0 %v1370
      %1524 = vmatprep.subr.bf16.mxu0 0
      %1525 = vmatpush1.bf16.msra.mxu0 %v1369
      %1526 = vmatprep.subr.bf16.mxu0 0
      %1527 = vmatpush1.bf16.msra.mxu0 %v1368
      %1528 = vmatprep.subr.bf16.mxu0 0
      %1529 = vmatpush2.bf16.msra.mxu0 %v1383
      %1530 = vmatprep.subr.bf16.mxu0 0
      %1531 = vmatpush2.bf16.msra.mxu0 %v1382
      %1532 = vmatprep.subr.bf16.mxu0 0
      %1533 = vmatpush2.bf16.msra.mxu0 %v1381
      %1534 = vmatprep.subr.bf16.mxu0 0
      %1535 = vmatpush2.bf16.msra.mxu0 %v1380
      %1536 = vmatprep.subr.bf16.mxu0 0
      %1537 = vmatpush2.bf16.msra.mxu0 %v1379
      %1538 = vmatprep.subr.bf16.mxu0 0
      %1539 = vmatpush2.bf16.msra.mxu0 %v1378
      %1540 = vmatprep.subr.bf16.mxu0 0
      %1541 = vmatpush2.bf16.msra.mxu0 %v1377
      %1542 = vmatprep.subr.bf16.mxu0 0
      %1543 = vmatpush2.bf16.msra.mxu0 %v1376
      %1544 = vmatprep.mubr.bf16.mxu0 %v1009
      %1545 = vmatmul.mubr.bf16.gmra.mxu0 %v1008
      %v1546 = vpop.f32.mrf.mxu0
      %v1547 = vadd.f32 %v894, %v1546
      %v1548 = vpop.f32.mrf.mxu0
      %v1549 = vpop.f32.mrf.mxu0
      %v1550 = vadd.f32 %v894, %v1549
      %v1551 = vpop.f32.mrf.mxu0
      %1552 = vmatprep.mubr.bf16.mxu0 %v1018
      %1553 = vmatmul.mubr.bf16.gmra.mxu0 %v1017
      %v1554 = vpop.f32.mrf.mxu0
      %v1555 = vadd.f32 %v894, %v1554
      %v1556 = vpop.f32.mrf.mxu0
      %v1557 = vpop.f32.mrf.mxu0
      %v1558 = vadd.f32 %v894, %v1557
      %v1559 = vpop.f32.mrf.mxu0
      %1560 = vmatprep.mubr.bf16.mxu0 %v1027
      %1561 = vmatmul.mubr.bf16.gmra.mxu0 %v1026
      %v1562 = vpop.f32.mrf.mxu0
      %v1563 = vadd.f32 %v894, %v1562
      %v1564 = vpop.f32.mrf.mxu0
      %v1565 = vpop.f32.mrf.mxu0
      %v1566 = vadd.f32 %v894, %v1565
      %v1567 = vpop.f32.mrf.mxu0
      %1568 = vmatprep.mubr.bf16.mxu0 %v1036
      %1569 = vmatmul.mubr.bf16.gmra.mxu0 %v1035
      %v1570 = vpop.f32.mrf.mxu0
      %v1571 = vadd.f32 %v894, %v1570
      %v1572 = vpop.f32.mrf.mxu0
      %v1573 = vpop.f32.mrf.mxu0
      %v1574 = vadd.f32 %v894, %v1573
      %v1575 = vpop.f32.mrf.mxu0
      %1576 = vdwg.mxu0
      %1577 = vmatprep.subr.bf16.mxu0 0
      %1578 = vmatpush1.bf16.msra.mxu0 %v1391
      %1579 = vmatprep.subr.bf16.mxu0 0
      %1580 = vmatpush1.bf16.msra.mxu0 %v1390
      %1581 = vmatprep.subr.bf16.mxu0 0
      %1582 = vmatpush1.bf16.msra.mxu0 %v1389
      %1583 = vmatprep.subr.bf16.mxu0 0
      %1584 = vmatpush1.bf16.msra.mxu0 %v1388
      %1585 = vmatprep.subr.bf16.mxu0 0
      %1586 = vmatpush1.bf16.msra.mxu0 %v1387
      %1587 = vmatprep.subr.bf16.mxu0 0
      %1588 = vmatpush1.bf16.msra.mxu0 %v1386
      %1589 = vmatprep.subr.bf16.mxu0 0
      %1590 = vmatpush1.bf16.msra.mxu0 %v1385
      %1591 = vmatprep.subr.bf16.mxu0 0
      %1592 = vmatpush1.bf16.msra.mxu0 %v1384
      %1593 = vmatprep.subr.bf16.mxu0 0
      %1594 = vmatpush2.bf16.msra.mxu0 %v1399
      %1595 = vmatprep.subr.bf16.mxu0 0
      %1596 = vmatpush2.bf16.msra.mxu0 %v1398
      %1597 = vmatprep.subr.bf16.mxu0 0
      %1598 = vmatpush2.bf16.msra.mxu0 %v1397
      %1599 = vmatprep.subr.bf16.mxu0 0
      %1600 = vmatpush2.bf16.msra.mxu0 %v1396
      %1601 = vmatprep.subr.bf16.mxu0 0
      %1602 = vmatpush2.bf16.msra.mxu0 %v1395
      %1603 = vmatprep.subr.bf16.mxu0 0
      %1604 = vmatpush2.bf16.msra.mxu0 %v1394
      %1605 = vmatprep.subr.bf16.mxu0 0
      %1606 = vmatpush2.bf16.msra.mxu0 %v1393
      %1607 = vmatprep.subr.bf16.mxu0 0
      %1608 = vmatpush2.bf16.msra.mxu0 %v1392
      %1609 = vmatprep.mubr.bf16.mxu0 %v1011
      %1610 = vmatmul.mubr.bf16.gmra.mxu0 %v1010
      %v1611 = vpop.f32.mrf.mxu0
      %v1612 = vadd.f32 %v1547, %v1611
      %v1613 = vpop.f32.mrf.mxu0
      %v1614 = vpop.f32.mrf.mxu0
      %v1615 = vadd.f32 %v1550, %v1614
      %v1616 = vpop.f32.mrf.mxu0
      %1617 = vmatprep.mubr.bf16.mxu0 %v1020
      %1618 = vmatmul.mubr.bf16.gmra.mxu0 %v1019
      %v1619 = vpop.f32.mrf.mxu0
      %v1620 = vadd.f32 %v1555, %v1619
      %v1621 = vpop.f32.mrf.mxu0
      %v1622 = vpop.f32.mrf.mxu0
      %v1623 = vadd.f32 %v1558, %v1622
      %v1624 = vpop.f32.mrf.mxu0
      %1625 = vmatprep.mubr.bf16.mxu0 %v1029
      %1626 = vmatmul.mubr.bf16.gmra.mxu0 %v1028
      %v1627 = vpop.f32.mrf.mxu0
      %v1628 = vadd.f32 %v1563, %v1627
      %v1629 = vpop.f32.mrf.mxu0
      %v1630 = vpop.f32.mrf.mxu0
      %v1631 = vadd.f32 %v1566, %v1630
      %v1632 = vpop.f32.mrf.mxu0
      %1633 = vmatprep.mubr.bf16.mxu0 %v1038
      %1634 = vmatmul.mubr.bf16.gmra.mxu0 %v1037
      %v1635 = vpop.f32.mrf.mxu0
      %v1636 = vadd.f32 %v1571, %v1635
      %v1637 = vpop.f32.mrf.mxu0
      %v1638 = vpop.f32.mrf.mxu0
      %v1639 = vadd.f32 %v1574, %v1638
      %v1640 = vpop.f32.mrf.mxu0
      %1641 = vdwg.mxu0
      %1642 = vmatprep.subr.bf16.mxu0 0
      %1643 = vmatpush1.bf16.msra.mxu0 %v1407
      %1644 = vmatprep.subr.bf16.mxu0 0
      %1645 = vmatpush1.bf16.msra.mxu0 %v1406
      %1646 = vmatprep.subr.bf16.mxu0 0
      %1647 = vmatpush1.bf16.msra.mxu0 %v1405
      %1648 = vmatprep.subr.bf16.mxu0 0
      %1649 = vmatpush1.bf16.msra.mxu0 %v1404
      %1650 = vmatprep.subr.bf16.mxu0 0
      %1651 = vmatpush1.bf16.msra.mxu0 %v1403
      %1652 = vmatprep.subr.bf16.mxu0 0
      %1653 = vmatpush1.bf16.msra.mxu0 %v1402
      %1654 = vmatprep.subr.bf16.mxu0 0
      %1655 = vmatpush1.bf16.msra.mxu0 %v1401
      %1656 = vmatprep.subr.bf16.mxu0 0
      %1657 = vmatpush1.bf16.msra.mxu0 %v1400
      %1658 = vmatprep.subr.bf16.mxu0 0
      %1659 = vmatpush2.bf16.msra.mxu0 %v1415
      %1660 = vmatprep.subr.bf16.mxu0 0
      %1661 = vmatpush2.bf16.msra.mxu0 %v1414
      %1662 = vmatprep.subr.bf16.mxu0 0
      %1663 = vmatpush2.bf16.msra.mxu0 %v1413
      %1664 = vmatprep.subr.bf16.mxu0 0
      %1665 = vmatpush2.bf16.msra.mxu0 %v1412
      %1666 = vmatprep.subr.bf16.mxu0 0
      %1667 = vmatpush2.bf16.msra.mxu0 %v1411
      %1668 = vmatprep.subr.bf16.mxu0 0
      %1669 = vmatpush2.bf16.msra.mxu0 %v1410
      %1670 = vmatprep.subr.bf16.mxu0 0
      %1671 = vmatpush2.bf16.msra.mxu0 %v1409
      %1672 = vmatprep.subr.bf16.mxu0 0
      %1673 = vmatpush2.bf16.msra.mxu0 %v1408
      %1674 = vmatprep.mubr.bf16.mxu0 %v1013
      %1675 = vmatmul.mubr.bf16.gmra.mxu0 %v1012
      %v1676 = vpop.f32.mrf.mxu0
      %v1677 = vadd.f32 %v1612, %v1676
      %v1678 = vpop.f32.mrf.mxu0
      %v1679 = vpop.f32.mrf.mxu0
      %v1680 = vadd.f32 %v1615, %v1679
      %v1681 = vpop.f32.mrf.mxu0
      %1682 = vmatprep.mubr.bf16.mxu0 %v1022
      %1683 = vmatmul.mubr.bf16.gmra.mxu0 %v1021
      %v1684 = vpop.f32.mrf.mxu0
      %v1685 = vadd.f32 %v1620, %v1684
      %v1686 = vpop.f32.mrf.mxu0
      %v1687 = vpop.f32.mrf.mxu0
      %v1688 = vadd.f32 %v1623, %v1687
      %v1689 = vpop.f32.mrf.mxu0
      %1690 = vmatprep.mubr.bf16.mxu0 %v1031
      %1691 = vmatmul.mubr.bf16.gmra.mxu0 %v1030
      %v1692 = vpop.f32.mrf.mxu0
      %v1693 = vadd.f32 %v1628, %v1692
      %v1694 = vpop.f32.mrf.mxu0
      %v1695 = vpop.f32.mrf.mxu0
      %v1696 = vadd.f32 %v1631, %v1695
      %v1697 = vpop.f32.mrf.mxu0
      %1698 = vmatprep.mubr.bf16.mxu0 %v1040
      %1699 = vmatmul.mubr.bf16.gmra.mxu0 %v1039
      %v1700 = vpop.f32.mrf.mxu0
      %v1701 = vadd.f32 %v1636, %v1700
      %v1702 = vpop.f32.mrf.mxu0
      %v1703 = vpop.f32.mrf.mxu0
      %v1704 = vadd.f32 %v1639, %v1703
      %v1705 = vpop.f32.mrf.mxu0
      %1706 = vdwg.mxu0
      %1707 = vmatprep.subr.bf16.mxu0 0
      %1708 = vmatpush1.bf16.msra.mxu0 %v1423
      %1709 = vmatprep.subr.bf16.mxu0 0
      %1710 = vmatpush1.bf16.msra.mxu0 %v1422
      %1711 = vmatprep.subr.bf16.mxu0 0
      %1712 = vmatpush1.bf16.msra.mxu0 %v1421
      %1713 = vmatprep.subr.bf16.mxu0 0
      %1714 = vmatpush1.bf16.msra.mxu0 %v1420
      %1715 = vmatprep.subr.bf16.mxu0 0
      %1716 = vmatpush1.bf16.msra.mxu0 %v1419
      %1717 = vmatprep.subr.bf16.mxu0 0
      %1718 = vmatpush1.bf16.msra.mxu0 %v1418
      %1719 = vmatprep.subr.bf16.mxu0 0
      %1720 = vmatpush1.bf16.msra.mxu0 %v1417
      %1721 = vmatprep.subr.bf16.mxu0 0
      %1722 = vmatpush1.bf16.msra.mxu0 %v1416
      %1723 = vmatprep.subr.bf16.mxu0 0
      %1724 = vmatpush2.bf16.msra.mxu0 %v1431
      %1725 = vmatprep.subr.bf16.mxu0 0
      %1726 = vmatpush2.bf16.msra.mxu0 %v1430
      %1727 = vmatprep.subr.bf16.mxu0 0
      %1728 = vmatpush2.bf16.msra.mxu0 %v1429
      %1729 = vmatprep.subr.bf16.mxu0 0
      %1730 = vmatpush2.bf16.msra.mxu0 %v1428
      %1731 = vmatprep.subr.bf16.mxu0 0
      %1732 = vmatpush2.bf16.msra.mxu0 %v1427
      %1733 = vmatprep.subr.bf16.mxu0 0
      %1734 = vmatpush2.bf16.msra.mxu0 %v1426
      %1735 = vmatprep.subr.bf16.mxu0 0
      %1736 = vmatpush2.bf16.msra.mxu0 %v1425
      %1737 = vmatprep.subr.bf16.mxu0 0
      %1738 = vmatpush2.bf16.msra.mxu0 %v1424
      %1739 = vmatprep.mubr.bf16.mxu0 %v1015
      %1740 = vmatmul.mubr.bf16.gmra.mxu0 %v1014
      %v1741 = vpop.f32.mrf.mxu0
      %v1742 = vadd.f32 %v1677, %v1741
      %v1743 = vpop.f32.mrf.mxu0
      %v1744 = vpop.f32.mrf.mxu0
      %v1745 = vadd.f32 %v1680, %v1744
      %v1746 = vpop.f32.mrf.mxu0
      %1747 = vmatprep.mubr.bf16.mxu0 %v1024
      %1748 = vmatmul.mubr.bf16.gmra.mxu0 %v1023
      %v1749 = vpop.f32.mrf.mxu0
      %v1750 = vadd.f32 %v1685, %v1749
      %v1751 = vpop.f32.mrf.mxu0
      %v1752 = vpop.f32.mrf.mxu0
      %v1753 = vadd.f32 %v1688, %v1752
      %v1754 = vpop.f32.mrf.mxu0
      %1755 = vmatprep.mubr.bf16.mxu0 %v1033
      %1756 = vmatmul.mubr.bf16.gmra.mxu0 %v1032
      %v1757 = vpop.f32.mrf.mxu0
      %v1758 = vadd.f32 %v1693, %v1757
      %v1759 = vpop.f32.mrf.mxu0
      %v1760 = vpop.f32.mrf.mxu0
      %v1761 = vadd.f32 %v1696, %v1760
      %v1762 = vpop.f32.mrf.mxu0
      %1763 = vmatprep.mubr.bf16.mxu0 %v1042
      %1764 = vmatmul.mubr.bf16.gmra.mxu0 %v1041
      %v1765 = vpop.f32.mrf.mxu0
      %v1766 = vadd.f32 %v1701, %v1765
      %v1767 = vpop.f32.mrf.mxu0
      %v1768 = vpop.f32.mrf.mxu0
      %v1769 = vadd.f32 %v1704, %v1768
      %v1770 = vpop.f32.mrf.mxu0
      %1771 = vdwg.mxu0
      %1772 = vmatprep.subr.bf16.mxu0 0
      %1773 = vmatpush1.bf16.msra.mxu0 %v1439
      %1774 = vmatprep.subr.bf16.mxu0 0
      %1775 = vmatpush1.bf16.msra.mxu0 %v1438
      %1776 = vmatprep.subr.bf16.mxu0 0
      %1777 = vmatpush1.bf16.msra.mxu0 %v1437
      %1778 = vmatprep.subr.bf16.mxu0 0
      %1779 = vmatpush1.bf16.msra.mxu0 %v1436
      %1780 = vmatprep.subr.bf16.mxu0 0
      %1781 = vmatpush1.bf16.msra.mxu0 %v1435
      %1782 = vmatprep.subr.bf16.mxu0 0
      %1783 = vmatpush1.bf16.msra.mxu0 %v1434
      %1784 = vmatprep.subr.bf16.mxu0 0
      %1785 = vmatpush1.bf16.msra.mxu0 %v1433
      %1786 = vmatprep.subr.bf16.mxu0 0
      %1787 = vmatpush1.bf16.msra.mxu0 %v1432
      %1788 = vmatprep.subr.bf16.mxu0 0
      %1789 = vmatpush2.bf16.msra.mxu0 0
      %1790 = vmatprep.subr.bf16.mxu0 0
      %1791 = vmatpush2.bf16.msra.mxu0 0
      %1792 = vmatprep.subr.bf16.mxu0 0
      %1793 = vmatpush2.bf16.msra.mxu0 0
      %1794 = vmatprep.subr.bf16.mxu0 0
      %1795 = vmatpush2.bf16.msra.mxu0 0
      %1796 = vmatprep.subr.bf16.mxu0 0
      %1797 = vmatpush2.bf16.msra.mxu0 0
      %1798 = vmatprep.subr.bf16.mxu0 0
      %1799 = vmatpush2.bf16.msra.mxu0 0
      %1800 = vmatprep.subr.bf16.mxu0 0
      %1801 = vmatpush2.bf16.msra.mxu0 0
      %1802 = vmatprep.subr.bf16.mxu0 0
      %1803 = vmatpush2.bf16.msra.mxu0 0
      %1804 = vmatprep.mubr.bf16.mxu0 0
      %1805 = vmatmul.mubr.bf16.gmra.mxu0 %v1016
      %v1806 = vpop.f32.mrf.mxu0
      %v1807 = vadd.f32 %v1742, %v1806
      %v1808 = vpop.f32.mrf.mxu0
      %v1809 = vpop.f32.mrf.mxu0
      %v1810 = vadd.f32 %v1745, %v1809
      %v1811 = vpop.f32.mrf.mxu0
      %1812 = vmatprep.mubr.bf16.mxu0 0
      %1813 = vmatmul.mubr.bf16.gmra.mxu0 %v1025
      %v1814 = vpop.f32.mrf.mxu0
      %v1815 = vadd.f32 %v1750, %v1814
      %v1816 = vpop.f32.mrf.mxu0
      %v1817 = vpop.f32.mrf.mxu0
      %v1818 = vadd.f32 %v1753, %v1817
      %v1819 = vpop.f32.mrf.mxu0
      %1820 = vmatprep.mubr.bf16.mxu0 0
      %1821 = vmatmul.mubr.bf16.gmra.mxu0 %v1034
      %v1822 = vpop.f32.mrf.mxu0
      %v1823 = vadd.f32 %v1758, %v1822
      %v1824 = vpop.f32.mrf.mxu0
      %v1825 = vpop.f32.mrf.mxu0
      %v1826 = vadd.f32 %v1761, %v1825
      %v1827 = vpop.f32.mrf.mxu0
      %1828 = vmatprep.mubr.bf16.mxu0 0
      %1829 = vmatmul.mubr.bf16.gmra.mxu0 %v1043
      %v1830 = vpop.f32.mrf.mxu0
      %v1831 = vadd.f32 %v1766, %v1830
      %v1832 = vpop.f32.mrf.mxu0
      %v1833 = vpop.f32.mrf.mxu0
      %v1834 = vadd.f32 %v1769, %v1833
      %v1835 = vpop.f32.mrf.mxu0
      %1836 = vdwg.mxu0
      %v1837 = vadd.f32 %v1807, %v1810
      %v1838 = vadd.f32 %v1837, %v1815
      %v1839 = vadd.f32 %v1838, %v1818
      %v1840 = vadd.f32 %v1839, %v1823
      %v1841 = vadd.f32 %v1840, %v1826
      %v1842 = vadd.f32 %v1841, %v1831
      %v1843 = vadd.f32 %v1842, %v1834
      %v1844 = vrot.slane %v1843, 4
      %v1845 = vadd.f32 %v1843, %v1844
      %v1846 = vrot.slane %v1845, 2
      %v1847 = vadd.f32 %v1845, %v1846
      %v1848 = vrot.slane %v1847, 1
      %v1849 = vadd.f32 %v1847, %v1848
      %v1850 = vmul.f32 %v1849, 0.015625
      %v1851 = vmul.f32 %v1807, %v1807
      %v1852 = vmul.f32 %v1810, %v1810
      %v1853 = vmul.f32 %v1815, %v1815
      %v1854 = vmul.f32 %v1818, %v1818
      %v1855 = vmul.f32 %v1823, %v1823
      %v1856 = vmul.f32 %v1826, %v1826
      %v1857 = vmul.f32 %v1831, %v1831
      %v1858 = vmul.f32 %v1834, %v1834
      %v1859 = vadd.f32 %v1851, %v1852
      %v1860 = vadd.f32 %v1859, %v1853
      %v1861 = vadd.f32 %v1860, %v1854
      %v1862 = vadd.f32 %v1861, %v1855
      %v1863 = vadd.f32 %v1862, %v1856
      %v1864 = vadd.f32 %v1863, %v1857
      %v1865 = vadd.f32 %v1864, %v1858
      %v1866 = vrot.slane %v1865, 4
      %v1867 = vadd.f32 %v1865, %v1866
      %v1868 = vrot.slane %v1867, 2
      %v1869 = vadd.f32 %v1867, %v1868
      %v1870 = vrot.slane %v1869, 1
      %v1871 = vadd.f32 %v1869, %v1870
      %v1872 = vmul.f32 %v1871, 0.015625
      %v1873 = vmul.f32 %v1850, %v1850
      %v1874 = vsub.f32 %v1872, %v1873
      %v1875 = vld [vmem:[%s3] sm:$0x1]
      %v1876 = vadd.f32 %v1874, 1e-05
      %v1877 = vrsqrt.pop %v1876
      %v1878 = vmul.f32 %v1875, %v1877
      %v1879 = vld [vmem:[%s4] sm:$0x1]
      %v1880 = vmul.f32 %v1850, %v1878
      %v1881 = vsub.f32 %v1879, %v1880
      %v1883 = vlaneseq
      %v1884 = vshrl.u32 %v1883, 7
      %v1885 = vsub.s32 0, %v1884
      %v1886 = vrot.slane %v1878, %v1885
      %v1888 = vmul.f32 %v1807, %v1886
      %v1889 = vmul.f32 %v1810, %v1886
      %v1890 = vmul.f32 %v1815, %v1886
      %v1891 = vmul.f32 %v1818, %v1886
      %v1892 = vmul.f32 %v1823, %v1886
      %v1893 = vmul.f32 %v1826, %v1886
      %v1894 = vmul.f32 %v1831, %v1886
      %v1895 = vmul.f32 %v1834, %v1886
      %v1897 = vlaneseq
      %v1898 = vshrl.u32 %v1897, 7
      %v1899 = vsub.s32 0, %v1898
      %v1900 = vrot.slane %v1881, %v1899
      %v1902 = vadd.f32 %v1888, %v1900
      %v1903 = vadd.f32 %v1889, %v1900
      %v1904 = vadd.f32 %v1890, %v1900
      %v1905 = vadd.f32 %v1891, %v1900
      %v1906 = vadd.f32 %v1892, %v1900
      %v1907 = vadd.f32 %v1893, %v1900
      %v1908 = vadd.f32 %v1894, %v1900
      %v1909 = vadd.f32 %v1895, %v1900
      %v1910 = vmax.f32 %v1902, 0.0
      %v1911 = vmax.f32 %v1903, 0.0
      %v1912 = vmax.f32 %v1904, 0.0
      %v1913 = vmax.f32 %v1905, 0.0
      %v1914 = vmax.f32 %v1906, 0.0
      %v1915 = vmax.f32 %v1907, 0.0
      %v1916 = vmax.f32 %v1908, 0.0
      %v1917 = vmax.f32 %v1909, 0.0
      %v1926 = vrot.slane %v1910, 1
      %v1927 = vrot.slane %v1911, 1
      %v1928 = vrot.slane %v1912, 1
      %v1929 = vrot.slane %v1913, 1
      %v1930 = vrot.slane %v1914, 1
      %v1931 = vrot.slane %v1915, 1
      %v1932 = vrot.slane %v1916, 1
      %v1933 = vrot.slane %v1917, 1
      %v1942 = vrot.slane %v1910, 7
      %v1943 = vrot.slane %v1911, 7
      %v1944 = vrot.slane %v1912, 7
      %v1945 = vrot.slane %v1913, 7
      %v1946 = vrot.slane %v1914, 7
      %v1947 = vrot.slane %v1915, 7
      %v1948 = vrot.slane %v1916, 7
      %v1949 = vrot.slane %v1917, 7
      %v1958 = vsel %vm399, %v1926, %v1942
      %v1959 = vsel %vm399, %v1927, %v1943
      %v1960 = vsel %vm399, %v1928, %v1944
      %v1961 = vsel %vm399, %v1929, %v1945
      %v1962 = vsel %vm399, %v1930, %v1946
      %v1963 = vsel %vm399, %v1931, %v1947
      %v1964 = vsel %vm399, %v1932, %v1948
      %v1965 = vsel %vm399, %v1933, %v1949
      %v1966 = vsel %vm408, %v1926, %v1942
      %v1967 = vsel %vm408, %v1927, %v1943
      %v1968 = vsel %vm408, %v1928, %v1944
      %v1969 = vsel %vm408, %v1929, %v1945
      %v1970 = vsel %vm408, %v1930, %v1946
      %v1971 = vsel %vm408, %v1931, %v1947
      %v1972 = vsel %vm408, %v1932, %v1948
      %v1973 = vsel %vm408, %v1933, %v1949
      %v1974 = vpack.c.bf16 %v1958, %v1959
      %v1975 = vpack.c.bf16 %v1960, %v1959
      %v1976 = vpack.c.bf16 %v1962, %v1961
      %v1977 = vpack.c.bf16 %v1964, %v1963
      %v1982 = vunpack.c.l.b16 %v1974
      %v1983 = vunpack.c.h.b16 %v1974
      %v1984 = vunpack.c.l.b16 %v1975
      %v1985 = vunpack.c.h.b16 %v1975
      %v1986 = vunpack.c.l.b16 %v1976
      %v1987 = vunpack.c.h.b16 %v1976
      %v1988 = vunpack.c.l.b16 %v1977
      %v1989 = vunpack.c.h.b16 %v1977
      %v1990 = vpack.c.b16 %v1982, %v1982
      %v1991 = vpack.c.b16 %v1983, %v1983
      %v1992 = vpack.c.b16 %v1984, %v1984
      %v1993 = vpack.c.b16 %v1985, %v1985
      %v1994 = vpack.c.b16 %v1986, %v1986
      %v1995 = vpack.c.b16 %v1987, %v1987
      %v1996 = vpack.c.b16 %v1988, %v1988
      %v1997 = vpack.c.b16 %v1989, %v1989
      %2006 = vst [vmem:[#allocation2] sm:$0xf] %v1990
      %2007 = vst [vmem:[#allocation2 + $0x24] sm:$0xf] %v1991
      %2008 = vst [vmem:[#allocation2 + $0x48] sm:$0xf] %v1992
      %2009 = vst [vmem:[#allocation2 + $0x6c] sm:$0xf] %v1993
      %2010 = vst [vmem:[#allocation2 + $0x90] sm:$0xf] %v1994
      %2011 = vst [vmem:[#allocation2 + $0xb4] sm:$0xf] %v1995
      %2012 = vst [vmem:[#allocation2 + $0xd8] sm:$0xf] %v1996
      %2013 = vst [vmem:[#allocation2 + $0xfc] sm:$0xf] %v1997
      %v2014 = vpack.c.bf16 %v1910, %v1911
      %v2015 = vpack.c.bf16 %v1912, %v1911
      %v2016 = vpack.c.bf16 %v1914, %v1913
      %v2017 = vpack.c.bf16 %v1916, %v1915
      %v2022 = vunpack.c.l.b16 %v2014
      %v2023 = vunpack.c.h.b16 %v2014
      %v2024 = vunpack.c.l.b16 %v2015
      %v2025 = vunpack.c.h.b16 %v2015
      %v2026 = vunpack.c.l.b16 %v2016
      %v2027 = vunpack.c.h.b16 %v2016
      %v2028 = vunpack.c.l.b16 %v2017
      %v2029 = vunpack.c.h.b16 %v2017
      %v2030 = vpack.c.b16 %v2022, %v2022
      %v2031 = vpack.c.b16 %v2023, %v2023
      %v2032 = vpack.c.b16 %v2024, %v2024
      %v2033 = vpack.c.b16 %v2025, %v2025
      %v2034 = vpack.c.b16 %v2026, %v2026
      %v2035 = vpack.c.b16 %v2027, %v2027
      %v2036 = vpack.c.b16 %v2028, %v2028
      %v2037 = vpack.c.b16 %v2029, %v2029
      %2046 = vst [vmem:[#allocation2 + $0x4] sm:$0xf] %v2030
      %2047 = vst [vmem:[#allocation2 + $0x28] sm:$0xf] %v2031
      %2048 = vst [vmem:[#allocation2 + $0x4c] sm:$0xf] %v2032
      %2049 = vst [vmem:[#allocation2 + $0x70] sm:$0xf] %v2033
      %2050 = vst [vmem:[#allocation2 + $0x94] sm:$0xf] %v2034
      %2051 = vst [vmem:[#allocation2 + $0xb8] sm:$0xf] %v2035
      %2052 = vst [vmem:[#allocation2 + $0xdc] sm:$0xf] %v2036
      %2053 = vst [vmem:[#allocation2 + $0x100] sm:$0xf] %v2037
      %v2054 = vpack.c.bf16 %v1966, %v1967
      %v2055 = vpack.c.bf16 %v1968, %v1967
      %v2056 = vpack.c.bf16 %v1970, %v1969
      %v2057 = vpack.c.bf16 %v1972, %v1971
      %v2062 = vunpack.c.l.b16 %v2054
      %v2063 = vunpack.c.h.b16 %v2054
      %v2064 = vunpack.c.l.b16 %v2055
      %v2065 = vunpack.c.h.b16 %v2055
      %v2066 = vunpack.c.l.b16 %v2056
      %v2067 = vunpack.c.h.b16 %v2056
      %v2068 = vunpack.c.l.b16 %v2057
      %v2069 = vunpack.c.h.b16 %v2057
      %v2070 = vpack.c.b16 %v2062, %v2062
      %v2071 = vpack.c.b16 %v2063, %v2063
      %v2072 = vpack.c.b16 %v2064, %v2064
      %v2073 = vpack.c.b16 %v2065, %v2065
      %v2074 = vpack.c.b16 %v2066, %v2066
      %v2075 = vpack.c.b16 %v2067, %v2067
      %v2076 = vpack.c.b16 %v2068, %v2068
      %v2077 = vpack.c.b16 %v2069, %v2069
      %2086 = vst [vmem:[#allocation2 + $0x8] sm:$0xf] %v2070
      %2087 = vst [vmem:[#allocation2 + $0x2c] sm:$0xf] %v2071
      %2088 = vst [vmem:[#allocation2 + $0x50] sm:$0xf] %v2072
      %2089 = vst [vmem:[#allocation2 + $0x74] sm:$0xf] %v2073
      %2090 = vst [vmem:[#allocation2 + $0x98] sm:$0xf] %v2074
      %2091 = vst [vmem:[#allocation2 + $0xbc] sm:$0xf] %v2075
      %2092 = vst [vmem:[#allocation2 + $0xe0] sm:$0xf] %v2076
      %2093 = vst [vmem:[#allocation2 + $0x104] sm:$0xf] %v2077
      %v2094 = vpack.c.bf16 %v1959, %v1958
      %v2095 = vpack.c.bf16 %v1961, %v1960
      %v2096 = vpack.c.bf16 %v1963, %v1962
      %v2097 = vpack.c.bf16 %v1965, %v1964
      %v2102 = vunpack.c.l.b16 %v2094
      %v2103 = vunpack.c.h.b16 %v2094
      %v2104 = vunpack.c.l.b16 %v2095
      %v2105 = vunpack.c.h.b16 %v2095
      %v2106 = vunpack.c.l.b16 %v2096
      %v2107 = vunpack.c.h.b16 %v2096
      %v2108 = vunpack.c.l.b16 %v2097
      %v2109 = vunpack.c.h.b16 %v2097
      %v2110 = vpack.c.b16 %v2102, %v2102
      %v2111 = vpack.c.b16 %v2103, %v2103
      %v2112 = vpack.c.b16 %v2104, %v2104
      %v2113 = vpack.c.b16 %v2105, %v2105
      %v2114 = vpack.c.b16 %v2106, %v2106
      %v2115 = vpack.c.b16 %v2107, %v2107
      %v2116 = vpack.c.b16 %v2108, %v2108
      %v2117 = vpack.c.b16 %v2109, %v2109
      %2126 = vst [vmem:[#allocation2 + $0xc] sm:$0xf] %v2110
      %2127 = vst [vmem:[#allocation2 + $0x30] sm:$0xf] %v2111
      %2128 = vst [vmem:[#allocation2 + $0x54] sm:$0xf] %v2112
      %2129 = vst [vmem:[#allocation2 + $0x78] sm:$0xf] %v2113
      %2130 = vst [vmem:[#allocation2 + $0x9c] sm:$0xf] %v2114
      %2131 = vst [vmem:[#allocation2 + $0xc0] sm:$0xf] %v2115
      %2132 = vst [vmem:[#allocation2 + $0xe4] sm:$0xf] %v2116
      %2133 = vst [vmem:[#allocation2 + $0x108] sm:$0xf] %v2117
      %v2134 = vpack.c.bf16 %v1911, %v1910
      %v2135 = vpack.c.bf16 %v1913, %v1912
      %v2136 = vpack.c.bf16 %v1915, %v1914
      %v2137 = vpack.c.bf16 %v1917, %v1916
      %v2142 = vunpack.c.l.b16 %v2134
      %v2143 = vunpack.c.h.b16 %v2134
      %v2144 = vunpack.c.l.b16 %v2135
      %v2145 = vunpack.c.h.b16 %v2135
      %v2146 = vunpack.c.l.b16 %v2136
      %v2147 = vunpack.c.h.b16 %v2136
      %v2148 = vunpack.c.l.b16 %v2137
      %v2149 = vunpack.c.h.b16 %v2137
      %v2150 = vpack.c.b16 %v2142, %v2142
      %v2151 = vpack.c.b16 %v2143, %v2143
      %v2152 = vpack.c.b16 %v2144, %v2144
      %v2153 = vpack.c.b16 %v2145, %v2145
      %v2154 = vpack.c.b16 %v2146, %v2146
      %v2155 = vpack.c.b16 %v2147, %v2147
      %v2156 = vpack.c.b16 %v2148, %v2148
      %v2157 = vpack.c.b16 %v2149, %v2149
      %2166 = vst [vmem:[#allocation2 + $0x10] sm:$0xf] %v2150
      %2167 = vst [vmem:[#allocation2 + $0x34] sm:$0xf] %v2151
      %2168 = vst [vmem:[#allocation2 + $0x58] sm:$0xf] %v2152
      %2169 = vst [vmem:[#allocation2 + $0x7c] sm:$0xf] %v2153
      %2170 = vst [vmem:[#allocation2 + $0xa0] sm:$0xf] %v2154
      %2171 = vst [vmem:[#allocation2 + $0xc4] sm:$0xf] %v2155
      %2172 = vst [vmem:[#allocation2 + $0xe8] sm:$0xf] %v2156
      %2173 = vst [vmem:[#allocation2 + $0x10c] sm:$0xf] %v2157
      %v2174 = vpack.c.bf16 %v1967, %v1966
      %v2175 = vpack.c.bf16 %v1969, %v1968
      %v2176 = vpack.c.bf16 %v1971, %v1970
      %v2177 = vpack.c.bf16 %v1973, %v1972
      %v2182 = vunpack.c.l.b16 %v2174
      %v2183 = vunpack.c.h.b16 %v2174
      %v2184 = vunpack.c.l.b16 %v2175
      %v2185 = vunpack.c.h.b16 %v2175
      %v2186 = vunpack.c.l.b16 %v2176
      %v2187 = vunpack.c.h.b16 %v2176
      %v2188 = vunpack.c.l.b16 %v2177
      %v2189 = vunpack.c.h.b16 %v2177
      %v2190 = vpack.c.b16 %v2182, %v2182
      %v2191 = vpack.c.b16 %v2183, %v2183
      %v2192 = vpack.c.b16 %v2184, %v2184
      %v2193 = vpack.c.b16 %v2185, %v2185
      %v2194 = vpack.c.b16 %v2186, %v2186
      %v2195 = vpack.c.b16 %v2187, %v2187
      %v2196 = vpack.c.b16 %v2188, %v2188
      %v2197 = vpack.c.b16 %v2189, %v2189
      %2206 = vst [vmem:[#allocation2 + $0x14] sm:$0xf] %v2190
      %2207 = vst [vmem:[#allocation2 + $0x38] sm:$0xf] %v2191
      %2208 = vst [vmem:[#allocation2 + $0x5c] sm:$0xf] %v2192
      %2209 = vst [vmem:[#allocation2 + $0x80] sm:$0xf] %v2193
      %2210 = vst [vmem:[#allocation2 + $0xa4] sm:$0xf] %v2194
      %2211 = vst [vmem:[#allocation2 + $0xc8] sm:$0xf] %v2195
      %2212 = vst [vmem:[#allocation2 + $0xec] sm:$0xf] %v2196
      %2213 = vst [vmem:[#allocation2 + $0x110] sm:$0xf] %v2197
      %v2214 = vpack.c.bf16 %v1964, %v1965
      %v2216 = vunpack.c.l.b16 %v2214
      %v2217 = vunpack.c.h.b16 %v2214
      %v2218 = vpack.c.b16 %v2216, %v2216
      %v2219 = vpack.c.b16 %v2217, %v2217
      %2222 = vst [vmem:[#allocation2 + $0x18] sm:$0xf] %v1992
      %2223 = vst [vmem:[#allocation2 + $0x3c] sm:$0xf] %v1993
      %2224 = vst [vmem:[#allocation2 + $0x60] sm:$0xf] %v1994
      %2225 = vst [vmem:[#allocation2 + $0x84] sm:$0xf] %v1995
      %2226 = vst [vmem:[#allocation2 + $0xa8] sm:$0xf] %v1996
      %2227 = vst [vmem:[#allocation2 + $0xcc] sm:$0xf] %v1997
      %2228 = vst [vmem:[#allocation2 + $0xf0] sm:$0xf] %v2218
      %2229 = vst [vmem:[#allocation2 + $0x114] sm:$0xf] %v2219
      %v2230 = vpack.c.bf16 %v1916, %v1917
      %v2232 = vunpack.c.l.b16 %v2230
      %v2233 = vunpack.c.h.b16 %v2230
      %v2234 = vpack.c.b16 %v2232, %v2232
      %v2235 = vpack.c.b16 %v2233, %v2233
      %2238 = vst [vmem:[#allocation2 + $0x1c] sm:$0xf] %v2032
      %2239 = vst [vmem:[#allocation2 + $0x40] sm:$0xf] %v2033
      %2240 = vst [vmem:[#allocation2 + $0x64] sm:$0xf] %v2034
      %2241 = vst [vmem:[#allocation2 + $0x88] sm:$0xf] %v2035
      %2242 = vst [vmem:[#allocation2 + $0xac] sm:$0xf] %v2036
      %2243 = vst [vmem:[#allocation2 + $0xd0] sm:$0xf] %v2037
      %2244 = vst [vmem:[#allocation2 + $0xf4] sm:$0xf] %v2234
      %2245 = vst [vmem:[#allocation2 + $0x118] sm:$0xf] %v2235
      %v2246 = vpack.c.bf16 %v1972, %v1973
      %v2248 = vunpack.c.l.b16 %v2246
      %v2249 = vunpack.c.h.b16 %v2246
      %v2250 = vpack.c.b16 %v2248, %v2248
      %v2251 = vpack.c.b16 %v2249, %v2249
      %2254 = vst [vmem:[#allocation2 + $0x20] sm:$0xf] %v2072
      %2255 = vst [vmem:[#allocation2 + $0x44] sm:$0xf] %v2073
      %2256 = vst [vmem:[#allocation2 + $0x68] sm:$0xf] %v2074
      %2257 = vst [vmem:[#allocation2 + $0x8c] sm:$0xf] %v2075
      %2258 = vst [vmem:[#allocation2 + $0xb0] sm:$0xf] %v2076
      %2259 = vst [vmem:[#allocation2 + $0xd4] sm:$0xf] %v2077
      %2260 = vst [vmem:[#allocation2 + $0xf8] sm:$0xf] %v2250
      %2261 = vst [vmem:[#allocation2 + $0x11c] sm:$0xf] %v2251
      %v2262 = vld [vmem:[#allocation2] sm:$0xff]
      %v2263 = vld [vmem:[#allocation2 + $0x8] sm:$0xff]
      %v2264 = vld [vmem:[#allocation2 + $0x10] sm:$0xff]
      %v2265 = vld [vmem:[#allocation2 + $0x18] sm:$0xff]
      %v2266 = vld [vmem:[#allocation2 + $0x20] sm:$0xf]
      %v2267 = vld [vmem:[#allocation2 + $0x24] sm:$0xff]
      %v2268 = vld [vmem:[#allocation2 + $0x2c] sm:$0xff]
      %v2269 = vld [vmem:[#allocation2 + $0x34] sm:$0xff]
      %v2270 = vld [vmem:[#allocation2 + $0x3c] sm:$0xff]
      %v2271 = vld [vmem:[#allocation2 + $0x44] sm:$0xf]
      %v2272 = vld [vmem:[#allocation2 + $0x48] sm:$0xff]
      %v2273 = vld [vmem:[#allocation2 + $0x50] sm:$0xff]
      %v2274 = vld [vmem:[#allocation2 + $0x58] sm:$0xff]
      %v2275 = vld [vmem:[#allocation2 + $0x60] sm:$0xff]
      %v2276 = vld [vmem:[#allocation2 + $0x68] sm:$0xf]
      %v2277 = vld [vmem:[#allocation2 + $0x6c] sm:$0xff]
      %v2278 = vld [vmem:[#allocation2 + $0x74] sm:$0xff]
      %v2279 = vld [vmem:[#allocation2 + $0x7c] sm:$0xff]
      %v2280 = vld [vmem:[#allocation2 + $0x84] sm:$0xff]
      %v2281 = vld [vmem:[#allocation2 + $0x8c] sm:$0xf]
      %v2282 = vld [vmem:[#allocation2 + $0x90] sm:$0xff]
      %v2283 = vld [vmem:[#allocation2 + $0x98] sm:$0xff]
      %v2284 = vld [vmem:[#allocation2 + $0xa0] sm:$0xff]
      %v2285 = vld [vmem:[#allocation2 + $0xa8] sm:$0xff]
      %v2286 = vld [vmem:[#allocation2 + $0xb0] sm:$0xf]
      %v2287 = vld [vmem:[#allocation2 + $0xb4] sm:$0xff]
      %v2288 = vld [vmem:[#allocation2 + $0xbc] sm:$0xff]
      %v2289 = vld [vmem:[#allocation2 + $0xc4] sm:$0xff]
      %v2290 = vld [vmem:[#allocation2 + $0xcc] sm:$0xff]
      %v2291 = vld [vmem:[#allocation2 + $0xd4] sm:$0xf]
      %v2292 = vld [vmem:[#allocation2 + $0xd8] sm:$0xff]
      %v2293 = vld [vmem:[#allocation2 + $0xe0] sm:$0xff]
      %v2294 = vld [vmem:[#allocation2 + $0xe8] sm:$0xff]
      %v2295 = vld [vmem:[#allocation2 + $0xf0] sm:$0xff]
      %v2296 = vld [vmem:[#allocation2 + $0xf8] sm:$0xf]
      %v2297 = vld [vmem:[#allocation2 + $0xfc] sm:$0xff]
      %v2298 = vld [vmem:[#allocation2 + $0x104] sm:$0xff]
      %v2299 = vld [vmem:[#allocation2 + $0x10c] sm:$0xff]
      %v2300 = vld [vmem:[#allocation2 + $0x114] sm:$0xff]
      %v2301 = vld [vmem:[#allocation2 + $0x11c] sm:$0xf]
      %v2302 = vld [vmem:[%s5] sm:$0xf]
      %v2303 = vld [vmem:[%s5 + $0x4] sm:$0xf]
      %v2304 = vld [vmem:[%s5 + $0x8] sm:$0xf]
      %v2305 = vld [vmem:[%s5 + $0xc] sm:$0xf]
      %v2306 = vld [vmem:[%s5 + $0x10] sm:$0xf]
      %v2307 = vld [vmem:[%s5 + $0x14] sm:$0xf]
      %v2308 = vld [vmem:[%s5 + $0x18] sm:$0xf]
      %v2309 = vld [vmem:[%s5 + $0x1c] sm:$0xf]
      %v2310 = vld [vmem:[%s5 + $0x20] sm:$0xf]
      %v2311 = vld [vmem:[%s5 + $0x24] sm:$0xf]
      %v2312 = vld [vmem:[%s5 + $0x28] sm:$0xf]
      %v2313 = vld [vmem:[%s5 + $0x2c] sm:$0xf]
      %v2314 = vld [vmem:[%s5 + $0x30] sm:$0xf]
      %v2315 = vld [vmem:[%s5 + $0x34] sm:$0xf]
      %v2316 = vld [vmem:[%s5 + $0x38] sm:$0xf]
      %v2317 = vld [vmem:[%s5 + $0x3c] sm:$0xf]
      %v2318 = vld [vmem:[%s5 + $0x40] sm:$0xf]
      %v2319 = vld [vmem:[%s5 + $0x44] sm:$0xf]
      %v2320 = vld [vmem:[%s5 + $0x48] sm:$0xf]
      %v2321 = vld [vmem:[%s5 + $0x4c] sm:$0xf]
      %v2322 = vld [vmem:[%s5 + $0x50] sm:$0xf]
      %v2323 = vld [vmem:[%s5 + $0x54] sm:$0xf]
      %v2324 = vld [vmem:[%s5 + $0x58] sm:$0xf]
      %v2325 = vld [vmem:[%s5 + $0x5c] sm:$0xf]
      %v2326 = vld [vmem:[%s5 + $0x60] sm:$0xf]
      %v2327 = vld [vmem:[%s5 + $0x64] sm:$0xf]
      %v2328 = vld [vmem:[%s5 + $0x68] sm:$0xf]
      %v2329 = vld [vmem:[%s5 + $0x6c] sm:$0xf]
      %v2330 = vld [vmem:[%s5 + $0x70] sm:$0xf]
      %v2331 = vld [vmem:[%s5 + $0x74] sm:$0xf]
      %v2332 = vld [vmem:[%s5 + $0x78] sm:$0xf]
      %v2333 = vld [vmem:[%s5 + $0x7c] sm:$0xf]
      %v2334 = vld [vmem:[%s5 + $0x80] sm:$0xf]
      %v2335 = vld [vmem:[%s5 + $0x84] sm:$0xf]
      %v2336 = vld [vmem:[%s5 + $0x88] sm:$0xf]
      %v2337 = vld [vmem:[%s5 + $0x8c] sm:$0xf]
      %v2338 = vld [vmem:[%s5 + $0x90] sm:$0xf]
      %v2339 = vld [vmem:[%s5 + $0x94] sm:$0xf]
      %v2340 = vld [vmem:[%s5 + $0x98] sm:$0xf]
      %v2341 = vld [vmem:[%s5 + $0x9c] sm:$0xf]
      %v2342 = vld [vmem:[%s5 + $0xa0] sm:$0xf]
      %v2343 = vld [vmem:[%s5 + $0xa4] sm:$0xf]
      %v2344 = vld [vmem:[%s5 + $0xa8] sm:$0xf]
      %v2345 = vld [vmem:[%s5 + $0xac] sm:$0xf]
      %v2346 = vld [vmem:[%s5 + $0xb0] sm:$0xf]
      %v2347 = vld [vmem:[%s5 + $0xb4] sm:$0xf]
      %v2348 = vld [vmem:[%s5 + $0xb8] sm:$0xf]
      %v2349 = vld [vmem:[%s5 + $0xbc] sm:$0xf]
      %v2350 = vld [vmem:[%s5 + $0xc0] sm:$0xf]
      %v2351 = vld [vmem:[%s5 + $0xc4] sm:$0xf]
      %v2352 = vld [vmem:[%s5 + $0xc8] sm:$0xf]
      %v2353 = vld [vmem:[%s5 + $0xcc] sm:$0xf]
      %v2354 = vld [vmem:[%s5 + $0xd0] sm:$0xf]
      %v2355 = vld [vmem:[%s5 + $0xd4] sm:$0xf]
      %v2356 = vld [vmem:[%s5 + $0xd8] sm:$0xf]
      %v2357 = vld [vmem:[%s5 + $0xdc] sm:$0xf]
      %v2358 = vld [vmem:[%s5 + $0xe0] sm:$0xf]
      %v2359 = vld [vmem:[%s5 + $0xe4] sm:$0xf]
      %v2360 = vld [vmem:[%s5 + $0xe8] sm:$0xf]
      %v2361 = vld [vmem:[%s5 + $0xec] sm:$0xf]
      %v2362 = vld [vmem:[%s5 + $0xf0] sm:$0xf]
      %v2363 = vld [vmem:[%s5 + $0xf4] sm:$0xf]
      %v2364 = vld [vmem:[%s5 + $0xf8] sm:$0xf]
      %v2365 = vld [vmem:[%s5 + $0xfc] sm:$0xf]
      %v2366 = vld [vmem:[%s5 + $0x100] sm:$0xf]
      %v2367 = vld [vmem:[%s5 + $0x104] sm:$0xf]
      %v2368 = vld [vmem:[%s5 + $0x108] sm:$0xf]
      %v2369 = vld [vmem:[%s5 + $0x10c] sm:$0xf]
      %v2370 = vld [vmem:[%s5 + $0x110] sm:$0xf]
      %v2371 = vld [vmem:[%s5 + $0x114] sm:$0xf]
      %v2372 = vld [vmem:[%s5 + $0x118] sm:$0xf]
      %v2373 = vld [vmem:[%s5 + $0x11c] sm:$0xf]
      %v2374 = vld [vmem:[%s5 + $0x120] sm:$0xf]
      %v2375 = vld [vmem:[%s5 + $0x124] sm:$0xf]
      %v2376 = vld [vmem:[%s5 + $0x128] sm:$0xf]
      %v2377 = vld [vmem:[%s5 + $0x12c] sm:$0xf]
      %v2378 = vld [vmem:[%s5 + $0x130] sm:$0xf]
      %v2379 = vld [vmem:[%s5 + $0x134] sm:$0xf]
      %v2380 = vld [vmem:[%s5 + $0x138] sm:$0xf]
      %v2381 = vld [vmem:[%s5 + $0x13c] sm:$0xf]
      %v2382 = vld [vmem:[%s5 + $0x140] sm:$0xf]
      %v2383 = vld [vmem:[%s5 + $0x144] sm:$0xf]
      %v2384 = vld [vmem:[%s5 + $0x148] sm:$0xf]
      %v2385 = vld [vmem:[%s5 + $0x14c] sm:$0xf]
      %v2386 = vld [vmem:[%s5 + $0x150] sm:$0xf]
      %v2387 = vld [vmem:[%s5 + $0x154] sm:$0xf]
      %v2388 = vld [vmem:[%s5 + $0x158] sm:$0xf]
      %v2389 = vld [vmem:[%s5 + $0x15c] sm:$0xf]
      %v2390 = vld [vmem:[%s5 + $0x160] sm:$0xf]
      %v2391 = vld [vmem:[%s5 + $0x164] sm:$0xf]
      %v2392 = vld [vmem:[%s5 + $0x168] sm:$0xf]
      %v2393 = vld [vmem:[%s5 + $0x16c] sm:$0xf]
      %v2394 = vld [vmem:[%s5 + $0x170] sm:$0xf]
      %v2395 = vld [vmem:[%s5 + $0x174] sm:$0xf]
      %v2396 = vld [vmem:[%s5 + $0x178] sm:$0xf]
      %v2397 = vld [vmem:[%s5 + $0x17c] sm:$0xf]
      %v2398 = vld [vmem:[%s5 + $0x180] sm:$0xf]
      %v2399 = vld [vmem:[%s5 + $0x184] sm:$0xf]
      %v2400 = vld [vmem:[%s5 + $0x188] sm:$0xf]
      %v2401 = vld [vmem:[%s5 + $0x18c] sm:$0xf]
      %v2402 = vld [vmem:[%s5 + $0x190] sm:$0xf]
      %v2403 = vld [vmem:[%s5 + $0x194] sm:$0xf]
      %v2404 = vld [vmem:[%s5 + $0x198] sm:$0xf]
      %v2405 = vld [vmem:[%s5 + $0x19c] sm:$0xf]
      %v2406 = vld [vmem:[%s5 + $0x1a0] sm:$0xf]
      %v2407 = vld [vmem:[%s5 + $0x1a4] sm:$0xf]
      %v2408 = vld [vmem:[%s5 + $0x1a8] sm:$0xf]
      %v2409 = vld [vmem:[%s5 + $0x1ac] sm:$0xf]
      %v2410 = vld [vmem:[%s5 + $0x1b0] sm:$0xf]
      %v2411 = vld [vmem:[%s5 + $0x1b4] sm:$0xf]
      %v2412 = vld [vmem:[%s5 + $0x1b8] sm:$0xf]
      %v2413 = vld [vmem:[%s5 + $0x1bc] sm:$0xf]
      %v2414 = vld [vmem:[%s5 + $0x1c0] sm:$0xf]
      %v2415 = vld [vmem:[%s5 + $0x1c4] sm:$0xf]
      %v2416 = vld [vmem:[%s5 + $0x1c8] sm:$0xf]
      %v2417 = vld [vmem:[%s5 + $0x1cc] sm:$0xf]
      %v2418 = vld [vmem:[%s5 + $0x1d0] sm:$0xf]
      %v2419 = vld [vmem:[%s5 + $0x1d4] sm:$0xf]
      %v2420 = vld [vmem:[%s5 + $0x1d8] sm:$0xf]
      %v2421 = vld [vmem:[%s5 + $0x1dc] sm:$0xf]
      %v2422 = vld [vmem:[%s5 + $0x1e0] sm:$0xf]
      %v2423 = vld [vmem:[%s5 + $0x1e4] sm:$0xf]
      %v2424 = vld [vmem:[%s5 + $0x1e8] sm:$0xf]
      %v2425 = vld [vmem:[%s5 + $0x1ec] sm:$0xf]
      %v2426 = vld [vmem:[%s5 + $0x1f0] sm:$0xf]
      %v2427 = vld [vmem:[%s5 + $0x1f4] sm:$0xf]
      %v2428 = vld [vmem:[%s5 + $0x1f8] sm:$0xf]
      %v2429 = vld [vmem:[%s5 + $0x1fc] sm:$0xf]
      %v2430 = vld [vmem:[%s5 + $0x200] sm:$0xf]
      %v2431 = vld [vmem:[%s5 + $0x204] sm:$0xf]
      %v2432 = vld [vmem:[%s5 + $0x208] sm:$0xf]
      %v2433 = vld [vmem:[%s5 + $0x20c] sm:$0xf]
      %v2434 = vld [vmem:[%s5 + $0x210] sm:$0xf]
      %v2435 = vld [vmem:[%s5 + $0x214] sm:$0xf]
      %v2436 = vld [vmem:[%s5 + $0x218] sm:$0xf]
      %v2437 = vld [vmem:[%s5 + $0x21c] sm:$0xf]
      %v2438 = vld [vmem:[%s5 + $0x220] sm:$0xf]
      %v2439 = vld [vmem:[%s5 + $0x224] sm:$0xf]
      %v2440 = vld [vmem:[%s5 + $0x228] sm:$0xf]
      %v2441 = vld [vmem:[%s5 + $0x22c] sm:$0xf]
      %v2442 = vld [vmem:[%s5 + $0x230] sm:$0xf]
      %v2443 = vld [vmem:[%s5 + $0x234] sm:$0xf]
      %v2444 = vld [vmem:[%s5 + $0x238] sm:$0xf]
      %v2445 = vld [vmem:[%s5 + $0x23c] sm:$0xf]
      %v2446 = vld [vmem:[%s6] sm:$0x1]
      %v2448 = vlaneseq
      %v2449 = vshrl.u32 %v2448, 7
      %v2450 = vsub.s32 0, %v2449
      %v2451 = vrot.slane %v2446, %v2450
      %v2493 = vunpack.c.l.b16 %v2262
      %v2494 = vunpack.c.h.b16 %v2262
      %v2495 = vunpack.c.l.b16 %v2263
      %v2496 = vunpack.c.h.b16 %v2263
      %v2497 = vunpack.c.l.b16 %v2264
      %v2498 = vunpack.c.h.b16 %v2264
      %v2499 = vunpack.c.l.b16 %v2265
      %v2500 = vunpack.c.h.b16 %v2265
      %v2501 = vunpack.c.l.b16 %v2266
      %v2502 = vunpack.c.l.b16 %v2267
      %v2503 = vunpack.c.h.b16 %v2267
      %v2504 = vunpack.c.l.b16 %v2268
      %v2505 = vunpack.c.h.b16 %v2268
      %v2506 = vunpack.c.l.b16 %v2269
      %v2507 = vunpack.c.h.b16 %v2269
      %v2508 = vunpack.c.l.b16 %v2270
      %v2509 = vunpack.c.h.b16 %v2270
      %v2510 = vunpack.c.l.b16 %v2271
      %v2511 = vunpack.c.l.b16 %v2272
      %v2512 = vunpack.c.h.b16 %v2272
      %v2513 = vunpack.c.l.b16 %v2273
      %v2514 = vunpack.c.h.b16 %v2273
      %v2515 = vunpack.c.l.b16 %v2274
      %v2516 = vunpack.c.h.b16 %v2274
      %v2517 = vunpack.c.l.b16 %v2275
      %v2518 = vunpack.c.h.b16 %v2275
      %v2519 = vunpack.c.l.b16 %v2276
      %v2520 = vunpack.c.l.b16 %v2277
      %v2521 = vunpack.c.h.b16 %v2277
      %v2522 = vunpack.c.l.b16 %v2278
      %v2523 = vunpack.c.h.b16 %v2278
      %v2524 = vunpack.c.l.b16 %v2279
      %v2525 = vunpack.c.h.b16 %v2279
      %v2526 = vunpack.c.l.b16 %v2280
      %v2527 = vunpack.c.h.b16 %v2280
      %v2528 = vunpack.c.l.b16 %v2281
      %v2529 = vunpack.c.l.b16 %v2282
      %v2530 = vunpack.c.h.b16 %v2282
      %v2531 = vunpack.c.l.b16 %v2283
      %v2532 = vunpack.c.h.b16 %v2283
      %v2533 = vunpack.c.l.b16 %v2284
      %v2534 = vunpack.c.h.b16 %v2284
      %v2535 = vunpack.c.l.b16 %v2285
      %v2536 = vunpack.c.h.b16 %v2285
      %v2537 = vunpack.c.l.b16 %v2286
      %v2538 = vunpack.c.l.b16 %v2287
      %v2539 = vunpack.c.h.b16 %v2287
      %v2540 = vunpack.c.l.b16 %v2288
      %v2541 = vunpack.c.h.b16 %v2288
      %v2542 = vunpack.c.l.b16 %v2289
      %v2543 = vunpack.c.h.b16 %v2289
      %v2544 = vunpack.c.l.b16 %v2290
      %v2545 = vunpack.c.h.b16 %v2290
      %v2546 = vunpack.c.l.b16 %v2291
      %v2547 = vunpack.c.l.b16 %v2292
      %v2548 = vunpack.c.h.b16 %v2292
      %v2549 = vunpack.c.l.b16 %v2293
      %v2550 = vunpack.c.h.b16 %v2293
      %v2551 = vunpack.c.l.b16 %v2294
      %v2552 = vunpack.c.h.b16 %v2294
      %v2553 = vunpack.c.l.b16 %v2295
      %v2554 = vunpack.c.h.b16 %v2295
      %v2555 = vunpack.c.l.b16 %v2296
      %v2556 = vunpack.c.l.b16 %v2297
      %v2557 = vunpack.c.h.b16 %v2297
      %v2558 = vunpack.c.l.b16 %v2298
      %v2559 = vunpack.c.h.b16 %v2298
      %v2560 = vunpack.c.l.b16 %v2299
      %v2561 = vunpack.c.h.b16 %v2299
      %v2562 = vunpack.c.l.b16 %v2300
      %v2563 = vunpack.c.h.b16 %v2300
      %v2564 = vunpack.c.l.b16 %v2301
      %v2565 = vpack.c.b16 %v2502, %v2493
      %v2566 = vpack.c.b16 %v2503, %v2494
      %v2567 = vpack.c.b16 %v2504, %v2495
      %v2568 = vpack.c.b16 %v2505, %v2496
      %v2569 = vpack.c.b16 %v2506, %v2497
      %v2570 = vpack.c.b16 %v2507, %v2498
      %v2571 = vpack.c.b16 %v2508, %v2499
      %v2572 = vpack.c.b16 %v2509, %v2500
      %v2573 = vpack.c.b16 %v2510, %v2501
      %v2574 = vpack.c.b16 %v2520, %v2511
      %v2575 = vpack.c.b16 %v2521, %v2512
      %v2576 = vpack.c.b16 %v2522, %v2513
      %v2577 = vpack.c.b16 %v2523, %v2514
      %v2578 = vpack.c.b16 %v2524, %v2515
      %v2579 = vpack.c.b16 %v2525, %v2516
      %v2580 = vpack.c.b16 %v2526, %v2517
      %v2581 = vpack.c.b16 %v2527, %v2518
      %v2582 = vpack.c.b16 %v2528, %v2519
      %v2583 = vpack.c.b16 %v2538, %v2529
      %v2584 = vpack.c.b16 %v2539, %v2530
      %v2585 = vpack.c.b16 %v2540, %v2531
      %v2586 = vpack.c.b16 %v2541, %v2532
      %v2587 = vpack.c.b16 %v2542, %v2533
      %v2588 = vpack.c.b16 %v2543, %v2534
      %v2589 = vpack.c.b16 %v2544, %v2535
      %v2590 = vpack.c.b16 %v2545, %v2536
      %v2591 = vpack.c.b16 %v2546, %v2537
      %v2592 = vpack.c.b16 %v2556, %v2547
      %v2593 = vpack.c.b16 %v2557, %v2548
      %v2594 = vpack.c.b16 %v2558, %v2549
      %v2595 = vpack.c.b16 %v2559, %v2550
      %v2596 = vpack.c.b16 %v2560, %v2551
      %v2597 = vpack.c.b16 %v2561, %v2552
      %v2598 = vpack.c.b16 %v2562, %v2553
      %v2599 = vpack.c.b16 %v2563, %v2554
      %v2600 = vpack.c.b16 %v2564, %v2555
      %v2781 = vunpack.c.l.b16 %v2302
      %v2782 = vunpack.c.l.b16 %v2303
      %v2783 = vunpack.c.l.b16 %v2304
      %v2784 = vunpack.c.l.b16 %v2305
      %v2785 = vunpack.c.l.b16 %v2306
      %v2786 = vunpack.c.l.b16 %v2307
      %v2787 = vunpack.c.l.b16 %v2308
      %v2788 = vunpack.c.l.b16 %v2309
      %v2789 = vunpack.c.l.b16 %v2310
      %v2790 = vunpack.c.l.b16 %v2311
      %v2791 = vunpack.c.l.b16 %v2312
      %v2792 = vunpack.c.l.b16 %v2313
      %v2793 = vunpack.c.l.b16 %v2314
      %v2794 = vunpack.c.l.b16 %v2315
      %v2795 = vunpack.c.l.b16 %v2316
      %v2796 = vunpack.c.l.b16 %v2317
      %v2797 = vunpack.c.l.b16 %v2318
      %v2798 = vunpack.c.l.b16 %v2319
      %v2799 = vunpack.c.l.b16 %v2320
      %v2800 = vunpack.c.l.b16 %v2321
      %v2801 = vunpack.c.l.b16 %v2322
      %v2802 = vunpack.c.l.b16 %v2323
      %v2803 = vunpack.c.l.b16 %v2324
      %v2804 = vunpack.c.l.b16 %v2325
      %v2805 = vunpack.c.l.b16 %v2326
      %v2806 = vunpack.c.l.b16 %v2327
      %v2807 = vunpack.c.l.b16 %v2328
      %v2808 = vunpack.c.l.b16 %v2329
      %v2809 = vunpack.c.l.b16 %v2330
      %v2810 = vunpack.c.l.b16 %v2331
      %v2811 = vunpack.c.l.b16 %v2332
      %v2812 = vunpack.c.l.b16 %v2333
      %v2813 = vunpack.c.l.b16 %v2334
      %v2814 = vunpack.c.l.b16 %v2335
      %v2815 = vunpack.c.l.b16 %v2336
      %v2816 = vunpack.c.l.b16 %v2337
      %v2817 = vunpack.c.l.b16 %v2338
      %v2818 = vunpack.c.l.b16 %v2339
      %v2819 = vunpack.c.l.b16 %v2340
      %v2820 = vunpack.c.l.b16 %v2341
      %v2821 = vunpack.c.l.b16 %v2342
      %v2822 = vunpack.c.l.b16 %v2343
      %v2823 = vunpack.c.l.b16 %v2344
      %v2824 = vunpack.c.l.b16 %v2345
      %v2825 = vunpack.c.l.b16 %v2346
      %v2826 = vunpack.c.l.b16 %v2347
      %v2827 = vunpack.c.l.b16 %v2348
      %v2828 = vunpack.c.l.b16 %v2349
      %v2829 = vunpack.c.l.b16 %v2350
      %v2830 = vunpack.c.l.b16 %v2351
      %v2831 = vunpack.c.l.b16 %v2352
      %v2832 = vunpack.c.l.b16 %v2353
      %v2833 = vunpack.c.l.b16 %v2354
      %v2834 = vunpack.c.l.b16 %v2355
      %v2835 = vunpack.c.l.b16 %v2356
      %v2836 = vunpack.c.l.b16 %v2357
      %v2837 = vunpack.c.l.b16 %v2358
      %v2838 = vunpack.c.l.b16 %v2359
      %v2839 = vunpack.c.l.b16 %v2360
      %v2840 = vunpack.c.l.b16 %v2361
      %v2841 = vunpack.c.l.b16 %v2362
      %v2842 = vunpack.c.l.b16 %v2363
      %v2843 = vunpack.c.l.b16 %v2364
      %v2844 = vunpack.c.l.b16 %v2365
      %v2845 = vunpack.c.l.b16 %v2366
      %v2846 = vunpack.c.l.b16 %v2367
      %v2847 = vunpack.c.l.b16 %v2368
      %v2848 = vunpack.c.l.b16 %v2369
      %v2849 = vunpack.c.l.b16 %v2370
      %v2850 = vunpack.c.l.b16 %v2371
      %v2851 = vunpack.c.l.b16 %v2372
      %v2852 = vunpack.c.l.b16 %v2373
      %v2853 = vunpack.c.l.b16 %v2374
      %v2854 = vunpack.c.l.b16 %v2375
      %v2855 = vunpack.c.l.b16 %v2376
      %v2856 = vunpack.c.l.b16 %v2377
      %v2857 = vunpack.c.l.b16 %v2378
      %v2858 = vunpack.c.l.b16 %v2379
      %v2859 = vunpack.c.l.b16 %v2380
      %v2860 = vunpack.c.l.b16 %v2381
      %v2861 = vunpack.c.l.b16 %v2382
      %v2862 = vunpack.c.l.b16 %v2383
      %v2863 = vunpack.c.l.b16 %v2384
      %v2864 = vunpack.c.l.b16 %v2385
      %v2865 = vunpack.c.l.b16 %v2386
      %v2866 = vunpack.c.l.b16 %v2387
      %v2867 = vunpack.c.l.b16 %v2388
      %v2868 = vunpack.c.l.b16 %v2389
      %v2869 = vunpack.c.l.b16 %v2390
      %v2870 = vunpack.c.l.b16 %v2391
      %v2871 = vunpack.c.l.b16 %v2392
      %v2872 = vunpack.c.l.b16 %v2393
      %v2873 = vunpack.c.l.b16 %v2394
      %v2874 = vunpack.c.l.b16 %v2395
      %v2875 = vunpack.c.l.b16 %v2396
      %v2876 = vunpack.c.l.b16 %v2397
      %v2877 = vunpack.c.l.b16 %v2398
      %v2878 = vunpack.c.l.b16 %v2399
      %v2879 = vunpack.c.l.b16 %v2400
      %v2880 = vunpack.c.l.b16 %v2401
      %v2881 = vunpack.c.l.b16 %v2402
      %v2882 = vunpack.c.l.b16 %v2403
      %v2883 = vunpack.c.l.b16 %v2404
      %v2884 = vunpack.c.l.b16 %v2405
      %v2885 = vunpack.c.l.b16 %v2406
      %v2886 = vunpack.c.l.b16 %v2407
      %v2887 = vunpack.c.l.b16 %v2408
      %v2888 = vunpack.c.l.b16 %v2409
      %v2889 = vunpack.c.l.b16 %v2410
      %v2890 = vunpack.c.l.b16 %v2411
      %v2891 = vunpack.c.l.b16 %v2412
      %v2892 = vunpack.c.l.b16 %v2413
      %v2893 = vunpack.c.l.b16 %v2414
      %v2894 = vunpack.c.l.b16 %v2415
      %v2895 = vunpack.c.l.b16 %v2416
      %v2896 = vunpack.c.l.b16 %v2417
      %v2897 = vunpack.c.l.b16 %v2418
      %v2898 = vunpack.c.l.b16 %v2419
      %v2899 = vunpack.c.l.b16 %v2420
      %v2900 = vunpack.c.l.b16 %v2421
      %v2901 = vunpack.c.l.b16 %v2422
      %v2902 = vunpack.c.l.b16 %v2423
      %v2903 = vunpack.c.l.b16 %v2424
      %v2904 = vunpack.c.l.b16 %v2425
      %v2905 = vunpack.c.l.b16 %v2426
      %v2906 = vunpack.c.l.b16 %v2427
      %v2907 = vunpack.c.l.b16 %v2428
      %v2908 = vunpack.c.l.b16 %v2429
      %v2909 = vunpack.c.l.b16 %v2430
      %v2910 = vunpack.c.l.b16 %v2431
      %v2911 = vunpack.c.l.b16 %v2432
      %v2912 = vunpack.c.l.b16 %v2433
      %v2913 = vunpack.c.l.b16 %v2434
      %v2914 = vunpack.c.l.b16 %v2435
      %v2915 = vunpack.c.l.b16 %v2436
      %v2916 = vunpack.c.l.b16 %v2437
      %v2917 = vunpack.c.l.b16 %v2438
      %v2918 = vunpack.c.l.b16 %v2439
      %v2919 = vunpack.c.l.b16 %v2440
      %v2920 = vunpack.c.l.b16 %v2441
      %v2921 = vunpack.c.l.b16 %v2442
      %v2922 = vunpack.c.l.b16 %v2443
      %v2923 = vunpack.c.l.b16 %v2444
      %v2924 = vunpack.c.l.b16 %v2445
      %v2925 = vpack.c.b16 %v2782, %v2781
      %v2926 = vpack.c.b16 %v2784, %v2783
      %v2927 = vpack.c.b16 %v2786, %v2785
      %v2928 = vpack.c.b16 %v2788, %v2787
      %v2929 = vpack.c.b16 %v2790, %v2789
      %v2930 = vpack.c.b16 %v2792, %v2791
      %v2931 = vpack.c.b16 %v2794, %v2793
      %v2932 = vpack.c.b16 %v2796, %v2795
      %v2933 = vpack.c.b16 %v2798, %v2797
      %v2934 = vpack.c.b16 %v2800, %v2799
      %v2935 = vpack.c.b16 %v2802, %v2801
      %v2936 = vpack.c.b16 %v2804, %v2803
      %v2937 = vpack.c.b16 %v2806, %v2805
      %v2938 = vpack.c.b16 %v2808, %v2807
      %v2939 = vpack.c.b16 %v2810, %v2809
      %v2940 = vpack.c.b16 %v2812, %v2811
      %v2941 = vpack.c.b16 %v2814, %v2813
      %v2942 = vpack.c.b16 %v2816, %v2815
      %v2943 = vpack.c.b16 %v2818, %v2817
      %v2944 = vpack.c.b16 %v2820, %v2819
      %v2945 = vpack.c.b16 %v2822, %v2821
      %v2946 = vpack.c.b16 %v2824, %v2823
      %v2947 = vpack.c.b16 %v2826, %v2825
      %v2948 = vpack.c.b16 %v2828, %v2827
      %v2949 = vpack.c.b16 %v2830, %v2829
      %v2950 = vpack.c.b16 %v2832, %v2831
      %v2951 = vpack.c.b16 %v2834, %v2833
      %v2952 = vpack.c.b16 %v2836, %v2835
      %v2953 = vpack.c.b16 %v2838, %v2837
      %v2954 = vpack.c.b16 %v2840, %v2839
      %v2955 = vpack.c.b16 %v2842, %v2841
      %v2956 = vpack.c.b16 %v2844, %v2843
      %v2957 = vpack.c.b16 %v2846, %v2845
      %v2958 = vpack.c.b16 %v2848, %v2847
      %v2959 = vpack.c.b16 %v2850, %v2849
      %v2960 = vpack.c.b16 %v2852, %v2851
      %v2961 = vpack.c.b16 %v2854, %v2853
      %v2962 = vpack.c.b16 %v2856, %v2855
      %v2963 = vpack.c.b16 %v2858, %v2857
      %v2964 = vpack.c.b16 %v2860, %v2859
      %v2965 = vpack.c.b16 %v2862, %v2861
      %v2966 = vpack.c.b16 %v2864, %v2863
      %v2967 = vpack.c.b16 %v2866, %v2865
      %v2968 = vpack.c.b16 %v2868, %v2867
      %v2969 = vpack.c.b16 %v2870, %v2869
      %v2970 = vpack.c.b16 %v2872, %v2871
      %v2971 = vpack.c.b16 %v2874, %v2873
      %v2972 = vpack.c.b16 %v2876, %v2875
      %v2973 = vpack.c.b16 %v2878, %v2877
      %v2974 = vpack.c.b16 %v2880, %v2879
      %v2975 = vpack.c.b16 %v2882, %v2881
      %v2976 = vpack.c.b16 %v2884, %v2883
      %v2977 = vpack.c.b16 %v2886, %v2885
      %v2978 = vpack.c.b16 %v2888, %v2887
      %v2979 = vpack.c.b16 %v2890, %v2889
      %v2980 = vpack.c.b16 %v2892, %v2891
      %v2981 = vpack.c.b16 %v2894, %v2893
      %v2982 = vpack.c.b16 %v2896, %v2895
      %v2983 = vpack.c.b16 %v2898, %v2897
      %v2984 = vpack.c.b16 %v2900, %v2899
      %v2985 = vpack.c.b16 %v2902, %v2901
      %v2986 = vpack.c.b16 %v2904, %v2903
      %v2987 = vpack.c.b16 %v2906, %v2905
      %v2988 = vpack.c.b16 %v2908, %v2907
      %v2989 = vpack.c.b16 %v2910, %v2909
      %v2990 = vpack.c.b16 %v2912, %v2911
      %v2991 = vpack.c.b16 %v2914, %v2913
      %v2992 = vpack.c.b16 %v2916, %v2915
      %v2993 = vpack.c.b16 %v2918, %v2917
      %v2994 = vpack.c.b16 %v2920, %v2919
      %v2995 = vpack.c.b16 %v2922, %v2921
      %v2996 = vpack.c.b16 %v2924, %v2923
      %3069 = vmatprep.subr.bf16.mxu0 0
      %3070 = vmatpush1.bf16.msra.mxu0 %v2932
      %3071 = vmatprep.subr.bf16.mxu0 0
      %3072 = vmatpush1.bf16.msra.mxu0 %v2931
      %3073 = vmatprep.subr.bf16.mxu0 0
      %3074 = vmatpush1.bf16.msra.mxu0 %v2930
      %3075 = vmatprep.subr.bf16.mxu0 0
      %3076 = vmatpush1.bf16.msra.mxu0 %v2929
      %3077 = vmatprep.subr.bf16.mxu0 0
      %3078 = vmatpush1.bf16.msra.mxu0 %v2928
      %3079 = vmatprep.subr.bf16.mxu0 0
      %3080 = vmatpush1.bf16.msra.mxu0 %v2927
      %3081 = vmatprep.subr.bf16.mxu0 0
      %3082 = vmatpush1.bf16.msra.mxu0 %v2926
      %3083 = vmatprep.subr.bf16.mxu0 0
      %3084 = vmatpush1.bf16.msra.mxu0 %v2925
      %3085 = vmatprep.subr.bf16.mxu0 0
      %3086 = vmatpush2.bf16.msra.mxu0 %v2940
      %3087 = vmatprep.subr.bf16.mxu0 0
      %3088 = vmatpush2.bf16.msra.mxu0 %v2939
      %3089 = vmatprep.subr.bf16.mxu0 0
      %3090 = vmatpush2.bf16.msra.mxu0 %v2938
      %3091 = vmatprep.subr.bf16.mxu0 0
      %3092 = vmatpush2.bf16.msra.mxu0 %v2937
      %3093 = vmatprep.subr.bf16.mxu0 0
      %3094 = vmatpush2.bf16.msra.mxu0 %v2936
      %3095 = vmatprep.subr.bf16.mxu0 0
      %3096 = vmatpush2.bf16.msra.mxu0 %v2935
      %3097 = vmatprep.subr.bf16.mxu0 0
      %3098 = vmatpush2.bf16.msra.mxu0 %v2934
      %3099 = vmatprep.subr.bf16.mxu0 0
      %3100 = vmatpush2.bf16.msra.mxu0 %v2933
      %3101 = vmatprep.mubr.bf16.mxu0 %v2566
      %3102 = vmatmul.mubr.bf16.gmra.mxu0 %v2565
      %v3103 = vpop.f32.mrf.mxu0
      %v3104 = vadd.f32 %v2451, %v3103
      %v3105 = vpop.f32.mrf.mxu0
      %v3106 = vpop.f32.mrf.mxu0
      %v3107 = vadd.f32 %v2451, %v3106
      %v3108 = vpop.f32.mrf.mxu0
      %3109 = vmatprep.mubr.bf16.mxu0 %v2575
      %3110 = vmatmul.mubr.bf16.gmra.mxu0 %v2574
      %v3111 = vpop.f32.mrf.mxu0
      %v3112 = vadd.f32 %v2451, %v3111
      %v3113 = vpop.f32.mrf.mxu0
      %v3114 = vpop.f32.mrf.mxu0
      %v3115 = vadd.f32 %v2451, %v3114
      %v3116 = vpop.f32.mrf.mxu0
      %3117 = vmatprep.mubr.bf16.mxu0 %v2584
      %3118 = vmatmul.mubr.bf16.gmra.mxu0 %v2583
      %v3119 = vpop.f32.mrf.mxu0
      %v3120 = vadd.f32 %v2451, %v3119
      %v3121 = vpop.f32.mrf.mxu0
      %v3122 = vpop.f32.mrf.mxu0
      %v3123 = vadd.f32 %v2451, %v3122
      %v3124 = vpop.f32.mrf.mxu0
      %3125 = vmatprep.mubr.bf16.mxu0 %v2593
      %3126 = vmatmul.mubr.bf16.gmra.mxu0 %v2592
      %v3127 = vpop.f32.mrf.mxu0
      %v3128 = vadd.f32 %v2451, %v3127
      %v3129 = vpop.f32.mrf.mxu0
      %v3130 = vpop.f32.mrf.mxu0
      %v3131 = vadd.f32 %v2451, %v3130
      %v3132 = vpop.f32.mrf.mxu0
      %3133 = vdwg.mxu0
      %3134 = vmatprep.subr.bf16.mxu0 0
      %3135 = vmatpush1.bf16.msra.mxu0 %v2948
      %3136 = vmatprep.subr.bf16.mxu0 0
      %3137 = vmatpush1.bf16.msra.mxu0 %v2947
      %3138 = vmatprep.subr.bf16.mxu0 0
      %3139 = vmatpush1.bf16.msra.mxu0 %v2946
      %3140 = vmatprep.subr.bf16.mxu0 0
      %3141 = vmatpush1.bf16.msra.mxu0 %v2945
      %3142 = vmatprep.subr.bf16.mxu0 0
      %3143 = vmatpush1.bf16.msra.mxu0 %v2944
      %3144 = vmatprep.subr.bf16.mxu0 0
      %3145 = vmatpush1.bf16.msra.mxu0 %v2943
      %3146 = vmatprep.subr.bf16.mxu0 0
      %3147 = vmatpush1.bf16.msra.mxu0 %v2942
      %3148 = vmatprep.subr.bf16.mxu0 0
      %3149 = vmatpush1.bf16.msra.mxu0 %v2941
      %3150 = vmatprep.subr.bf16.mxu0 0
      %3151 = vmatpush2.bf16.msra.mxu0 %v2956
      %3152 = vmatprep.subr.bf16.mxu0 0
      %3153 = vmatpush2.bf16.msra.mxu0 %v2955
      %3154 = vmatprep.subr.bf16.mxu0 0
      %3155 = vmatpush2.bf16.msra.mxu0 %v2954
      %3156 = vmatprep.subr.bf16.mxu0 0
      %3157 = vmatpush2.bf16.msra.mxu0 %v2953
      %3158 = vmatprep.subr.bf16.mxu0 0
      %3159 = vmatpush2.bf16.msra.mxu0 %v2952
      %3160 = vmatprep.subr.bf16.mxu0 0
      %3161 = vmatpush2.bf16.msra.mxu0 %v2951
      %3162 = vmatprep.subr.bf16.mxu0 0
      %3163 = vmatpush2.bf16.msra.mxu0 %v2950
      %3164 = vmatprep.subr.bf16.mxu0 0
      %3165 = vmatpush2.bf16.msra.mxu0 %v2949
      %3166 = vmatprep.mubr.bf16.mxu0 %v2568
      %3167 = vmatmul.mubr.bf16.gmra.mxu0 %v2567
      %v3168 = vpop.f32.mrf.mxu0
      %v3169 = vadd.f32 %v3104, %v3168
      %v3170 = vpop.f32.mrf.mxu0
      %v3171 = vpop.f32.mrf.mxu0
      %v3172 = vadd.f32 %v3107, %v3171
      %v3173 = vpop.f32.mrf.mxu0
      %3174 = vmatprep.mubr.bf16.mxu0 %v2577
      %3175 = vmatmul.mubr.bf16.gmra.mxu0 %v2576
      %v3176 = vpop.f32.mrf.mxu0
      %v3177 = vadd.f32 %v3112, %v3176
      %v3178 = vpop.f32.mrf.mxu0
      %v3179 = vpop.f32.mrf.mxu0
      %v3180 = vadd.f32 %v3115, %v3179
      %v3181 = vpop.f32.mrf.mxu0
      %3182 = vmatprep.mubr.bf16.mxu0 %v2586
      %3183 = vmatmul.mubr.bf16.gmra.mxu0 %v2585
      %v3184 = vpop.f32.mrf.mxu0
      %v3185 = vadd.f32 %v3120, %v3184
      %v3186 = vpop.f32.mrf.mxu0
      %v3187 = vpop.f32.mrf.mxu0
      %v3188 = vadd.f32 %v3123, %v3187
      %v3189 = vpop.f32.mrf.mxu0
      %3190 = vmatprep.mubr.bf16.mxu0 %v2595
      %3191 = vmatmul.mubr.bf16.gmra.mxu0 %v2594
      %v3192 = vpop.f32.mrf.mxu0
      %v3193 = vadd.f32 %v3128, %v3192
      %v3194 = vpop.f32.mrf.mxu0
      %v3195 = vpop.f32.mrf.mxu0
      %v3196 = vadd.f32 %v3131, %v3195
      %v3197 = vpop.f32.mrf.mxu0
      %3198 = vdwg.mxu0
      %3199 = vmatprep.subr.bf16.mxu0 0
      %3200 = vmatpush1.bf16.msra.mxu0 %v2964
      %3201 = vmatprep.subr.bf16.mxu0 0
      %3202 = vmatpush1.bf16.msra.mxu0 %v2963
      %3203 = vmatprep.subr.bf16.mxu0 0
      %3204 = vmatpush1.bf16.msra.mxu0 %v2962
      %3205 = vmatprep.subr.bf16.mxu0 0
      %3206 = vmatpush1.bf16.msra.mxu0 %v2961
      %3207 = vmatprep.subr.bf16.mxu0 0
      %3208 = vmatpush1.bf16.msra.mxu0 %v2960
      %3209 = vmatprep.subr.bf16.mxu0 0
      %3210 = vmatpush1.bf16.msra.mxu0 %v2959
      %3211 = vmatprep.subr.bf16.mxu0 0
      %3212 = vmatpush1.bf16.msra.mxu0 %v2958
      %3213 = vmatprep.subr.bf16.mxu0 0
      %3214 = vmatpush1.bf16.msra.mxu0 %v2957
      %3215 = vmatprep.subr.bf16.mxu0 0
      %3216 = vmatpush2.bf16.msra.mxu0 %v2972
      %3217 = vmatprep.subr.bf16.mxu0 0
      %3218 = vmatpush2.bf16.msra.mxu0 %v2971
      %3219 = vmatprep.subr.bf16.mxu0 0
      %3220 = vmatpush2.bf16.msra.mxu0 %v2970
      %3221 = vmatprep.subr.bf16.mxu0 0
      %3222 = vmatpush2.bf16.msra.mxu0 %v2969
      %3223 = vmatprep.subr.bf16.mxu0 0
      %3224 = vmatpush2.bf16.msra.mxu0 %v2968
      %3225 = vmatprep.subr.bf16.mxu0 0
      %3226 = vmatpush2.bf16.msra.mxu0 %v2967
      %3227 = vmatprep.subr.bf16.mxu0 0
      %3228 = vmatpush2.bf16.msra.mxu0 %v2966
      %3229 = vmatprep.subr.bf16.mxu0 0
      %3230 = vmatpush2.bf16.msra.mxu0 %v2965
      %3231 = vmatprep.mubr.bf16.mxu0 %v2570
      %3232 = vmatmul.mubr.bf16.gmra.mxu0 %v2569
      %v3233 = vpop.f32.mrf.mxu0
      %v3234 = vadd.f32 %v3169, %v3233
      %v3235 = vpop.f32.mrf.mxu0
      %v3236 = vpop.f32.mrf.mxu0
      %v3237 = vadd.f32 %v3172, %v3236
      %v3238 = vpop.f32.mrf.mxu0
      %3239 = vmatprep.mubr.bf16.mxu0 %v2579
      %3240 = vmatmul.mubr.bf16.gmra.mxu0 %v2578
      %v3241 = vpop.f32.mrf.mxu0
      %v3242 = vadd.f32 %v3177, %v3241
      %v3243 = vpop.f32.mrf.mxu0
      %v3244 = vpop.f32.mrf.mxu0
      %v3245 = vadd.f32 %v3180, %v3244
      %v3246 = vpop.f32.mrf.mxu0
      %3247 = vmatprep.mubr.bf16.mxu0 %v2588
      %3248 = vmatmul.mubr.bf16.gmra.mxu0 %v2587
      %v3249 = vpop.f32.mrf.mxu0
      %v3250 = vadd.f32 %v3185, %v3249
      %v3251 = vpop.f32.mrf.mxu0
      %v3252 = vpop.f32.mrf.mxu0
      %v3253 = vadd.f32 %v3188, %v3252
      %v3254 = vpop.f32.mrf.mxu0
      %3255 = vmatprep.mubr.bf16.mxu0 %v2597
      %3256 = vmatmul.mubr.bf16.gmra.mxu0 %v2596
      %v3257 = vpop.f32.mrf.mxu0
      %v3258 = vadd.f32 %v3193, %v3257
      %v3259 = vpop.f32.mrf.mxu0
      %v3260 = vpop.f32.mrf.mxu0
      %v3261 = vadd.f32 %v3196, %v3260
      %v3262 = vpop.f32.mrf.mxu0
      %3263 = vdwg.mxu0
      %3264 = vmatprep.subr.bf16.mxu0 0
      %3265 = vmatpush1.bf16.msra.mxu0 %v2980
      %3266 = vmatprep.subr.bf16.mxu0 0
      %3267 = vmatpush1.bf16.msra.mxu0 %v2979
      %3268 = vmatprep.subr.bf16.mxu0 0
      %3269 = vmatpush1.bf16.msra.mxu0 %v2978
      %3270 = vmatprep.subr.bf16.mxu0 0
      %3271 = vmatpush1.bf16.msra.mxu0 %v2977
      %3272 = vmatprep.subr.bf16.mxu0 0
      %3273 = vmatpush1.bf16.msra.mxu0 %v2976
      %3274 = vmatprep.subr.bf16.mxu0 0
      %3275 = vmatpush1.bf16.msra.mxu0 %v2975
      %3276 = vmatprep.subr.bf16.mxu0 0
      %3277 = vmatpush1.bf16.msra.mxu0 %v2974
      %3278 = vmatprep.subr.bf16.mxu0 0
      %3279 = vmatpush1.bf16.msra.mxu0 %v2973
      %3280 = vmatprep.subr.bf16.mxu0 0
      %3281 = vmatpush2.bf16.msra.mxu0 %v2988
      %3282 = vmatprep.subr.bf16.mxu0 0
      %3283 = vmatpush2.bf16.msra.mxu0 %v2987
      %3284 = vmatprep.subr.bf16.mxu0 0
      %3285 = vmatpush2.bf16.msra.mxu0 %v2986
      %3286 = vmatprep.subr.bf16.mxu0 0
      %3287 = vmatpush2.bf16.msra.mxu0 %v2985
      %3288 = vmatprep.subr.bf16.mxu0 0
      %3289 = vmatpush2.bf16.msra.mxu0 %v2984
      %3290 = vmatprep.subr.bf16.mxu0 0
      %3291 = vmatpush2.bf16.msra.mxu0 %v2983
      %3292 = vmatprep.subr.bf16.mxu0 0
      %3293 = vmatpush2.bf16.msra.mxu0 %v2982
      %3294 = vmatprep.subr.bf16.mxu0 0
      %3295 = vmatpush2.bf16.msra.mxu0 %v2981
      %3296 = vmatprep.mubr.bf16.mxu0 %v2572
      %3297 = vmatmul.mubr.bf16.gmra.mxu0 %v2571
      %v3298 = vpop.f32.mrf.mxu0
      %v3299 = vadd.f32 %v3234, %v3298
      %v3300 = vpop.f32.mrf.mxu0
      %v3301 = vpop.f32.mrf.mxu0
      %v3302 = vadd.f32 %v3237, %v3301
      %v3303 = vpop.f32.mrf.mxu0
      %3304 = vmatprep.mubr.bf16.mxu0 %v2581
      %3305 = vmatmul.mubr.bf16.gmra.mxu0 %v2580
      %v3306 = vpop.f32.mrf.mxu0
      %v3307 = vadd.f32 %v3242, %v3306
      %v3308 = vpop.f32.mrf.mxu0
      %v3309 = vpop.f32.mrf.mxu0
      %v3310 = vadd.f32 %v3245, %v3309
      %v3311 = vpop.f32.mrf.mxu0
      %3312 = vmatprep.mubr.bf16.mxu0 %v2590
      %3313 = vmatmul.mubr.bf16.gmra.mxu0 %v2589
      %v3314 = vpop.f32.mrf.mxu0
      %v3315 = vadd.f32 %v3250, %v3314
      %v3316 = vpop.f32.mrf.mxu0
      %v3317 = vpop.f32.mrf.mxu0
      %v3318 = vadd.f32 %v3253, %v3317
      %v3319 = vpop.f32.mrf.mxu0
      %3320 = vmatprep.mubr.bf16.mxu0 %v2599
      %3321 = vmatmul.mubr.bf16.gmra.mxu0 %v2598
      %v3322 = vpop.f32.mrf.mxu0
      %v3323 = vadd.f32 %v3258, %v3322
      %v3324 = vpop.f32.mrf.mxu0
      %v3325 = vpop.f32.mrf.mxu0
      %v3326 = vadd.f32 %v3261, %v3325
      %v3327 = vpop.f32.mrf.mxu0
      %3328 = vdwg.mxu0
      %3329 = vmatprep.subr.bf16.mxu0 0
      %3330 = vmatpush1.bf16.msra.mxu0 %v2996
      %3331 = vmatprep.subr.bf16.mxu0 0
      %3332 = vmatpush1.bf16.msra.mxu0 %v2995
      %3333 = vmatprep.subr.bf16.mxu0 0
      %3334 = vmatpush1.bf16.msra.mxu0 %v2994
      %3335 = vmatprep.subr.bf16.mxu0 0
      %3336 = vmatpush1.bf16.msra.mxu0 %v2993
      %3337 = vmatprep.subr.bf16.mxu0 0
      %3338 = vmatpush1.bf16.msra.mxu0 %v2992
      %3339 = vmatprep.subr.bf16.mxu0 0
      %3340 = vmatpush1.bf16.msra.mxu0 %v2991
      %3341 = vmatprep.subr.bf16.mxu0 0
      %3342 = vmatpush1.bf16.msra.mxu0 %v2990
      %3343 = vmatprep.subr.bf16.mxu0 0
      %3344 = vmatpush1.bf16.msra.mxu0 %v2989
      %3345 = vmatprep.subr.bf16.mxu0 0
      %3346 = vmatpush2.bf16.msra.mxu0 0
      %3347 = vmatprep.subr.bf16.mxu0 0
      %3348 = vmatpush2.bf16.msra.mxu0 0
      %3349 = vmatprep.subr.bf16.mxu0 0
      %3350 = vmatpush2.bf16.msra.mxu0 0
      %3351 = vmatprep.subr.bf16.mxu0 0
      %3352 = vmatpush2.bf16.msra.mxu0 0
      %3353 = vmatprep.subr.bf16.mxu0 0
      %3354 = vmatpush2.bf16.msra.mxu0 0
      %3355 = vmatprep.subr.bf16.mxu0 0
      %3356 = vmatpush2.bf16.msra.mxu0 0
      %3357 = vmatprep.subr.bf16.mxu0 0
      %3358 = vmatpush2.bf16.msra.mxu0 0
      %3359 = vmatprep.subr.bf16.mxu0 0
      %3360 = vmatpush2.bf16.msra.mxu0 0
      %3361 = vmatprep.mubr.bf16.mxu0 0
      %3362 = vmatmul.mubr.bf16.gmra.mxu0 %v2573
      %v3363 = vpop.f32.mrf.mxu0
      %v3364 = vadd.f32 %v3299, %v3363
      %v3365 = vpop.f32.mrf.mxu0
      %v3366 = vpop.f32.mrf.mxu0
      %v3367 = vadd.f32 %v3302, %v3366
      %v3368 = vpop.f32.mrf.mxu0
      %3369 = vmatprep.mubr.bf16.mxu0 0
      %3370 = vmatmul.mubr.bf16.gmra.mxu0 %v2582
      %v3371 = vpop.f32.mrf.mxu0
      %v3372 = vadd.f32 %v3307, %v3371
      %v3373 = vpop.f32.mrf.mxu0
      %v3374 = vpop.f32.mrf.mxu0
      %v3375 = vadd.f32 %v3310, %v3374
      %v3376 = vpop.f32.mrf.mxu0
      %3377 = vmatprep.mubr.bf16.mxu0 0
      %3378 = vmatmul.mubr.bf16.gmra.mxu0 %v2591
      %v3379 = vpop.f32.mrf.mxu0
      %v3380 = vadd.f32 %v3315, %v3379
      %v3381 = vpop.f32.mrf.mxu0
      %v3382 = vpop.f32.mrf.mxu0
      %v3383 = vadd.f32 %v3318, %v3382
      %v3384 = vpop.f32.mrf.mxu0
      %3385 = vmatprep.mubr.bf16.mxu0 0
      %3386 = vmatmul.mubr.bf16.gmra.mxu0 %v2600
      %v3387 = vpop.f32.mrf.mxu0
      %v3388 = vadd.f32 %v3323, %v3387
      %v3389 = vpop.f32.mrf.mxu0
      %v3390 = vpop.f32.mrf.mxu0
      %v3391 = vadd.f32 %v3326, %v3390
      %v3392 = vpop.f32.mrf.mxu0
      %3393 = vdwg.mxu0
      %3394 = vst [vmem:[%s343] sm:$0xff] %v3364
      %3395 = vst [vmem:[%s343 + $0x8] sm:$0xff] %v3367
      %3396 = vst [vmem:[%s343 + $0x10] sm:$0xff] %v3372
      %3397 = vst [vmem:[%s343 + $0x18] sm:$0xff] %v3375
      %3398 = vst [vmem:[%s343 + $0x20] sm:$0xff] %v3380
      %3399 = vst [vmem:[%s343 + $0x28] sm:$0xff] %v3383
      %3400 = vst [vmem:[%s343 + $0x30] sm:$0xff] %v3388
      %3401 = vst [vmem:[%s343 + $0x38] sm:$0xff] %v3391
      %v3402 = vadd.f32 %v3364, %v3367
      %v3403 = vadd.f32 %v3402, %v3372
      %v3404 = vadd.f32 %v3403, %v3375
      %v3405 = vadd.f32 %v3404, %v3380
      %v3406 = vadd.f32 %v3405, %v3383
      %v3407 = vadd.f32 %v3406, %v3388
      %v3408 = vadd.f32 %v3407, %v3391
      %v3409 = vrot.slane %v3408, 4
      %v3410 = vadd.f32 %v3408, %v3409
      %v3411 = vrot.slane %v3410, 2
      %v3412 = vadd.f32 %v3410, %v3411
      %v3413 = vrot.slane %v3412, 1
      %v3414 = vadd.f32 %v3412, %v3413
      %3415 = vst [vmem:[%s346] sm:$0x1] %v3414
      %v3416 = vmul.f32 %v3364, %v3364
      %v3417 = vmul.f32 %v3367, %v3367
      %v3418 = vmul.f32 %v3372, %v3372
      %v3419 = vmul.f32 %v3375, %v3375
      %v3420 = vmul.f32 %v3380, %v3380
      %v3421 = vmul.f32 %v3383, %v3383
      %v3422 = vmul.f32 %v3388, %v3388
      %v3423 = vmul.f32 %v3391, %v3391
      %v3424 = vadd.f32 %v3416, %v3417
      %v3425 = vadd.f32 %v3424, %v3418
      %v3426 = vadd.f32 %v3425, %v3419
      %v3427 = vadd.f32 %v3426, %v3420
      %v3428 = vadd.f32 %v3427, %v3421
      %v3429 = vadd.f32 %v3428, %v3422
      %v3430 = vadd.f32 %v3429, %v3423
      %v3431 = vrot.slane %v3430, 4
      %v3432 = vadd.f32 %v3430, %v3431
      %v3433 = vrot.slane %v3432, 2
      %v3434 = vadd.f32 %v3432, %v3433
      %v3435 = vrot.slane %v3434, 1
      %v3436 = vadd.f32 %v3434, %v3435
      %3437 = vst [vmem:[%s349] sm:$0x1] %v3436
      %p3438 = scmp.lt.s32.totalorder %s21, 1
      %s3439 = scalar_select %p3438, %s21, 1
      %s3440 = smul.addr %s3439, 8
      %s3441 = smul.addr %s3440, 8
      %s3442 = scalar_lea.vmem %s7, %s3441
      %p3443 = scmp.lt.s32.totalorder %s21, 1
      %s3444 = scalar_select %p3443, %s21, 1
      %s3445 = scalar_lea.vmem %s8, %s3444
      %p3446 = scmp.lt.s32.totalorder %s21, 1
      %s3447 = scalar_select %p3446, %s21, 1
      %s3448 = scalar_lea.vmem %s9, %s3447
      // Predicated region
      $region49: #{residual_block_forward.2} parent=47 // pred_check
        %p3449 = pneg %p191
      $region50: #{residual_block_forward.2} parent=47 // pred_check_branch
        %3451 = sbr.rel (%p3449) target = $region52
      $region51: #{residual_block_forward.2} parent=47 // pred_region
        _
      $region52: #{residual_block_forward.2} parent=47 // pred_fallthru
        _
      // Predicated region
      $region53: #{residual_block_forward.2} parent=47 // pred_check
        %p3452 = pneg %p217
      $region54: #{residual_block_forward.2} parent=47 // pred_check_branch
        %3454 = sbr.rel (%p3452) target = $region56
      $region55: #{residual_block_forward.2} parent=47 // pred_region
        _
      $region56: #{residual_block_forward.2} parent=47 // pred_fallthru
        _
      // Predicated region
      $region57: #{residual_block_forward.2} parent=47 // pred_check
        %p3455 = pneg %p243
      $region58: #{residual_block_forward.2} parent=47 // pred_check_branch
        %3457 = sbr.rel (%p3455) target = $region60
      $region59: #{residual_block_forward.2} parent=47 // pred_region
        _
      $region60: #{residual_block_forward.2} parent=47 // pred_fallthru
        _
    $region48: #{residual_block_forward.2} parent=5 // pred_fallthru
      _
    %p3458 = scmp.le.s32.totalorder 2, %s16
    // Predicated region
    $region61: #{residual_block_forward.2} parent=5 // pred_check
      %p3459 = pneg %p3458
    $region62: #{residual_block_forward.2} parent=5 // pred_check_branch
      %3461 = sbr.rel (%p3459) target = $region64
    $region63: #{residual_block_forward.2} parent=5 // pred_region
      %s3462 = ssub.s32 %s16, 2
      // Predicated region
      $region65: #{residual_block_forward.2} parent=63 // pred_check
        %p3463 = pneg %p197
      $region66: #{residual_block_forward.2} parent=63 // pred_check_branch
        %3465 = sbr.rel (%p3463) target = $region68
      $region67: #{residual_block_forward.2} parent=63 // pred_region
        %p3466 = scmp.lt.s32.totalorder %s22, 1
        %s3467 = scalar_select %p3466, %s22, 1
        %s3468 = smul.addr %s3467, 8
        %s3469 = smul.addr %s3468, 8
        %s3470 = scalar_lea.vmem %s7, %s3469
      $region68: #{residual_block_forward.2} parent=63 // pred_fallthru
        _
      // Predicated region
      $region69: #{residual_block_forward.2} parent=63 // pred_check
        %p3471 = pneg %p223
      $region70: #{residual_block_forward.2} parent=63 // pred_check_branch
        %3473 = sbr.rel (%p3471) target = $region72
      $region71: #{residual_block_forward.2} parent=63 // pred_region
        %p3474 = scmp.lt.s32.totalorder %s22, 1
        %s3475 = scalar_select %p3474, %s22, 1
        %s3476 = scalar_lea.vmem %s8, %s3475
      $region72: #{residual_block_forward.2} parent=63 // pred_fallthru
        _
      // Predicated region
      $region73: #{residual_block_forward.2} parent=63 // pred_check
        %p3477 = pneg %p249
      $region74: #{residual_block_forward.2} parent=63 // pred_check_branch
        %3479 = sbr.rel (%p3477) target = $region76
      $region75: #{residual_block_forward.2} parent=63 // pred_region
        %p3480 = scmp.lt.s32.totalorder %s22, 1
        %s3481 = scalar_select %p3480, %s22, 1
        %s3482 = scalar_lea.vmem %s9, %s3481
      $region76: #{residual_block_forward.2} parent=63 // pred_fallthru
        _
    $region64: #{residual_block_forward.2} parent=5 // pred_fallthru
      _
  $region6: #{residual_block_forward.2} parent=0 // loop_footer
    %s20 = sadd.s32 1, %s16
  $region7: #{residual_block_forward.2} parent=0 // loop_footer_branch
    %15 = sbr.rel target = $region3
  $region8: #{residual_block_forward.2} parent=0 // loop_exit
    _

</llo_original>
